<compile_context>
chip_gen: v7x
topology: tpu7x:2x2x1
jax: 0.10.0
libtpu: 0.0.40
codegen_flags: <defaults>
</compile_context>

<pallas_src>
import math
import functools

import jax
import jax.numpy as jnp
from jax import lax
from jax.experimental import pallas as pl
from jax.experimental.pallas import tpu as pltpu


NEG_INF = -1e30  # finite "minus infinity" for masking (no -inf - -inf NaNs)


# ----------------------------- Pallas kernel -------------------------------

def _block_kernel(x_q_ref, x_kv_ref,
                  ln1_g_ref, ln1_b_ref,
                  wq_ref, bq_ref, wk_ref, bk_ref, wv_ref, bv_ref,
                  wout_ref, bout_ref,
                  ln2_g_ref, ln2_b_ref,
                  w1_ref, b1_ref, w2_ref, b2_ref,
                  o_ref,
                  q_sc, m_sc, l_sc, acc_sc,
                  *, head_cnt, head_size, tq, tk, eps):
    qi = pl.program_id(1)            # query-tile index
    ki = pl.program_id(2)            # kv-tile index (reduction axis, last)
    n_kv = pl.num_programs(2)
    C = head_cnt * head_size
    scale = 1.0 / math.sqrt(head_size)

    def layernorm(z, g, b):
        mu = jnp.mean(z, axis=-1, keepdims=True)
        var = jnp.mean((z - mu) ** 2, axis=-1, keepdims=True)
        return (z - mu) * lax.rsqrt(var + eps) * g + b

    # -------- init: once per (batch, q-tile) --------
    @pl.when(ki == 0)
    def _init():
        xq = x_q_ref[...].astype(jnp.float32)                       # (tq, C)
        xn = layernorm(xq, ln1_g_ref[0], ln1_b_ref[0])
        q = jnp.dot(xn.astype(jnp.bfloat16), wq_ref[...],
                    preferred_element_type=jnp.float32) + bq_ref[0]
        # fold the 1/sqrt(head_size) attention scale into q
        q_sc[...] = (q * scale).astype(jnp.bfloat16)
        m_sc[...] = jnp.full_like(m_sc, NEG_INF)
        l_sc[...] = jnp.zeros_like(l_sc)
        acc_sc[...] = jnp.zeros_like(acc_sc)

    # -------- flash-attention update over this kv tile --------
    # Skip kv tiles that lie entirely above the causal diagonal.
    @pl.when(ki * tk < (qi + 1) * tq)
    def _update():
        xkv = x_kv_ref[...].astype(jnp.float32)                     # (tk, C)
        xn = layernorm(xkv, ln1_g_ref[0], ln1_b_ref[0]).astype(jnp.bfloat16)
        k = jnp.dot(xn, wk_ref[...],
                    preferred_element_type=jnp.float32) + bk_ref[0]
        v = jnp.dot(xn, wv_ref[...],
                    preferred_element_type=jnp.float32) + bv_ref[0]
        k3 = k.astype(jnp.bfloat16).reshape(tk, head_cnt, head_size)
        v3 = v.astype(jnp.bfloat16).reshape(tk, head_cnt, head_size)
        q3 = q_sc[...].reshape(tq, head_cnt, head_size)             # bf16

        # batched over heads: scores (H, tq, tk), f32 accumulation
        s = jnp.einsum('qhd,khd->hqk', q3, k3,
                       preferred_element_type=jnp.float32)
        row = qi * tq + lax.broadcasted_iota(jnp.int32, (tq, tk), 0)
        col = ki * tk + lax.broadcasted_iota(jnp.int32, (tq, tk), 1)
        s = jnp.where((col > row)[None, :, :], NEG_INF, s)

        m_prev = m_sc[...]                                          # (H, tq, 1)
        m_new = jnp.maximum(m_prev, s.max(axis=-1, keepdims=True))
        alpha = jnp.exp(m_prev - m_new)
        p = jnp.exp(s - m_new)
        l_sc[...] = alpha * l_sc[...] + p.sum(axis=-1, keepdims=True)
        pv = jnp.einsum('hqk,khd->hqd', p.astype(jnp.bfloat16), v3,
                        preferred_element_type=jnp.float32)
        acc_sc[...] = alpha * acc_sc[...] + pv
        m_sc[...] = m_new

    # -------- finalize: out-proj, residual 1, FFN, residual 2 --------
    @pl.when(ki == n_kv - 1)
    def _finalize():
        y3 = acc_sc[...] * pl.reciprocal(l_sc[...], approx=True)    # (H, tq, Hs)
        # merge heads back to (tq, C) once per q-tile
        y = jnp.concatenate([y3[h] for h in range(head_cnt)], axis=-1)
        att = jnp.dot(y.astype(jnp.bfloat16), wout_ref[...],
                      preferred_element_type=jnp.float32) + bout_ref[0]
        x1 = x_q_ref[...].astype(jnp.float32) + att                 # residual 1

        xn2 = layernorm(x1, ln2_g_ref[0], ln2_b_ref[0])
        h = jnp.dot(xn2.astype(jnp.bfloat16), w1_ref[...],
                    preferred_element_type=jnp.float32) + b1_ref[0]
        h = 0.5 * h * (1.0 + lax.erf(h * (1.0 / math.sqrt(2.0))))   # exact GELU
        h = jnp.dot(h.astype(jnp.bfloat16), w2_ref[...],
                    preferred_element_type=jnp.float32) + b2_ref[0]
        o_ref[...] = (x1 + h).astype(o_ref.dtype)                   # residual 2


# ------------------------------- wrapper ------------------------------------

def _pick_tile(T, target=128):
    """Largest divisor of T that is <= target and a multiple of 8 (or T)."""
    for t in range(min(T, target), 0, -1):
        if T % t == 0 and (t % 8 == 0 or t == T):
            return t
    return T


def _vmem_limit_bytes(weights, tq, tk, C):
    wbytes = sum(int(w.size) * w.dtype.itemsize for w in weights)
    io_bytes = (tq * C + tk * C + tq * C) * 4
    est = 2 * (wbytes + io_bytes) + 8 * 2 ** 20          # double-buffer + slack
    return int(min(56 * 2 ** 20, max(32 * 2 ** 20, est)))  # stay under v7x 64 MiB


def block_forward(x, params, *, head_cnt, tq=None, tk=None, eps=1e-5):
    """x: (B, T, C) float32.  params: dict of weights (see init_params)."""
    B, T, C = x.shape
    head_size = C // head_cnt
    if tq is None:
        tq = _pick_tile(T)
    if tk is None:
        tk = _pick_tile(T)
    assert T % tq == 0 and T % tk == 0

    names = ["ln1_g", "ln1_b", "wq", "bq", "wk", "bk", "wv", "bv",
             "wout", "bout", "ln2_g", "ln2_b", "w1", "b1", "w2", "b2"]
    weights = [params[n] for n in names]

    def resident(a):
        zeros = (0,) * a.ndim
        return pl.BlockSpec(a.shape, lambda b, i, j, _z=zeros: _z)

    kernel = functools.partial(_block_kernel, head_cnt=head_cnt,
                               head_size=head_size, tq=tq, tk=tk, eps=eps)

    return pl.pallas_call(
        kernel,
        out_shape=jax.ShapeDtypeStruct((B, T, C), x.dtype),
        grid_spec=pltpu.PrefetchScalarGridSpec(
            num_scalar_prefetch=0,
            grid=(B, T // tq, T // tk),                  # reduction (kv) axis last
            in_specs=[
                pl.BlockSpec((None, tq, C), lambda b, i, j: (b, i, 0)),   # x q-tile
                pl.BlockSpec((None, tk, C), lambda b, i, j: (b, j, 0)),   # x kv-tile
            ] + [resident(w) for w in weights],
            out_specs=pl.BlockSpec((None, tq, C), lambda b, i, j: (b, i, 0)),
            scratch_shapes=[
                pltpu.VMEM((tq, C), jnp.bfloat16),                        # q (scaled)
                pltpu.VMEM((head_cnt, tq, 1), jnp.float32),               # m
                pltpu.VMEM((head_cnt, tq, 1), jnp.float32),               # l
                pltpu.VMEM((head_cnt, tq, head_size), jnp.float32),       # acc
            ]),
        compiler_params=pltpu.CompilerParams(
            dimension_semantics=("parallel", "parallel", "arbitrary"),
            vmem_limit_bytes=_vmem_limit_bytes(weights, tq, tk, C)),
    )(x, x, *weights)


# --------------------------- parameter init ----------------------------------

def init_params(key, emb_len):
    """Deterministic synthetic parameters (shapes match the PyTorch module,
    bias=True).  Linear weights are stored transposed (in, out) and in bf16
    (MXU-native); biases and LayerNorm params stay f32."""
    ks = jax.random.split(key, 4)

    def lin(k, fan_in, fan_out):
        bound = 1.0 / math.sqrt(fan_in)
        kw, kb = jax.random.split(k)
        w = jax.random.uniform(kw, (fan_in, fan_out), jnp.float32, -bound, bound)
        b = jax.random.uniform(kb, (1, fan_out), jnp.float32, -bound, bound)
        return w.astype(jnp.bfloat16), b

    wqkv, bqkv = lin(ks[0], emb_len, 3 * emb_len)
    wq, wk, wv = (wqkv[:, :emb_len], wqkv[:, emb_len:2 * emb_len],
                  wqkv[:, 2 * emb_len:])
    bq, bk, bv = (bqkv[:, :emb_len], bqkv[:, emb_len:2 * emb_len],
                  bqkv[:, 2 * emb_len:])
    wout, bout = lin(ks[1], emb_len, emb_len)
    w1, b1 = lin(ks[2], emb_len, 4 * emb_len)
    w2, b2 = lin(ks[3], 4 * emb_len, emb_len)

    return {
        "ln1_g": jnp.ones((1, emb_len), jnp.float32),
        "ln1_b": jnp.zeros((1, emb_len), jnp.float32),
        "wq": wq, "bq": bq, "wk": wk, "bk": bk, "wv": wv, "bv": bv,
        "wout": wout, "bout": bout,
        "ln2_g": jnp.ones((1, emb_len), jnp.float32),
        "ln2_b": jnp.zeros((1, emb_len), jnp.float32),
        "w1": w1, "b1": b1,
        "w2": w2, "b2": b2,
    }


# ------------------------- pure-JAX reference --------------------------------

def block_ref(x, params, *, head_cnt, eps=1e-5):
    """Reference forward.  Mirrors the kernel's bf16 MXU-boundary casts (f32
    accumulation, f32 element-wise math) so the check isolates kernel bugs
    from expected bf16 rounding."""
    B, T, C = x.shape
    hs = C // head_cnt
    bf = jnp.bfloat16

    def ln(z, g, b):
        mu = jnp.mean(z, axis=-1, keepdims=True)
        var = jnp.mean((z - mu) ** 2, axis=-1, keepdims=True)
        return (z - mu) / jnp.sqrt(var + eps) * g[0] + b[0]

    def mm(a, w, b):
        return jnp.dot(a.astype(bf), w.astype(bf),
                       preferred_element_type=jnp.float32) + b[0]

    xn = ln(x, params["ln1_g"], params["ln1_b"])
    q = mm(xn, params["wq"], params["bq"]) * (1.0 / math.sqrt(hs))
    k = mm(xn, params["wk"], params["bk"])
    v = mm(xn, params["wv"], params["bv"])
    qh = q.reshape(B, T, head_cnt, hs).astype(bf)
    kh = k.reshape(B, T, head_cnt, hs).astype(bf)
    vh = v.reshape(B, T, head_cnt, hs).astype(bf)
    s = jnp.einsum("bqhd,bkhd->bhqk", qh, kh,
                   preferred_element_type=jnp.float32)
    mask = jnp.triu(jnp.ones((T, T), bool), 1)
    s = jnp.where(mask, NEG_INF, s)
    p = jax.nn.softmax(s, axis=-1)
    y = jnp.einsum("bhqk,bkhd->bqhd", p.astype(bf), vh,
                   preferred_element_type=jnp.float32).reshape(B, T, C)
    x1 = x + mm(y, params["wout"], params["bout"])
    xn2 = ln(x1, params["ln2_g"], params["ln2_b"])
    h = mm(xn2, params["w1"], params["b1"])
    h = 0.5 * h * (1.0 + lax.erf(h * (1.0 / math.sqrt(2.0))))
    h = mm(h, params["w2"], params["b2"])
    return x1 + h


# ---------------------------------- main -------------------------------------

if __name__ == "__main__":
    # small demo shapes; tq=tk=16 exercises the (B, T//tq, T//tk) flash grid
    B, T, C, H = 2, 32, 64, 4          # batch, seq, embedding, heads
    key = jax.random.PRNGKey(0)
    kx, kp = jax.random.split(key)

    x = jax.random.normal(kx, (B, T, C), jnp.float32)
    params = init_params(kp, C)

    out = block_forward(x, params, head_cnt=H, tq=16, tk=16)
    out = jax.block_until_ready(out)

    ref = block_ref(x, params, head_cnt=H)
    assert out.shape == (B, T, C)
    err = jnp.max(jnp.abs(out - ref))
    assert jnp.allclose(out, ref, atol=2e-2, rtol=2e-2), f"max abs err {err}"

    print("KERNEL_OK")
</pallas_src>

<mosaic_0001>
module attributes {stable_mosaic.version = 11 : i64} {
  func.func @_block_kernel(%arg0: i32, %arg1: i32, %arg2: i32, %arg3: memref<1x16x64xf32, #tpu.memory_space<vmem>>, %arg4: memref<1x16x64xf32, #tpu.memory_space<vmem>>, %arg5: memref<1x64xf32, #tpu.memory_space<vmem>>, %arg6: memref<1x64xf32, #tpu.memory_space<vmem>>, %arg7: memref<64x64xbf16, #tpu.memory_space<vmem>>, %arg8: memref<1x64xf32, #tpu.memory_space<vmem>>, %arg9: memref<64x64xbf16, #tpu.memory_space<vmem>>, %arg10: memref<1x64xf32, #tpu.memory_space<vmem>>, %arg11: memref<64x64xbf16, #tpu.memory_space<vmem>>, %arg12: memref<1x64xf32, #tpu.memory_space<vmem>>, %arg13: memref<64x64xbf16, #tpu.memory_space<vmem>>, %arg14: memref<1x64xf32, #tpu.memory_space<vmem>>, %arg15: memref<1x64xf32, #tpu.memory_space<vmem>>, %arg16: memref<1x64xf32, #tpu.memory_space<vmem>>, %arg17: memref<64x256xbf16, #tpu.memory_space<vmem>>, %arg18: memref<1x256xf32, #tpu.memory_space<vmem>>, %arg19: memref<256x64xbf16, #tpu.memory_space<vmem>>, %arg20: memref<1x64xf32, #tpu.memory_space<vmem>>, %arg21: memref<1x16x64xf32, #tpu.memory_space<vmem>>, %arg22: memref<16x64xbf16, #tpu.memory_space<vmem>>, %arg23: memref<4x16x1xf32, #tpu.memory_space<vmem>>, %arg24: memref<4x16x1xf32, #tpu.memory_space<vmem>>, %arg25: memref<4x16x16xf32, #tpu.memory_space<vmem>>) attributes {dimension_semantics = [#tpu.dimension_semantics<parallel>, #tpu.dimension_semantics<parallel>, #tpu.dimension_semantics<arbitrary>], iteration_bounds = array<i64: 2, 2, 2>, scalar_prefetch = 0 : i64, scratch_operands = 4 : i64, tpu.core_type = #tpu.core_type<tc>, window_params = [{transform_indices = @transform_0, window_bounds = array<i64: 1, 16, 64>}, {transform_indices = @transform_1, window_bounds = array<i64: 1, 16, 64>}, {pipeline_mode = #tpu.pipeline_mode<synchronous>, transform_indices = @transform_2, window_bounds = array<i64: 1, 64>}, {pipeline_mode = #tpu.pipeline_mode<synchronous>, transform_indices = @transform_3, window_bounds = array<i64: 1, 64>}, {pipeline_mode = #tpu.pipeline_mode<synchronous>, transform_indices = @transform_4, window_bounds = array<i64: 64, 64>}, {pipeline_mode = #tpu.pipeline_mode<synchronous>, transform_indices = @transform_5, window_bounds = array<i64: 1, 64>}, {pipeline_mode = #tpu.pipeline_mode<synchronous>, transform_indices = @transform_6, window_bounds = array<i64: 64, 64>}, {pipeline_mode = #tpu.pipeline_mode<synchronous>, transform_indices = @transform_7, window_bounds = array<i64: 1, 64>}, {pipeline_mode = #tpu.pipeline_mode<synchronous>, transform_indices = @transform_8, window_bounds = array<i64: 64, 64>}, {pipeline_mode = #tpu.pipeline_mode<synchronous>, transform_indices = @transform_9, window_bounds = array<i64: 1, 64>}, {pipeline_mode = #tpu.pipeline_mode<synchronous>, transform_indices = @transform_10, window_bounds = array<i64: 64, 64>}, {pipeline_mode = #tpu.pipeline_mode<synchronous>, transform_indices = @transform_11, window_bounds = array<i64: 1, 64>}, {pipeline_mode = #tpu.pipeline_mode<synchronous>, transform_indices = @transform_12, window_bounds = array<i64: 1, 64>}, {pipeline_mode = #tpu.pipeline_mode<synchronous>, transform_indices = @transform_13, window_bounds = array<i64: 1, 64>}, {pipeline_mode = #tpu.pipeline_mode<synchronous>, transform_indices = @transform_14, window_bounds = array<i64: 64, 256>}, {pipeline_mode = #tpu.pipeline_mode<synchronous>, transform_indices = @transform_15, window_bounds = array<i64: 1, 256>}, {pipeline_mode = #tpu.pipeline_mode<synchronous>, transform_indices = @transform_16, window_bounds = array<i64: 256, 64>}, {pipeline_mode = #tpu.pipeline_mode<synchronous>, transform_indices = @transform_17, window_bounds = array<i64: 1, 64>}, {transform_indices = @transform_18, window_bounds = array<i64: 1, 16, 64>}]} {
    %c0_i32 = arith.constant 0 : i32
    %0 = arith.cmpi eq, %arg2, %c0_i32 : i32
    %1 = arith.extui %0 : i1 to i32
    %c0_i32_0 = arith.constant 0 : i32
    %2 = arith.cmpi ne, %1, %c0_i32_0 : i32
    scf.if %2 {
      %c0 = arith.constant 0 : index
      %c0_5 = arith.constant 0 : index
      %c0_6 = arith.constant 0 : index
      %12 = vector.load %arg3[%c0, %c0_5, %c0_6] : memref<1x16x64xf32, #tpu.memory_space<vmem>>, vector<1x16x64xf32>
      %13 = vector.shape_cast %12 : vector<1x16x64xf32> to vector<16x64xf32>
      %c0_7 = arith.constant 0 : index
      %c0_8 = arith.constant 0 : index
      %14 = vector.load %arg5[%c0_7, %c0_8] : memref<1x64xf32, #tpu.memory_space<vmem>>, vector<1x64xf32>
      %15 = vector.shape_cast %14 : vector<1x64xf32> to vector<64xf32>
      %c0_9 = arith.constant 0 : index
      %c0_10 = arith.constant 0 : index
      %16 = vector.load %arg6[%c0_9, %c0_10] : memref<1x64xf32, #tpu.memory_space<vmem>>, vector<1x64xf32>
      %17 = vector.shape_cast %16 : vector<1x64xf32> to vector<64xf32>
      %cst = arith.constant dense<0.000000e+00> : vector<16xf32>
      %18 = vector.multi_reduction <add>, %13, %cst [1] : vector<16x64xf32> to vector<16xf32>
      %19 = vector.shape_cast %18 : vector<16xf32> to vector<16x1xf32>
      %cst_11 = arith.constant 6.400000e+01 : f32
      %20 = vector.broadcast %cst_11 : f32 to vector<16x1xf32>
      %21 = arith.divf %19, %20 : vector<16x1xf32>
      %22 = vector.broadcast %21 : vector<16x1xf32> to vector<16x64xf32>
      %23 = arith.subf %13, %22 : vector<16x64xf32>
      %24 = arith.mulf %23, %23 : vector<16x64xf32>
      %cst_12 = arith.constant dense<0.000000e+00> : vector<16xf32>
      %25 = vector.multi_reduction <add>, %24, %cst_12 [1] : vector<16x64xf32> to vector<16xf32>
      %26 = vector.shape_cast %25 : vector<16xf32> to vector<16x1xf32>
      %cst_13 = arith.constant 6.400000e+01 : f32
      %27 = vector.broadcast %cst_13 : f32 to vector<16x1xf32>
      %28 = arith.divf %26, %27 : vector<16x1xf32>
      %29 = vector.broadcast %21 : vector<16x1xf32> to vector<16x64xf32>
      %30 = arith.subf %13, %29 : vector<16x64xf32>
      %cst_14 = arith.constant 9.99999974E-6 : f32
      %31 = vector.broadcast %cst_14 : f32 to vector<16x1xf32>
      %32 = arith.addf %28, %31 : vector<16x1xf32>
      %33 = math.rsqrt %32 : vector<16x1xf32>
      %34 = vector.broadcast %33 : vector<16x1xf32> to vector<16x64xf32>
      %35 = arith.mulf %30, %34 : vector<16x64xf32>
      %36 = vector.shape_cast %15 : vector<64xf32> to vector<1x64xf32>
      %37 = vector.broadcast %36 : vector<1x64xf32> to vector<16x64xf32>
      %38 = arith.mulf %35, %37 : vector<16x64xf32>
      %39 = vector.shape_cast %17 : vector<64xf32> to vector<1x64xf32>
      %40 = vector.broadcast %39 : vector<1x64xf32> to vector<16x64xf32>
      %41 = arith.addf %38, %40 : vector<16x64xf32>
      %42 = arith.truncf %41 : vector<16x64xf32> to vector<16x64xbf16>
      %c0_15 = arith.constant 0 : index
      %c0_16 = arith.constant 0 : index
      %43 = vector.load %arg7[%c0_15, %c0_16] : memref<64x64xbf16, #tpu.memory_space<vmem>>, vector<64x64xbf16>
      %cst_17 = arith.constant dense<0.000000e+00> : vector<16x64xf32>
      %44 = tpu.matmul %42, %43, %cst_17 {dimension_numbers = #tpu.dot_dimension_numbers<[1], [0], [0], [1], [0, 0, 1, 1], [], []>} : vector<16x64xbf16>, vector<64x64xbf16>, vector<16x64xf32> -> vector<16x64xf32>
      %c0_18 = arith.constant 0 : index
      %c0_19 = arith.constant 0 : index
      %45 = vector.load %arg8[%c0_18, %c0_19] : memref<1x64xf32, #tpu.memory_space<vmem>>, vector<1x64xf32>
      %46 = vector.shape_cast %45 : vector<1x64xf32> to vector<64xf32>
      %47 = vector.shape_cast %46 : vector<64xf32> to vector<1x64xf32>
      %48 = vector.broadcast %47 : vector<1x64xf32> to vector<16x64xf32>
      %49 = arith.addf %44, %48 : vector<16x64xf32>
      %cst_20 = arith.constant 2.500000e-01 : f32
      %50 = vector.broadcast %cst_20 : f32 to vector<16x64xf32>
      %51 = arith.mulf %49, %50 : vector<16x64xf32>
      %52 = arith.truncf %51 : vector<16x64xf32> to vector<16x64xbf16>
      %c0_21 = arith.constant 0 : index
      %c0_22 = arith.constant 0 : index
      %53 = vector.load %arg22[%c0_21, %c0_22] : memref<16x64xbf16, #tpu.memory_space<vmem>>, vector<16x64xbf16>
      tpu.vector_store %arg22[%c0_21, %c0_22], %52 {strides = array<i32>} : memref<16x64xbf16, #tpu.memory_space<vmem>>, vector<16x64xbf16>,
      %cst_23 = arith.constant -1.000000e+30 : f32
      %54 = vector.broadcast %cst_23 : f32 to vector<4x16x1xf32>
      %c0_24 = arith.constant 0 : index
      %c0_25 = arith.constant 0 : index
      %c0_26 = arith.constant 0 : index
      %55 = vector.load %arg23[%c0_24, %c0_25, %c0_26] : memref<4x16x1xf32, #tpu.memory_space<vmem>>, vector<4x16x1xf32>
      tpu.vector_store %arg23[%c0_24, %c0_25, %c0_26], %54 {strides = array<i32>} : memref<4x16x1xf32, #tpu.memory_space<vmem>>, vector<4x16x1xf32>,
      %cst_27 = arith.constant 0.000000e+00 : f32
      %56 = vector.broadcast %cst_27 : f32 to vector<4x16x1xf32>
      %c0_28 = arith.constant 0 : index
      %c0_29 = arith.constant 0 : index
      %c0_30 = arith.constant 0 : index
      %57 = vector.load %arg24[%c0_28, %c0_29, %c0_30] : memref<4x16x1xf32, #tpu.memory_space<vmem>>, vector<4x16x1xf32>
      tpu.vector_store %arg24[%c0_28, %c0_29, %c0_30], %56 {strides = array<i32>} : memref<4x16x1xf32, #tpu.memory_space<vmem>>, vector<4x16x1xf32>,
      %cst_31 = arith.constant 0.000000e+00 : f32
      %58 = vector.broadcast %cst_31 : f32 to vector<4x16x16xf32>
      %c0_32 = arith.constant 0 : index
      %c0_33 = arith.constant 0 : index
      %c0_34 = arith.constant 0 : index
      %59 = vector.load %arg25[%c0_32, %c0_33, %c0_34] : memref<4x16x16xf32, #tpu.memory_space<vmem>>, vector<4x16x16xf32>
      tpu.vector_store %arg25[%c0_32, %c0_33, %c0_34], %58 {strides = array<i32>} : memref<4x16x16xf32, #tpu.memory_space<vmem>>, vector<4x16x16xf32>,
    } else {
    }
    %c16_i32 = arith.constant 16 : i32
    %3 = arith.muli %arg2, %c16_i32 : i32
    %c1_i32 = arith.constant 1 : i32
    %4 = arith.addi %arg1, %c1_i32 : i32
    %c16_i32_1 = arith.constant 16 : i32
    %5 = arith.muli %4, %c16_i32_1 : i32
    %6 = arith.cmpi slt, %3, %5 : i32
    %7 = arith.extui %6 : i1 to i32
    %c0_i32_2 = arith.constant 0 : i32
    %8 = arith.cmpi ne, %7, %c0_i32_2 : i32
    scf.if %8 {
      %c0 = arith.constant 0 : index
      %c0_5 = arith.constant 0 : index
      %c0_6 = arith.constant 0 : index
      %12 = vector.load %arg4[%c0, %c0_5, %c0_6] : memref<1x16x64xf32, #tpu.memory_space<vmem>>, vector<1x16x64xf32>
      %13 = vector.shape_cast %12 : vector<1x16x64xf32> to vector<16x64xf32>
      %c0_7 = arith.constant 0 : index
      %c0_8 = arith.constant 0 : index
      %14 = vector.load %arg5[%c0_7, %c0_8] : memref<1x64xf32, #tpu.memory_space<vmem>>, vector<1x64xf32>
      %15 = vector.shape_cast %14 : vector<1x64xf32> to vector<64xf32>
      %c0_9 = arith.constant 0 : index
      %c0_10 = arith.constant 0 : index
      %16 = vector.load %arg6[%c0_9, %c0_10] : memref<1x64xf32, #tpu.memory_space<vmem>>, vector<1x64xf32>
      %17 = vector.shape_cast %16 : vector<1x64xf32> to vector<64xf32>
      %cst = arith.constant dense<0.000000e+00> : vector<16xf32>
      %18 = vector.multi_reduction <add>, %13, %cst [1] : vector<16x64xf32> to vector<16xf32>
      %19 = vector.shape_cast %18 : vector<16xf32> to vector<16x1xf32>
      %cst_11 = arith.constant 6.400000e+01 : f32
      %20 = vector.broadcast %cst_11 : f32 to vector<16x1xf32>
      %21 = arith.divf %19, %20 : vector<16x1xf32>
      %22 = vector.broadcast %21 : vector<16x1xf32> to vector<16x64xf32>
      %23 = arith.subf %13, %22 : vector<16x64xf32>
      %24 = arith.mulf %23, %23 : vector<16x64xf32>
      %cst_12 = arith.constant dense<0.000000e+00> : vector<16xf32>
      %25 = vector.multi_reduction <add>, %24, %cst_12 [1] : vector<16x64xf32> to vector<16xf32>
      %26 = vector.shape_cast %25 : vector<16xf32> to vector<16x1xf32>
      %cst_13 = arith.constant 6.400000e+01 : f32
      %27 = vector.broadcast %cst_13 : f32 to vector<16x1xf32>
      %28 = arith.divf %26, %27 : vector<16x1xf32>
      %29 = vector.broadcast %21 : vector<16x1xf32> to vector<16x64xf32>
      %30 = arith.subf %13, %29 : vector<16x64xf32>
      %cst_14 = arith.constant 9.99999974E-6 : f32
      %31 = vector.broadcast %cst_14 : f32 to vector<16x1xf32>
      %32 = arith.addf %28, %31 : vector<16x1xf32>
      %33 = math.rsqrt %32 : vector<16x1xf32>
      %34 = vector.broadcast %33 : vector<16x1xf32> to vector<16x64xf32>
      %35 = arith.mulf %30, %34 : vector<16x64xf32>
      %36 = vector.shape_cast %15 : vector<64xf32> to vector<1x64xf32>
      %37 = vector.broadcast %36 : vector<1x64xf32> to vector<16x64xf32>
      %38 = arith.mulf %35, %37 : vector<16x64xf32>
      %39 = vector.shape_cast %17 : vector<64xf32> to vector<1x64xf32>
      %40 = vector.broadcast %39 : vector<1x64xf32> to vector<16x64xf32>
      %41 = arith.addf %38, %40 : vector<16x64xf32>
      %42 = arith.truncf %41 : vector<16x64xf32> to vector<16x64xbf16>
      %c0_15 = arith.constant 0 : index
      %c0_16 = arith.constant 0 : index
      %43 = vector.load %arg9[%c0_15, %c0_16] : memref<64x64xbf16, #tpu.memory_space<vmem>>, vector<64x64xbf16>
      %cst_17 = arith.constant dense<0.000000e+00> : vector<16x64xf32>
      %44 = tpu.matmul %42, %43, %cst_17 {dimension_numbers = #tpu.dot_dimension_numbers<[1], [0], [0], [1], [0, 0, 1, 1], [], []>} : vector<16x64xbf16>, vector<64x64xbf16>, vector<16x64xf32> -> vector<16x64xf32>
      %c0_18 = arith.constant 0 : index
      %c0_19 = arith.constant 0 : index
      %45 = vector.load %arg10[%c0_18, %c0_19] : memref<1x64xf32, #tpu.memory_space<vmem>>, vector<1x64xf32>
      %46 = vector.shape_cast %45 : vector<1x64xf32> to vector<64xf32>
      %47 = vector.shape_cast %46 : vector<64xf32> to vector<1x64xf32>
      %48 = vector.broadcast %47 : vector<1x64xf32> to vector<16x64xf32>
      %49 = arith.addf %44, %48 : vector<16x64xf32>
      %c0_20 = arith.constant 0 : index
      %c0_21 = arith.constant 0 : index
      %50 = vector.load %arg11[%c0_20, %c0_21] : memref<64x64xbf16, #tpu.memory_space<vmem>>, vector<64x64xbf16>
      %cst_22 = arith.constant dense<0.000000e+00> : vector<16x64xf32>
      %51 = tpu.matmul %42, %50, %cst_22 {dimension_numbers = #tpu.dot_dimension_numbers<[1], [0], [0], [1], [0, 0, 1, 1], [], []>} : vector<16x64xbf16>, vector<64x64xbf16>, vector<16x64xf32> -> vector<16x64xf32>
      %c0_23 = arith.constant 0 : index
      %c0_24 = arith.constant 0 : index
      %52 = vector.load %arg12[%c0_23, %c0_24] : memref<1x64xf32, #tpu.memory_space<vmem>>, vector<1x64xf32>
      %53 = vector.shape_cast %52 : vector<1x64xf32> to vector<64xf32>
      %54 = vector.shape_cast %53 : vector<64xf32> to vector<1x64xf32>
      %55 = vector.broadcast %54 : vector<1x64xf32> to vector<16x64xf32>
      %56 = arith.addf %51, %55 : vector<16x64xf32>
      %57 = arith.truncf %49 : vector<16x64xf32> to vector<16x64xbf16>
      %58 = vector.shape_cast %57 : vector<16x64xbf16> to vector<16x4x16xbf16>
      %59 = arith.truncf %56 : vector<16x64xf32> to vector<16x64xbf16>
      %60 = vector.shape_cast %59 : vector<16x64xbf16> to vector<16x4x16xbf16>
      %c0_25 = arith.constant 0 : index
      %c0_26 = arith.constant 0 : index
      %61 = vector.load %arg22[%c0_25, %c0_26] : memref<16x64xbf16, #tpu.memory_space<vmem>>, vector<16x64xbf16>
      %62 = vector.shape_cast %61 : vector<16x64xbf16> to vector<16x4x16xbf16>
      "tpu.trace_start"() <{level = 10 : i32, message = "qhd,khd->hqk"}> : () -> ()
      %cst_27 = arith.constant dense<0.000000e+00> : vector<4x16x16xf32>
      %63 = tpu.matmul %62, %58, %cst_27 {dimension_numbers = #tpu.dot_dimension_numbers<[2], [2], [0], [0], [0, 1, 0, 0, 1, 0], [1], [1]>} : vector<16x4x16xbf16>, vector<16x4x16xbf16>, vector<4x16x16xf32> -> vector<4x16x16xf32>
      "tpu.trace_stop"() : () -> ()
      %c16_i32_28 = arith.constant 16 : i32
      %64 = arith.muli %arg1, %c16_i32_28 : i32
      %65 = tpu.iota {dimensions = array<i32: 0>} : vector<16x16xi32>
      %66 = vector.broadcast %64 : i32 to vector<16x16xi32>
      %67 = arith.addi %66, %65 : vector<16x16xi32>
      %c16_i32_29 = arith.constant 16 : i32
      %68 = arith.muli %arg2, %c16_i32_29 : i32
      %69 = tpu.iota {dimensions = array<i32: 1>} : vector<16x16xi32>
      %70 = vector.broadcast %68 : i32 to vector<16x16xi32>
      %71 = arith.addi %70, %69 : vector<16x16xi32>
      %72 = arith.cmpi sgt, %71, %67 : vector<16x16xi32>
      %73 = vector.shape_cast %72 : vector<16x16xi1> to vector<1x16x16xi1>
      %cst_30 = arith.constant -1.000000e+30 : f32
      %74 = vector.shape_cast %73 : vector<1x16x16xi1> to vector<1x16x16xi1>
      %75 = vector.broadcast %74 : vector<1x16x16xi1> to vector<4x16x16xi1>
      %76 = vector.broadcast %cst_30 : f32 to vector<4x16x16xf32>
      %77 = arith.select %75, %76, %63 : vector<4x16x16xi1>, vector<4x16x16xf32>
      %c0_31 = arith.constant 0 : index
      %c0_32 = arith.constant 0 : index
      %c0_33 = arith.constant 0 : index
      %78 = vector.load %arg23[%c0_31, %c0_32, %c0_33] : memref<4x16x1xf32, #tpu.memory_space<vmem>>, vector<4x16x1xf32>
      %cst_34 = arith.constant dense<0xFF800000> : vector<4x16xf32>
      %79 = vector.multi_reduction <maximumf>, %77, %cst_34 [2] : vector<4x16x16xf32> to vector<4x16xf32>
      %80 = vector.shape_cast %79 : vector<4x16xf32> to vector<4x16x1xf32>
      %81 = arith.maximumf %78, %80 : vector<4x16x1xf32>
      %82 = arith.subf %78, %81 : vector<4x16x1xf32>
      %83 = math.exp %82 : vector<4x16x1xf32>
      %84 = vector.broadcast %81 : vector<4x16x1xf32> to vector<4x16x16xf32>
      %85 = arith.subf %77, %84 : vector<4x16x16xf32>
      %86 = math.exp %85 : vector<4x16x16xf32>
      %c0_35 = arith.constant 0 : index
      %c0_36 = arith.constant 0 : index
      %c0_37 = arith.constant 0 : index
      %87 = vector.load %arg24[%c0_35, %c0_36, %c0_37] : memref<4x16x1xf32, #tpu.memory_space<vmem>>, vector<4x16x1xf32>
      %88 = arith.mulf %83, %87 : vector<4x16x1xf32>
      %cst_38 = arith.constant dense<0.000000e+00> : vector<4x16xf32>
      %89 = vector.multi_reduction <add>, %86, %cst_38 [2] : vector<4x16x16xf32> to vector<4x16xf32>
      %90 = vector.shape_cast %89 : vector<4x16xf32> to vector<4x16x1xf32>
      %91 = arith.addf %88, %90 : vector<4x16x1xf32>
      %c0_39 = arith.constant 0 : index
      %c0_40 = arith.constant 0 : index
      %c0_41 = arith.constant 0 : index
      %92 = vector.load %arg24[%c0_39, %c0_40, %c0_41] : memref<4x16x1xf32, #tpu.memory_space<vmem>>, vector<4x16x1xf32>
      tpu.vector_store %arg24[%c0_39, %c0_40, %c0_41], %91 {strides = array<i32>} : memref<4x16x1xf32, #tpu.memory_space<vmem>>, vector<4x16x1xf32>,
      %93 = arith.truncf %86 : vector<4x16x16xf32> to vector<4x16x16xbf16>
      "tpu.trace_start"() <{level = 10 : i32, message = "hqk,khd->hqd"}> : () -> ()
      %cst_42 = arith.constant dense<0.000000e+00> : vector<4x16x16xf32>
      %94 = tpu.matmul %93, %60, %cst_42 {dimension_numbers = #tpu.dot_dimension_numbers<[2], [0], [1], [2], [0, 0, 0, 1, 1, 2], [0], [1]>} : vector<4x16x16xbf16>, vector<16x4x16xbf16>, vector<4x16x16xf32> -> vector<4x16x16xf32>
      "tpu.trace_stop"() : () -> ()
      %c0_43 = arith.constant 0 : index
      %c0_44 = arith.constant 0 : index
      %c0_45 = arith.constant 0 : index
      %95 = vector.load %arg25[%c0_43, %c0_44, %c0_45] : memref<4x16x16xf32, #tpu.memory_space<vmem>>, vector<4x16x16xf32>
      %96 = vector.broadcast %83 : vector<4x16x1xf32> to vector<4x16x16xf32>
      %97 = arith.mulf %96, %95 : vector<4x16x16xf32>
      %98 = arith.addf %97, %94 : vector<4x16x16xf32>
      %c0_46 = arith.constant 0 : index
      %c0_47 = arith.constant 0 : index
      %c0_48 = arith.constant 0 : index
      %99 = vector.load %arg25[%c0_46, %c0_47, %c0_48] : memref<4x16x16xf32, #tpu.memory_space<vmem>>, vector<4x16x16xf32>
      tpu.vector_store %arg25[%c0_46, %c0_47, %c0_48], %98 {strides = array<i32>} : memref<4x16x16xf32, #tpu.memory_space<vmem>>, vector<4x16x16xf32>,
      %c0_49 = arith.constant 0 : index
      %c0_50 = arith.constant 0 : index
      %c0_51 = arith.constant 0 : index
      %100 = vector.load %arg23[%c0_49, %c0_50, %c0_51] : memref<4x16x1xf32, #tpu.memory_space<vmem>>, vector<4x16x1xf32>
      tpu.vector_store %arg23[%c0_49, %c0_50, %c0_51], %81 {strides = array<i32>} : memref<4x16x1xf32, #tpu.memory_space<vmem>>, vector<4x16x1xf32>,
    } else {
    }
    %c1_i32_3 = arith.constant 1 : i32
    %9 = arith.cmpi eq, %arg2, %c1_i32_3 : i32
    %10 = arith.extui %9 : i1 to i32
    %c0_i32_4 = arith.constant 0 : i32
    %11 = arith.cmpi ne, %10, %c0_i32_4 : i32
    scf.if %11 {
      %c0 = arith.constant 0 : index
      %c0_5 = arith.constant 0 : index
      %c0_6 = arith.constant 0 : index
      %12 = vector.load %arg25[%c0, %c0_5, %c0_6] : memref<4x16x16xf32, #tpu.memory_space<vmem>>, vector<4x16x16xf32>
      %c0_7 = arith.constant 0 : index
      %c0_8 = arith.constant 0 : index
      %c0_9 = arith.constant 0 : index
      %13 = vector.load %arg24[%c0_7, %c0_8, %c0_9] : memref<4x16x1xf32, #tpu.memory_space<vmem>>, vector<4x16x1xf32>
      %14 = tpu.reciprocal %13 {approx = true} : vector<4x16x1xf32> -> vector<4x16x1xf32>
      %15 = vector.broadcast %14 : vector<4x16x1xf32> to vector<4x16x16xf32>
      %16 = arith.mulf %12, %15 : vector<4x16x16xf32>
      %17 = vector.extract_strided_slice %16 {offsets = [0, 0, 0], sizes = [1, 16, 16], strides = [1, 1, 1]} : vector<4x16x16xf32> to vector<1x16x16xf32>
      %18 = vector.shape_cast %17 : vector<1x16x16xf32> to vector<16x16xf32>
      %19 = vector.extract_strided_slice %16 {offsets = [1, 0, 0], sizes = [1, 16, 16], strides = [1, 1, 1]} : vector<4x16x16xf32> to vector<1x16x16xf32>
      %20 = vector.shape_cast %19 : vector<1x16x16xf32> to vector<16x16xf32>
      %21 = vector.extract_strided_slice %16 {offsets = [2, 0, 0], sizes = [1, 16, 16], strides = [1, 1, 1]} : vector<4x16x16xf32> to vector<1x16x16xf32>
      %22 = vector.shape_cast %21 : vector<1x16x16xf32> to vector<16x16xf32>
      %23 = vector.extract_strided_slice %16 {offsets = [3, 0, 0], sizes = [1, 16, 16], strides = [1, 1, 1]} : vector<4x16x16xf32> to vector<1x16x16xf32>
      %24 = vector.shape_cast %23 : vector<1x16x16xf32> to vector<16x16xf32>
      %25 = tpu.concatenate %18, %20, %22, %24 in 1 : vector<16x16xf32>, vector<16x16xf32>, vector<16x16xf32>, vector<16x16xf32> -> vector<16x64xf32>
      %26 = arith.truncf %25 : vector<16x64xf32> to vector<16x64xbf16>
      %c0_10 = arith.constant 0 : index
      %c0_11 = arith.constant 0 : index
      %27 = vector.load %arg13[%c0_10, %c0_11] : memref<64x64xbf16, #tpu.memory_space<vmem>>, vector<64x64xbf16>
      %cst = arith.constant dense<0.000000e+00> : vector<16x64xf32>
      %28 = tpu.matmul %26, %27, %cst {dimension_numbers = #tpu.dot_dimension_numbers<[1], [0], [0], [1], [0, 0, 1, 1], [], []>} : vector<16x64xbf16>, vector<64x64xbf16>, vector<16x64xf32> -> vector<16x64xf32>
      %c0_12 = arith.constant 0 : index
      %c0_13 = arith.constant 0 : index
      %29 = vector.load %arg14[%c0_12, %c0_13] : memref<1x64xf32, #tpu.memory_space<vmem>>, vector<1x64xf32>
      %30 = vector.shape_cast %29 : vector<1x64xf32> to vector<64xf32>
      %31 = vector.shape_cast %30 : vector<64xf32> to vector<1x64xf32>
      %32 = vector.broadcast %31 : vector<1x64xf32> to vector<16x64xf32>
      %33 = arith.addf %28, %32 : vector<16x64xf32>
      %c0_14 = arith.constant 0 : index
      %c0_15 = arith.constant 0 : index
      %c0_16 = arith.constant 0 : index
      %34 = vector.load %arg3[%c0_14, %c0_15, %c0_16] : memref<1x16x64xf32, #tpu.memory_space<vmem>>, vector<1x16x64xf32>
      %35 = vector.shape_cast %34 : vector<1x16x64xf32> to vector<16x64xf32>
      %36 = arith.addf %35, %33 : vector<16x64xf32>
      %c0_17 = arith.constant 0 : index
      %c0_18 = arith.constant 0 : index
      %37 = vector.load %arg15[%c0_17, %c0_18] : memref<1x64xf32, #tpu.memory_space<vmem>>, vector<1x64xf32>
      %38 = vector.shape_cast %37 : vector<1x64xf32> to vector<64xf32>
      %c0_19 = arith.constant 0 : index
      %c0_20 = arith.constant 0 : index
      %39 = vector.load %arg16[%c0_19, %c0_20] : memref<1x64xf32, #tpu.memory_space<vmem>>, vector<1x64xf32>
      %40 = vector.shape_cast %39 : vector<1x64xf32> to vector<64xf32>
      %cst_21 = arith.constant dense<0.000000e+00> : vector<16xf32>
      %41 = vector.multi_reduction <add>, %36, %cst_21 [1] : vector<16x64xf32> to vector<16xf32>
      %42 = vector.shape_cast %41 : vector<16xf32> to vector<16x1xf32>
      %cst_22 = arith.constant 6.400000e+01 : f32
      %43 = vector.broadcast %cst_22 : f32 to vector<16x1xf32>
      %44 = arith.divf %42, %43 : vector<16x1xf32>
      %45 = vector.broadcast %44 : vector<16x1xf32> to vector<16x64xf32>
      %46 = arith.subf %36, %45 : vector<16x64xf32>
      %47 = arith.mulf %46, %46 : vector<16x64xf32>
      %cst_23 = arith.constant dense<0.000000e+00> : vector<16xf32>
      %48 = vector.multi_reduction <add>, %47, %cst_23 [1] : vector<16x64xf32> to vector<16xf32>
      %49 = vector.shape_cast %48 : vector<16xf32> to vector<16x1xf32>
      %cst_24 = arith.constant 6.400000e+01 : f32
      %50 = vector.broadcast %cst_24 : f32 to vector<16x1xf32>
      %51 = arith.divf %49, %50 : vector<16x1xf32>
      %52 = vector.broadcast %44 : vector<16x1xf32> to vector<16x64xf32>
      %53 = arith.subf %36, %52 : vector<16x64xf32>
      %cst_25 = arith.constant 9.99999974E-6 : f32
      %54 = vector.broadcast %cst_25 : f32 to vector<16x1xf32>
      %55 = arith.addf %51, %54 : vector<16x1xf32>
      %56 = math.rsqrt %55 : vector<16x1xf32>
      %57 = vector.broadcast %56 : vector<16x1xf32> to vector<16x64xf32>
      %58 = arith.mulf %53, %57 : vector<16x64xf32>
      %59 = vector.shape_cast %38 : vector<64xf32> to vector<1x64xf32>
      %60 = vector.broadcast %59 : vector<1x64xf32> to vector<16x64xf32>
      %61 = arith.mulf %58, %60 : vector<16x64xf32>
      %62 = vector.shape_cast %40 : vector<64xf32> to vector<1x64xf32>
      %63 = vector.broadcast %62 : vector<1x64xf32> to vector<16x64xf32>
      %64 = arith.addf %61, %63 : vector<16x64xf32>
      %65 = arith.truncf %64 : vector<16x64xf32> to vector<16x64xbf16>
      %c0_26 = arith.constant 0 : index
      %c0_27 = arith.constant 0 : index
      %66 = vector.load %arg17[%c0_26, %c0_27] : memref<64x256xbf16, #tpu.memory_space<vmem>>, vector<64x256xbf16>
      %cst_28 = arith.constant dense<0.000000e+00> : vector<16x256xf32>
      %67 = tpu.matmul %65, %66, %cst_28 {dimension_numbers = #tpu.dot_dimension_numbers<[1], [0], [0], [1], [0, 0, 1, 1], [], []>} : vector<16x64xbf16>, vector<64x256xbf16>, vector<16x256xf32> -> vector<16x256xf32>
      %c0_29 = arith.constant 0 : index
      %c0_30 = arith.constant 0 : index
      %68 = vector.load %arg18[%c0_29, %c0_30] : memref<1x256xf32, #tpu.memory_space<vmem>>, vector<1x256xf32>
      %69 = vector.shape_cast %68 : vector<1x256xf32> to vector<256xf32>
      %70 = vector.shape_cast %69 : vector<256xf32> to vector<1x256xf32>
      %71 = vector.broadcast %70 : vector<1x256xf32> to vector<16x256xf32>
      %72 = arith.addf %67, %71 : vector<16x256xf32>
      %cst_31 = arith.constant 5.000000e-01 : f32
      %73 = vector.broadcast %cst_31 : f32 to vector<16x256xf32>
      %74 = arith.mulf %73, %72 : vector<16x256xf32>
      %cst_32 = arith.constant 0.707106769 : f32
      %75 = vector.broadcast %cst_32 : f32 to vector<16x256xf32>
      %76 = arith.mulf %72, %75 : vector<16x256xf32>
      %77 = math.erf %76 : vector<16x256xf32>
      %cst_33 = arith.constant 1.000000e+00 : f32
      %78 = vector.broadcast %cst_33 : f32 to vector<16x256xf32>
      %79 = arith.addf %78, %77 : vector<16x256xf32>
      %80 = arith.mulf %74, %79 : vector<16x256xf32>
      %81 = arith.truncf %80 : vector<16x256xf32> to vector<16x256xbf16>
      %c0_34 = arith.constant 0 : index
      %c0_35 = arith.constant 0 : index
      %82 = vector.load %arg19[%c0_34, %c0_35] : memref<256x64xbf16, #tpu.memory_space<vmem>>, vector<256x64xbf16>
      %cst_36 = arith.constant dense<0.000000e+00> : vector<16x64xf32>
      %83 = tpu.matmul %81, %82, %cst_36 {dimension_numbers = #tpu.dot_dimension_numbers<[1], [0], [0], [1], [0, 0, 1, 1], [], []>} : vector<16x256xbf16>, vector<256x64xbf16>, vector<16x64xf32> -> vector<16x64xf32>
      %c0_37 = arith.constant 0 : index
      %c0_38 = arith.constant 0 : index
      %84 = vector.load %arg20[%c0_37, %c0_38] : memref<1x64xf32, #tpu.memory_space<vmem>>, vector<1x64xf32>
      %85 = vector.shape_cast %84 : vector<1x64xf32> to vector<64xf32>
      %86 = vector.shape_cast %85 : vector<64xf32> to vector<1x64xf32>
      %87 = vector.broadcast %86 : vector<1x64xf32> to vector<16x64xf32>
      %88 = arith.addf %83, %87 : vector<16x64xf32>
      %89 = arith.addf %36, %88 : vector<16x64xf32>
      %c0_39 = arith.constant 0 : index
      %c0_40 = arith.constant 0 : index
      %c0_41 = arith.constant 0 : index
      %90 = vector.load %arg21[%c0_39, %c0_40, %c0_41] : memref<1x16x64xf32, #tpu.memory_space<vmem>>, vector<1x16x64xf32>
      %91 = vector.shape_cast %90 : vector<1x16x64xf32> to vector<16x64xf32>
      %92 = vector.shape_cast %89 : vector<16x64xf32> to vector<1x16x64xf32>
      tpu.vector_store %arg21[%c0_39, %c0_40, %c0_41], %92 {strides = array<i32>} : memref<1x16x64xf32, #tpu.memory_space<vmem>>, vector<1x16x64xf32>,
    } else {
    }
    return
  }
  func.func @transform_0(%arg0: i32, %arg1: i32, %arg2: i32) -> (i32, i32, i32) {
    %c0_i32 = arith.constant 0 : i32
    %c0_i32_0 = arith.constant 0 : i32
    return %arg0, %arg1, %c0_i32 : i32, i32, i32
  }
  func.func @transform_1(%arg0: i32, %arg1: i32, %arg2: i32) -> (i32, i32, i32) {
    %c0_i32 = arith.constant 0 : i32
    %c0_i32_0 = arith.constant 0 : i32
    return %arg0, %arg2, %c0_i32 : i32, i32, i32
  }
  func.func @transform_2(%arg0: i32, %arg1: i32, %arg2: i32) -> (i32, i32) {
    %c0_i32 = arith.constant 0 : i32
    %c0_i32_0 = arith.constant 0 : i32
    %c0_i32_1 = arith.constant 0 : i32
    return %c0_i32, %c0_i32_0 : i32, i32
  }
  func.func @transform_3(%arg0: i32, %arg1: i32, %arg2: i32) -> (i32, i32) {
    %c0_i32 = arith.constant 0 : i32
    %c0_i32_0 = arith.constant 0 : i32
    %c0_i32_1 = arith.constant 0 : i32
    return %c0_i32, %c0_i32_0 : i32, i32
  }
  func.func @transform_4(%arg0: i32, %arg1: i32, %arg2: i32) -> (i32, i32) {
    %c0_i32 = arith.constant 0 : i32
    %c0_i32_0 = arith.constant 0 : i32
    %c0_i32_1 = arith.constant 0 : i32
    return %c0_i32, %c0_i32_0 : i32, i32
  }
  func.func @transform_5(%arg0: i32, %arg1: i32, %arg2: i32) -> (i32, i32) {
    %c0_i32 = arith.constant 0 : i32
    %c0_i32_0 = arith.constant 0 : i32
    %c0_i32_1 = arith.constant 0 : i32
    return %c0_i32, %c0_i32_0 : i32, i32
  }
  func.func @transform_6(%arg0: i32, %arg1: i32, %arg2: i32) -> (i32, i32) {
    %c0_i32 = arith.constant 0 : i32
    %c0_i32_0 = arith.constant 0 : i32
    %c0_i32_1 = arith.constant 0 : i32
    return %c0_i32, %c0_i32_0 : i32, i32
  }
  func.func @transform_7(%arg0: i32, %arg1: i32, %arg2: i32) -> (i32, i32) {
    %c0_i32 = arith.constant 0 : i32
    %c0_i32_0 = arith.constant 0 : i32
    %c0_i32_1 = arith.constant 0 : i32
    return %c0_i32, %c0_i32_0 : i32, i32
  }
  func.func @transform_8(%arg0: i32, %arg1: i32, %arg2: i32) -> (i32, i32) {
    %c0_i32 = arith.constant 0 : i32
    %c0_i32_0 = arith.constant 0 : i32
    %c0_i32_1 = arith.constant 0 : i32
    return %c0_i32, %c0_i32_0 : i32, i32
  }
  func.func @transform_9(%arg0: i32, %arg1: i32, %arg2: i32) -> (i32, i32) {
    %c0_i32 = arith.constant 0 : i32
    %c0_i32_0 = arith.constant 0 : i32
    %c0_i32_1 = arith.constant 0 : i32
    return %c0_i32, %c0_i32_0 : i32, i32
  }
  func.func @transform_10(%arg0: i32, %arg1: i32, %arg2: i32) -> (i32, i32) {
    %c0_i32 = arith.constant 0 : i32
    %c0_i32_0 = arith.constant 0 : i32
    %c0_i32_1 = arith.constant 0 : i32
    return %c0_i32, %c0_i32_0 : i32, i32
  }
  func.func @transform_11(%arg0: i32, %arg1: i32, %arg2: i32) -> (i32, i32) {
    %c0_i32 = arith.constant 0 : i32
    %c0_i32_0 = arith.constant 0 : i32
    %c0_i32_1 = arith.constant 0 : i32
    return %c0_i32, %c0_i32_0 : i32, i32
  }
  func.func @transform_12(%arg0: i32, %arg1: i32, %arg2: i32) -> (i32, i32) {
    %c0_i32 = arith.constant 0 : i32
    %c0_i32_0 = arith.constant 0 : i32
    %c0_i32_1 = arith.constant 0 : i32
    return %c0_i32, %c0_i32_0 : i32, i32
  }
  func.func @transform_13(%arg0: i32, %arg1: i32, %arg2: i32) -> (i32, i32) {
    %c0_i32 = arith.constant 0 : i32
    %c0_i32_0 = arith.constant 0 : i32
    %c0_i32_1 = arith.constant 0 : i32
    return %c0_i32, %c0_i32_0 : i32, i32
  }
  func.func @transform_14(%arg0: i32, %arg1: i32, %arg2: i32) -> (i32, i32) {
    %c0_i32 = arith.constant 0 : i32
    %c0_i32_0 = arith.constant 0 : i32
    %c0_i32_1 = arith.constant 0 : i32
    return %c0_i32, %c0_i32_0 : i32, i32
  }
  func.func @transform_15(%arg0: i32, %arg1: i32, %arg2: i32) -> (i32, i32) {
    %c0_i32 = arith.constant 0 : i32
    %c0_i32_0 = arith.constant 0 : i32
    %c0_i32_1 = arith.constant 0 : i32
    return %c0_i32, %c0_i32_0 : i32, i32
  }
  func.func @transform_16(%arg0: i32, %arg1: i32, %arg2: i32) -> (i32, i32) {
    %c0_i32 = arith.constant 0 : i32
    %c0_i32_0 = arith.constant 0 : i32
    %c0_i32_1 = arith.constant 0 : i32
    return %c0_i32, %c0_i32_0 : i32, i32
  }
  func.func @transform_17(%arg0: i32, %arg1: i32, %arg2: i32) -> (i32, i32) {
    %c0_i32 = arith.constant 0 : i32
    %c0_i32_0 = arith.constant 0 : i32
    %c0_i32_1 = arith.constant 0 : i32
    return %c0_i32, %c0_i32_0 : i32, i32
  }
  func.func @transform_18(%arg0: i32, %arg1: i32, %arg2: i32) -> (i32, i32, i32) {
    %c0_i32 = arith.constant 0 : i32
    %c0_i32_0 = arith.constant 0 : i32
    return %arg0, %arg1, %c0_i32 : i32, i32, i32
  }
}

</mosaic_0001>

<llo_original>
// kernel: tpu_custom_call.1
$region0: #{tpu_custom_call.1}
  #allocation0 [shape = 'u32[]', space=smem, size = 0x4, offset = 0x4, fixed_abs, tag = 'smem constant byte address 0x4 - core index']
  #allocation1 [shape = 'u32[144,128]{1,0:T(1,128)}', space=vmem, size = 0x12000, scoped, tag = 'internal scratch']
  #allocation2 [shape = 'bf16[16,64]{1,0:T(16,128)(2,1)}', space=vmem, size = 0x1000, scoped, tag = 'scratch operand']
  #allocation3 [shape = 'f32[4,16,1]{2,1,0:T(8,128)}', space=vmem, size = 0x8000, scoped, tag = 'scratch operand']
  #allocation4 [shape = 'f32[4,16,1]{2,1,0:T(8,128)}', space=vmem, size = 0x8000, scoped, tag = 'scratch operand']
  #allocation5 [shape = 'f32[4,16,16]{2,1,0:T(8,128)}', space=vmem, size = 0x8000, scoped, tag = 'scratch operand']
  %s0 = inlined_call_operand.vmem [shape: f32[2,32,64], index: 0, kind: input, shape index: {}]
  %s1 = inlined_call_operand.vmem [shape: f32[2,32,64], index: 1, kind: input, shape index: {}]
  %s2 = inlined_call_operand.hbm [shape: f32[1,64], index: 2, kind: input, shape index: {}]
  %s3 = inlined_call_operand.hbm [shape: f32[1,64], index: 3, kind: input, shape index: {}]
  %s4 = inlined_call_operand.hbm [shape: bf16[64,64], index: 4, kind: input, shape index: {}]
  %s5 = inlined_call_operand.hbm [shape: f32[1,64], index: 5, kind: input, shape index: {}]
  %s6 = inlined_call_operand.hbm [shape: bf16[64,64], index: 6, kind: input, shape index: {}]
  %s7 = inlined_call_operand.hbm [shape: f32[1,64], index: 7, kind: input, shape index: {}]
  %s8 = inlined_call_operand.hbm [shape: bf16[64,64], index: 8, kind: input, shape index: {}]
  %s9 = inlined_call_operand.hbm [shape: f32[1,64], index: 9, kind: input, shape index: {}]
  %s10 = inlined_call_operand.vmem [shape: bf16[64,64], index: 10, kind: input, shape index: {}]
  %s11 = inlined_call_operand.vmem [shape: f32[1,64], index: 11, kind: input, shape index: {}]
  %s12 = inlined_call_operand.vmem [shape: f32[1,64], index: 12, kind: input, shape index: {}]
  %s13 = inlined_call_operand.vmem [shape: f32[1,64], index: 13, kind: input, shape index: {}]
  %s14 = inlined_call_operand.vmem [shape: bf16[64,256], index: 14, kind: input, shape index: {}]
  %s15 = inlined_call_operand.vmem [shape: f32[1,256], index: 15, kind: input, shape index: {}]
  %s16 = inlined_call_operand.vmem [shape: bf16[256,64], index: 16, kind: input, shape index: {}]
  %s17 = inlined_call_operand.vmem [shape: f32[1,64], index: 17, kind: input, shape index: {}]
  %s18 = inlined_call_operand.hbm [shape: f32[2,32,64], index: 18, kind: output, shape index: {}]
  %s19 = sld [smem:[#allocation0]]
  $region149: #{tpu_custom_call.1} parent=0
    _
  %s21 = ssub.s32 1, %s19
  %s22 = scalar_select 0, %s21, %s19
  $region1: #{tpu_custom_call.1} parent=0
    #allocation6 [shape = 'u8[512]{0}', space=vmem, size = 0x400, scoped, tag = 'input window, operand 2, single buffered']
    #allocation7 [shape = 's32[2]{0}', space=sflag, size = 0x8, scoped, tag = 'scoped memory for tpu_custom_call.1']
    #allocation8 [shape = 's32[2]{0}', space=sflag, size = 0x8, scoped, tag = 'scoped memory for tpu_custom_call.1']
    #allocation9 [shape = 'u8[512]{0}', space=vmem, size = 0x400, scoped, tag = 'input window, operand 3, single buffered']
    #allocation10 [shape = 's32[1]{0}', space=sflag, size = 0x4, scoped, tag = 'scoped memory for tpu_custom_call.1']
    #allocation11 [shape = 'u8[16384]{0}', space=vmem, size = 0x4000, scoped, tag = 'input window, operand 4, single buffered']
    #allocation12 [shape = 'u8[512]{0}', space=vmem, size = 0x400, scoped, tag = 'input window, operand 5, single buffered']
    #allocation13 [shape = 's32[1]{0}', space=sflag, size = 0x4, scoped, tag = 'scoped memory for tpu_custom_call.1']
    #allocation14 [shape = 'u8[16384]{0}', space=vmem, size = 0x4000, scoped, tag = 'input window, operand 6, single buffered']
    #allocation15 [shape = 'u8[512]{0}', space=vmem, size = 0x400, scoped, tag = 'input window, operand 7, single buffered']
    #allocation16 [shape = 's32[1]{0}', space=sflag, size = 0x4, scoped, tag = 'scoped memory for tpu_custom_call.1']
    #allocation17 [shape = 'u8[16384]{0}', space=vmem, size = 0x4000, scoped, tag = 'input window, operand 8, single buffered']
    #allocation18 [shape = 'u8[512]{0}', space=vmem, size = 0x400, scoped, tag = 'input window, operand 9, single buffered']
    #allocation19 [shape = 's32[1]{0}', space=sflag, size = 0x4, scoped, tag = 'scoped memory for tpu_custom_call.1']
    #allocation20 [shape = 'u8[16384]{0}', space=vmem, size = 0x4000, scoped, tag = 'output window, operand 0']
    %23 = vsyncpa [#allocation7], 0
    %24 = vsyncpa [#allocation10], 0
    %25 = vsyncpa [#allocation13], 0
    %26 = vsyncpa [#allocation16], 0
    %27 = vsyncpa [#allocation19], 0
    %28 = vsyncpa [#allocation8], 0
    %s29 = scalar_lea.sflag [#allocation8], 1
    %30 = vsyncpa %s29, 0
    loop: start=0, step=1, limit=10
    $region2: #{tpu_custom_call.1} parent=1 // loop_pre_header
      _
    $region3: #{tpu_custom_call.1} parent=1 // loop_header
      %s32 = sphi 0, %s36
      %p33 = scmp.ge.s32.totalorder %s32, 10
      %s39 = sphi 0, %s58
      %s40 = sphi 0, %s54
      %s41 = sphi 0, %s50
      %s42 = sphi 0, %s39
      %s43 = sphi 0, %s40
      %s44 = sphi 0, %s41
      %s45 = sphi 0, %s42
      %s46 = sphi 0, %s43
      %s47 = sphi 0, %s44
      %s63 = sphi 0, %s65
      %s66 = sphi 0, %s63
      %s67 = sphi 0, %s66
      %s83 = sphi 0, %s67
      %s91 = sphi 0, %s93
      %s94 = sphi 0, %s91
      %s95 = sphi 0, %s94
      %s111 = sphi 0, %s95
      %s115 = sphi 0, %s115
      %s117 = sphi 0, %s115
      %s118 = sphi 0, %s117
      %s132 = sphi 0, %s118
      %s136 = sphi 0, %s136
      %s138 = sphi 0, %s136
      %s139 = sphi 0, %s138
      %s153 = sphi 0, %s139
      %s157 = sphi 0, %s157
      %s159 = sphi 0, %s157
      %s160 = sphi 0, %s159
      %s174 = sphi 0, %s160
      %s178 = sphi 0, %s178
      %s180 = sphi 0, %s178
      %s181 = sphi 0, %s180
      %s195 = sphi 0, %s181
      %s199 = sphi 0, %s199
      %s201 = sphi 0, %s199
      %s202 = sphi 0, %s201
      %s216 = sphi 0, %s202
      %s220 = sphi 0, %s220
      %s222 = sphi 0, %s220
      %s223 = sphi 0, %s222
      %s237 = sphi 0, %s223
      %s241 = sphi 0, %s241
      %s243 = sphi 0, %s241
      %s244 = sphi 0, %s243
      %s258 = sphi 0, %s244
      %s262 = sphi 0, %s262
      %s264 = sphi 0, %s262
      %s265 = sphi 0, %s264
      %s279 = sphi 0, %s265
      %s283 = sphi 0, %s283
      %s285 = sphi 0, %s283
      %s286 = sphi 0, %s285
      %s300 = sphi 0, %s286
      %s304 = sphi 0, %s304
      %s306 = sphi 0, %s304
      %s307 = sphi 0, %s306
      %s321 = sphi 0, %s307
      %s325 = sphi 0, %s325
      %s327 = sphi 0, %s325
      %s328 = sphi 0, %s327
      %s342 = sphi 0, %s328
      %s346 = sphi 0, %s346
      %s348 = sphi 0, %s346
      %s349 = sphi 0, %s348
      %s363 = sphi 0, %s349
      %s367 = sphi 0, %s367
      %s369 = sphi 0, %s367
      %s370 = sphi 0, %s369
      %s384 = sphi 0, %s370
      %s388 = sphi 0, %s388
      %s390 = sphi 0, %s388
      %s391 = sphi 0, %s390
      %s405 = sphi 0, %s391
      %s409 = sphi 0, %s409
      %s411 = sphi 0, %s409
      %s412 = sphi 0, %s411
      %s426 = sphi 0, %s412
      %s430 = sphi 0, %s430
      %s432 = sphi 0, %s430
      %s433 = sphi 0, %s432
      %s447 = sphi 0, %s433
      %s455 = sphi 0, %s457
      %s458 = sphi 0, %s455
      %s459 = sphi 0, %s458
      %s475 = sphi 0, %s459
    $region4: #{tpu_custom_call.1} parent=1 // loop_header_branch
      %35 = sbr.rel (%p33) target = $region8
    $region5: #{tpu_custom_call.1} parent=1 // loop_body
      %s37 = ssub.s32 %s32, 1
      %s38 = ssub.s32 %s32, 2
      %s48 = sadd.s32 1, %s41
      %p49 = scmp.ge.s32.totalorder %s48, 2
      %s50 = scalar_select %p49, 0, %s48
      %s51 = sadd.s32 1, %s40
      %s52 = scalar_select %p49, %s51, %s40
      %p53 = scmp.ge.s32.totalorder %s52, 2
      %s54 = scalar_select %p53, 0, %s52
      %s55 = sadd.s32 1, %s39
      %s56 = scalar_select %p53, %s55, %s39
      %p57 = scmp.ge.s32.totalorder %s56, 2
      %s58 = scalar_select %p57, 0, %s56
      %s59 = ssub.s32 %s39, %s58
      %s60 = ssub.s32 %s40, %s54
      %s61 = sor.u32 %s59, %s60
      %p62 = scmp.eq.s32.totalorder %s61, 0
      %s64 = sadd.s32 %s63, 1
      %s65 = scalar_select %p62, %s63, %s64
      %p68 = pneg %p62
      %p69 = scmp.eq.s32.totalorder %s32, 7
      %p70 = por %p68, %p69
      %p71 = scmp.ne.s32.totalorder %s63, %s66
      %p72 = scmp.eq.s32.totalorder %s32, 0
      %p73 = por %p71, %p72
      %p74 = scmp.ne.s32.totalorder %s63, %s66
      %p75 = scmp.eq.s32.totalorder %s37, 7
      %p76 = por %p74, %p75
      %p77 = scmp.ne.s32.totalorder %s66, %s67
      %p78 = scmp.eq.s32.totalorder %s37, 0
      %p79 = por %p77, %p78
      %p80 = scmp.ne.s32.totalorder %s66, %s67
      %p81 = scmp.eq.s32.totalorder %s38, 7
      %p82 = por %p80, %p81
      %p84 = scmp.ne.s32.totalorder %s67, %s83
      %p85 = scmp.eq.s32.totalorder %s38, 0
      %p86 = por %p84, %p85
      %s87 = ssub.s32 %s39, %s58
      %s88 = ssub.s32 %s41, %s50
      %s89 = sor.u32 %s87, %s88
      %p90 = scmp.eq.s32.totalorder %s89, 0
      %s92 = sadd.s32 %s91, 1
      %s93 = scalar_select %p90, %s91, %s92
      %p96 = pneg %p90
      %p97 = scmp.eq.s32.totalorder %s32, 7
      %p98 = por %p96, %p97
      %p99 = scmp.ne.s32.totalorder %s91, %s94
      %p100 = scmp.eq.s32.totalorder %s32, 0
      %p101 = por %p99, %p100
      %p102 = scmp.ne.s32.totalorder %s91, %s94
      %p103 = scmp.eq.s32.totalorder %s37, 7
      %p104 = por %p102, %p103
      %p105 = scmp.ne.s32.totalorder %s94, %s95
      %p106 = scmp.eq.s32.totalorder %s37, 0
      %p107 = por %p105, %p106
      %p108 = scmp.ne.s32.totalorder %s94, %s95
      %p109 = scmp.eq.s32.totalorder %s38, 7
      %p110 = por %p108, %p109
      %p112 = scmp.ne.s32.totalorder %s95, %s111
      %p113 = scmp.eq.s32.totalorder %s38, 0
      %p114 = por %p112, %p113
      %s116 = sadd.s32 %s115, 1
      %p119 = scmp.eq.s32.totalorder %s32, 7
      %p120 = scmp.ne.s32.totalorder %s115, %s117
      %p121 = scmp.eq.s32.totalorder %s32, 0
      %p122 = por %p120, %p121
      %p123 = scmp.ne.s32.totalorder %s115, %s117
      %p124 = scmp.eq.s32.totalorder %s37, 7
      %p125 = por %p123, %p124
      %p126 = scmp.ne.s32.totalorder %s117, %s118
      %p127 = scmp.eq.s32.totalorder %s37, 0
      %p128 = por %p126, %p127
      %p129 = scmp.ne.s32.totalorder %s117, %s118
      %p130 = scmp.eq.s32.totalorder %s38, 7
      %p131 = por %p129, %p130
      %p133 = scmp.ne.s32.totalorder %s118, %s132
      %p134 = scmp.eq.s32.totalorder %s38, 0
      %p135 = por %p133, %p134
      %s137 = sadd.s32 %s136, 1
      %p140 = scmp.eq.s32.totalorder %s32, 7
      %p141 = scmp.ne.s32.totalorder %s136, %s138
      %p142 = scmp.eq.s32.totalorder %s32, 0
      %p143 = por %p141, %p142
      %p144 = scmp.ne.s32.totalorder %s136, %s138
      %p145 = scmp.eq.s32.totalorder %s37, 7
      %p146 = por %p144, %p145
      %p147 = scmp.ne.s32.totalorder %s138, %s139
      %p148 = scmp.eq.s32.totalorder %s37, 0
      %p149 = por %p147, %p148
      %p150 = scmp.ne.s32.totalorder %s138, %s139
      %p151 = scmp.eq.s32.totalorder %s38, 7
      %p152 = por %p150, %p151
      %p154 = scmp.ne.s32.totalorder %s139, %s153
      %p155 = scmp.eq.s32.totalorder %s38, 0
      %p156 = por %p154, %p155
      %s158 = sadd.s32 %s157, 1
      %p161 = scmp.eq.s32.totalorder %s32, 7
      %p162 = scmp.ne.s32.totalorder %s157, %s159
      %p163 = scmp.eq.s32.totalorder %s32, 0
      %p164 = por %p162, %p163
      %p165 = scmp.ne.s32.totalorder %s157, %s159
      %p166 = scmp.eq.s32.totalorder %s37, 7
      %p167 = por %p165, %p166
      %p168 = scmp.ne.s32.totalorder %s159, %s160
      %p169 = scmp.eq.s32.totalorder %s37, 0
      %p170 = por %p168, %p169
      %p171 = scmp.ne.s32.totalorder %s159, %s160
      %p172 = scmp.eq.s32.totalorder %s38, 7
      %p173 = por %p171, %p172
      %p175 = scmp.ne.s32.totalorder %s160, %s174
      %p176 = scmp.eq.s32.totalorder %s38, 0
      %p177 = por %p175, %p176
      %s179 = sadd.s32 %s178, 1
      %p182 = scmp.eq.s32.totalorder %s32, 7
      %p183 = scmp.ne.s32.totalorder %s178, %s180
      %p184 = scmp.eq.s32.totalorder %s32, 0
      %p185 = por %p183, %p184
      %p186 = scmp.ne.s32.totalorder %s178, %s180
      %p187 = scmp.eq.s32.totalorder %s37, 7
      %p188 = por %p186, %p187
      %p189 = scmp.ne.s32.totalorder %s180, %s181
      %p190 = scmp.eq.s32.totalorder %s37, 0
      %p191 = por %p189, %p190
      %p192 = scmp.ne.s32.totalorder %s180, %s181
      %p193 = scmp.eq.s32.totalorder %s38, 7
      %p194 = por %p192, %p193
      %p196 = scmp.ne.s32.totalorder %s181, %s195
      %p197 = scmp.eq.s32.totalorder %s38, 0
      %p198 = por %p196, %p197
      %s200 = sadd.s32 %s199, 1
      %p203 = scmp.eq.s32.totalorder %s32, 7
      %p204 = scmp.ne.s32.totalorder %s199, %s201
      %p205 = scmp.eq.s32.totalorder %s32, 0
      %p206 = por %p204, %p205
      %p207 = scmp.ne.s32.totalorder %s199, %s201
      %p208 = scmp.eq.s32.totalorder %s37, 7
      %p209 = por %p207, %p208
      %p210 = scmp.ne.s32.totalorder %s201, %s202
      %p211 = scmp.eq.s32.totalorder %s37, 0
      %p212 = por %p210, %p211
      %p213 = scmp.ne.s32.totalorder %s201, %s202
      %p214 = scmp.eq.s32.totalorder %s38, 7
      %p215 = por %p213, %p214
      %p217 = scmp.ne.s32.totalorder %s202, %s216
      %p218 = scmp.eq.s32.totalorder %s38, 0
      %p219 = por %p217, %p218
      %s221 = sadd.s32 %s220, 1
      %p224 = scmp.eq.s32.totalorder %s32, 7
      %p225 = scmp.ne.s32.totalorder %s220, %s222
      %p226 = scmp.eq.s32.totalorder %s32, 0
      %p227 = por %p225, %p226
      %p228 = scmp.ne.s32.totalorder %s220, %s222
      %p229 = scmp.eq.s32.totalorder %s37, 7
      %p230 = por %p228, %p229
      %p231 = scmp.ne.s32.totalorder %s222, %s223
      %p232 = scmp.eq.s32.totalorder %s37, 0
      %p233 = por %p231, %p232
      %p234 = scmp.ne.s32.totalorder %s222, %s223
      %p235 = scmp.eq.s32.totalorder %s38, 7
      %p236 = por %p234, %p235
      %p238 = scmp.ne.s32.totalorder %s223, %s237
      %p239 = scmp.eq.s32.totalorder %s38, 0
      %p240 = por %p238, %p239
      %s242 = sadd.s32 %s241, 1
      %p245 = scmp.eq.s32.totalorder %s32, 7
      %p246 = scmp.ne.s32.totalorder %s241, %s243
      %p247 = scmp.eq.s32.totalorder %s32, 0
      %p248 = por %p246, %p247
      %p249 = scmp.ne.s32.totalorder %s241, %s243
      %p250 = scmp.eq.s32.totalorder %s37, 7
      %p251 = por %p249, %p250
      %p252 = scmp.ne.s32.totalorder %s243, %s244
      %p253 = scmp.eq.s32.totalorder %s37, 0
      %p254 = por %p252, %p253
      %p255 = scmp.ne.s32.totalorder %s243, %s244
      %p256 = scmp.eq.s32.totalorder %s38, 7
      %p257 = por %p255, %p256
      %p259 = scmp.ne.s32.totalorder %s244, %s258
      %p260 = scmp.eq.s32.totalorder %s38, 0
      %p261 = por %p259, %p260
      %s263 = sadd.s32 %s262, 1
      %p266 = scmp.eq.s32.totalorder %s32, 7
      %p267 = scmp.ne.s32.totalorder %s262, %s264
      %p268 = scmp.eq.s32.totalorder %s32, 0
      %p269 = por %p267, %p268
      %p270 = scmp.ne.s32.totalorder %s262, %s264
      %p271 = scmp.eq.s32.totalorder %s37, 7
      %p272 = por %p270, %p271
      %p273 = scmp.ne.s32.totalorder %s264, %s265
      %p274 = scmp.eq.s32.totalorder %s37, 0
      %p275 = por %p273, %p274
      %p276 = scmp.ne.s32.totalorder %s264, %s265
      %p277 = scmp.eq.s32.totalorder %s38, 7
      %p278 = por %p276, %p277
      %p280 = scmp.ne.s32.totalorder %s265, %s279
      %p281 = scmp.eq.s32.totalorder %s38, 0
      %p282 = por %p280, %p281
      %s284 = sadd.s32 %s283, 1
      %p287 = scmp.eq.s32.totalorder %s32, 7
      %p288 = scmp.ne.s32.totalorder %s283, %s285
      %p289 = scmp.eq.s32.totalorder %s32, 0
      %p290 = por %p288, %p289
      %p291 = scmp.ne.s32.totalorder %s283, %s285
      %p292 = scmp.eq.s32.totalorder %s37, 7
      %p293 = por %p291, %p292
      %p294 = scmp.ne.s32.totalorder %s285, %s286
      %p295 = scmp.eq.s32.totalorder %s37, 0
      %p296 = por %p294, %p295
      %p297 = scmp.ne.s32.totalorder %s285, %s286
      %p298 = scmp.eq.s32.totalorder %s38, 7
      %p299 = por %p297, %p298
      %p301 = scmp.ne.s32.totalorder %s286, %s300
      %p302 = scmp.eq.s32.totalorder %s38, 0
      %p303 = por %p301, %p302
      %s305 = sadd.s32 %s304, 1
      %p308 = scmp.eq.s32.totalorder %s32, 7
      %p309 = scmp.ne.s32.totalorder %s304, %s306
      %p310 = scmp.eq.s32.totalorder %s32, 0
      %p311 = por %p309, %p310
      %p312 = scmp.ne.s32.totalorder %s304, %s306
      %p313 = scmp.eq.s32.totalorder %s37, 7
      %p314 = por %p312, %p313
      %p315 = scmp.ne.s32.totalorder %s306, %s307
      %p316 = scmp.eq.s32.totalorder %s37, 0
      %p317 = por %p315, %p316
      %p318 = scmp.ne.s32.totalorder %s306, %s307
      %p319 = scmp.eq.s32.totalorder %s38, 7
      %p320 = por %p318, %p319
      %p322 = scmp.ne.s32.totalorder %s307, %s321
      %p323 = scmp.eq.s32.totalorder %s38, 0
      %p324 = por %p322, %p323
      %s326 = sadd.s32 %s325, 1
      %p329 = scmp.eq.s32.totalorder %s32, 7
      %p330 = scmp.ne.s32.totalorder %s325, %s327
      %p331 = scmp.eq.s32.totalorder %s32, 0
      %p332 = por %p330, %p331
      %p333 = scmp.ne.s32.totalorder %s325, %s327
      %p334 = scmp.eq.s32.totalorder %s37, 7
      %p335 = por %p333, %p334
      %p336 = scmp.ne.s32.totalorder %s327, %s328
      %p337 = scmp.eq.s32.totalorder %s37, 0
      %p338 = por %p336, %p337
      %p339 = scmp.ne.s32.totalorder %s327, %s328
      %p340 = scmp.eq.s32.totalorder %s38, 7
      %p341 = por %p339, %p340
      %p343 = scmp.ne.s32.totalorder %s328, %s342
      %p344 = scmp.eq.s32.totalorder %s38, 0
      %p345 = por %p343, %p344
      %s347 = sadd.s32 %s346, 1
      %p350 = scmp.eq.s32.totalorder %s32, 7
      %p351 = scmp.ne.s32.totalorder %s346, %s348
      %p352 = scmp.eq.s32.totalorder %s32, 0
      %p353 = por %p351, %p352
      %p354 = scmp.ne.s32.totalorder %s346, %s348
      %p355 = scmp.eq.s32.totalorder %s37, 7
      %p356 = por %p354, %p355
      %p357 = scmp.ne.s32.totalorder %s348, %s349
      %p358 = scmp.eq.s32.totalorder %s37, 0
      %p359 = por %p357, %p358
      %p360 = scmp.ne.s32.totalorder %s348, %s349
      %p361 = scmp.eq.s32.totalorder %s38, 7
      %p362 = por %p360, %p361
      %p364 = scmp.ne.s32.totalorder %s349, %s363
      %p365 = scmp.eq.s32.totalorder %s38, 0
      %p366 = por %p364, %p365
      %s368 = sadd.s32 %s367, 1
      %p371 = scmp.eq.s32.totalorder %s32, 7
      %p372 = scmp.ne.s32.totalorder %s367, %s369
      %p373 = scmp.eq.s32.totalorder %s32, 0
      %p374 = por %p372, %p373
      %p375 = scmp.ne.s32.totalorder %s367, %s369
      %p376 = scmp.eq.s32.totalorder %s37, 7
      %p377 = por %p375, %p376
      %p378 = scmp.ne.s32.totalorder %s369, %s370
      %p379 = scmp.eq.s32.totalorder %s37, 0
      %p380 = por %p378, %p379
      %p381 = scmp.ne.s32.totalorder %s369, %s370
      %p382 = scmp.eq.s32.totalorder %s38, 7
      %p383 = por %p381, %p382
      %p385 = scmp.ne.s32.totalorder %s370, %s384
      %p386 = scmp.eq.s32.totalorder %s38, 0
      %p387 = por %p385, %p386
      %s389 = sadd.s32 %s388, 1
      %p392 = scmp.eq.s32.totalorder %s32, 7
      %p393 = scmp.ne.s32.totalorder %s388, %s390
      %p394 = scmp.eq.s32.totalorder %s32, 0
      %p395 = por %p393, %p394
      %p396 = scmp.ne.s32.totalorder %s388, %s390
      %p397 = scmp.eq.s32.totalorder %s37, 7
      %p398 = por %p396, %p397
      %p399 = scmp.ne.s32.totalorder %s390, %s391
      %p400 = scmp.eq.s32.totalorder %s37, 0
      %p401 = por %p399, %p400
      %p402 = scmp.ne.s32.totalorder %s390, %s391
      %p403 = scmp.eq.s32.totalorder %s38, 7
      %p404 = por %p402, %p403
      %p406 = scmp.ne.s32.totalorder %s391, %s405
      %p407 = scmp.eq.s32.totalorder %s38, 0
      %p408 = por %p406, %p407
      %s410 = sadd.s32 %s409, 1
      %p413 = scmp.eq.s32.totalorder %s32, 7
      %p414 = scmp.ne.s32.totalorder %s409, %s411
      %p415 = scmp.eq.s32.totalorder %s32, 0
      %p416 = por %p414, %p415
      %p417 = scmp.ne.s32.totalorder %s409, %s411
      %p418 = scmp.eq.s32.totalorder %s37, 7
      %p419 = por %p417, %p418
      %p420 = scmp.ne.s32.totalorder %s411, %s412
      %p421 = scmp.eq.s32.totalorder %s37, 0
      %p422 = por %p420, %p421
      %p423 = scmp.ne.s32.totalorder %s411, %s412
      %p424 = scmp.eq.s32.totalorder %s38, 7
      %p425 = por %p423, %p424
      %p427 = scmp.ne.s32.totalorder %s412, %s426
      %p428 = scmp.eq.s32.totalorder %s38, 0
      %p429 = por %p427, %p428
      %s431 = sadd.s32 %s430, 1
      %p434 = scmp.eq.s32.totalorder %s32, 7
      %p435 = scmp.ne.s32.totalorder %s430, %s432
      %p436 = scmp.eq.s32.totalorder %s32, 0
      %p437 = por %p435, %p436
      %p438 = scmp.ne.s32.totalorder %s430, %s432
      %p439 = scmp.eq.s32.totalorder %s37, 7
      %p440 = por %p438, %p439
      %p441 = scmp.ne.s32.totalorder %s432, %s433
      %p442 = scmp.eq.s32.totalorder %s37, 0
      %p443 = por %p441, %p442
      %p444 = scmp.ne.s32.totalorder %s432, %s433
      %p445 = scmp.eq.s32.totalorder %s38, 7
      %p446 = por %p444, %p445
      %p448 = scmp.ne.s32.totalorder %s433, %s447
      %p449 = scmp.eq.s32.totalorder %s38, 0
      %p450 = por %p448, %p449
      %s451 = ssub.s32 %s39, %s58
      %s452 = ssub.s32 %s40, %s54
      %s453 = sor.u32 %s451, %s452
      %p454 = scmp.eq.s32.totalorder %s453, 0
      %s456 = sadd.s32 %s455, 1
      %s457 = scalar_select %p454, %s455, %s456
      %p460 = pneg %p454
      %p461 = scmp.eq.s32.totalorder %s32, 7
      %p462 = por %p460, %p461
      %p463 = scmp.ne.s32.totalorder %s455, %s458
      %p464 = scmp.eq.s32.totalorder %s32, 0
      %p465 = por %p463, %p464
      %p466 = scmp.ne.s32.totalorder %s455, %s458
      %p467 = scmp.eq.s32.totalorder %s37, 7
      %p468 = por %p466, %p467
      %p469 = scmp.ne.s32.totalorder %s458, %s459
      %p470 = scmp.eq.s32.totalorder %s37, 0
      %p471 = por %p469, %p470
      %p472 = scmp.ne.s32.totalorder %s458, %s459
      %p473 = scmp.eq.s32.totalorder %s38, 7
      %p474 = por %p472, %p473
      %p476 = scmp.ne.s32.totalorder %s459, %s475
      %p477 = scmp.eq.s32.totalorder %s38, 0
      %p478 = por %p476, %p477
      %p479 = scmp.le.s32.totalorder 1, %s32
      %p480 = scmp.lt.s32.totalorder %s32, 9
      %p481 = pnand %p479, %p480
      %p482 = pneg %p481
      // Predicated region
      $region9: #{tpu_custom_call.1} parent=5 // pred_check
        _
      $region10: #{tpu_custom_call.1} parent=5 // pred_check_branch
        %484 = sbr.rel (%p481) target = $region12
      $region11: #{tpu_custom_call.1} parent=5 // pred_region
        %s485 = ssub.s32 %s32, 1
        // Predicated region
        $region13: #{tpu_custom_call.1} parent=11 // pred_check
          %p486 = pneg %p128
        $region14: #{tpu_custom_call.1} parent=11 // pred_check_branch
          %488 = sbr.rel (%p486) target = $region16
        $region15: #{tpu_custom_call.1} parent=11 // pred_region
          %s490 = ssub.s32 16, 16
          %491 = vsyncadd [#allocation7], %s490
          %s493 = sshll.u32 [#allocation6], 4
          %s494 = int_to_ptr.vmem [resolvable:$true] %s493
          %496 = dma.hbm_to_vmem [thread:$0]  %s2, 16, %s494, [#allocation7]
        $region16: #{tpu_custom_call.1} parent=11 // pred_fallthru
          _
        // Predicated region
        $region17: #{tpu_custom_call.1} parent=11 // pred_check
          %p497 = pneg %p149
        $region18: #{tpu_custom_call.1} parent=11 // pred_check_branch
          %499 = sbr.rel (%p497) target = $region20
        $region19: #{tpu_custom_call.1} parent=11 // pred_region
          %s501 = ssub.s32 16, 16
          %502 = vsyncadd [#allocation10], %s501
          %s504 = sshll.u32 [#allocation9], 4
          %s505 = int_to_ptr.vmem [resolvable:$true] %s504
          %507 = dma.hbm_to_vmem [thread:$0]  %s3, 16, %s505, [#allocation10]
        $region20: #{tpu_custom_call.1} parent=11 // pred_fallthru
          _
        // Predicated region
        $region21: #{tpu_custom_call.1} parent=11 // pred_check
          %p508 = pneg %p170
        $region22: #{tpu_custom_call.1} parent=11 // pred_check_branch
          %510 = sbr.rel (%p508) target = $region24
        $region23: #{tpu_custom_call.1} parent=11 // pred_region
          %s512 = ssub.s32 512, 512
          %513 = vsyncadd [#allocation10], %s512
          %s514 = sshll.u32 [#allocation11], 4
          %s515 = int_to_ptr.vmem [resolvable:$true] %s514
          %520 = dma.hbm_to_vmem [thread:$0]  %s4, 512, %s515, [#allocation10], 64, 64, 4
        $region24: #{tpu_custom_call.1} parent=11 // pred_fallthru
          _
        // Predicated region
        $region25: #{tpu_custom_call.1} parent=11 // pred_check
          %p521 = pneg %p191
        $region26: #{tpu_custom_call.1} parent=11 // pred_check_branch
          %523 = sbr.rel (%p521) target = $region28
        $region27: #{tpu_custom_call.1} parent=11 // pred_region
          %s525 = ssub.s32 16, 16
          %526 = vsyncadd [#allocation13], %s525
          %s528 = sshll.u32 [#allocation12], 4
          %s529 = int_to_ptr.vmem [resolvable:$true] %s528
          %531 = dma.hbm_to_vmem [thread:$0]  %s5, 16, %s529, [#allocation13]
        $region28: #{tpu_custom_call.1} parent=11 // pred_fallthru
          _
        // Predicated region
        $region29: #{tpu_custom_call.1} parent=11 // pred_check
          %p532 = pneg %p212
        $region30: #{tpu_custom_call.1} parent=11 // pred_check_branch
          %534 = sbr.rel (%p532) target = $region32
        $region31: #{tpu_custom_call.1} parent=11 // pred_region
          %s536 = ssub.s32 512, 512
          %537 = vsyncadd [#allocation13], %s536
          %s538 = sshll.u32 [#allocation14], 4
          %s539 = int_to_ptr.vmem [resolvable:$true] %s538
          %544 = dma.hbm_to_vmem [thread:$0]  %s6, 512, %s539, [#allocation13], 64, 64, 4
        $region32: #{tpu_custom_call.1} parent=11 // pred_fallthru
          _
        // Predicated region
        $region33: #{tpu_custom_call.1} parent=11 // pred_check
          %p545 = pneg %p233
        $region34: #{tpu_custom_call.1} parent=11 // pred_check_branch
          %547 = sbr.rel (%p545) target = $region36
        $region35: #{tpu_custom_call.1} parent=11 // pred_region
          %s549 = ssub.s32 16, 16
          %550 = vsyncadd [#allocation16], %s549
          %s552 = sshll.u32 [#allocation15], 4
          %s553 = int_to_ptr.vmem [resolvable:$true] %s552
          %555 = dma.hbm_to_vmem [thread:$0]  %s7, 16, %s553, [#allocation16]
        $region36: #{tpu_custom_call.1} parent=11 // pred_fallthru
          _
        // Predicated region
        $region37: #{tpu_custom_call.1} parent=11 // pred_check
          %p556 = pneg %p254
        $region38: #{tpu_custom_call.1} parent=11 // pred_check_branch
          %558 = sbr.rel (%p556) target = $region40
        $region39: #{tpu_custom_call.1} parent=11 // pred_region
          %s560 = ssub.s32 512, 512
          %561 = vsyncadd [#allocation16], %s560
          %s562 = sshll.u32 [#allocation17], 4
          %s563 = int_to_ptr.vmem [resolvable:$true] %s562
          %568 = dma.hbm_to_vmem [thread:$0]  %s8, 512, %s563, [#allocation16], 64, 64, 4
        $region40: #{tpu_custom_call.1} parent=11 // pred_fallthru
          _
        // Predicated region
        $region41: #{tpu_custom_call.1} parent=11 // pred_check
          %p569 = pneg %p275
        $region42: #{tpu_custom_call.1} parent=11 // pred_check_branch
          %571 = sbr.rel (%p569) target = $region44
        $region43: #{tpu_custom_call.1} parent=11 // pred_region
          %s573 = ssub.s32 16, 16
          %574 = vsyncadd [#allocation19], %s573
          %s576 = sshll.u32 [#allocation18], 4
          %s577 = int_to_ptr.vmem [resolvable:$true] %s576
          %579 = dma.hbm_to_vmem [thread:$0]  %s9, 16, %s577, [#allocation19]
        $region44: #{tpu_custom_call.1} parent=11 // pred_fallthru
          _
        // Predicated region
        $region45: #{tpu_custom_call.1} parent=11 // pred_check
          %p580 = pneg %p296
        $region46: #{tpu_custom_call.1} parent=11 // pred_check_branch
          %582 = sbr.rel (%p580) target = $region48
        $region47: #{tpu_custom_call.1} parent=11 // pred_region
          _
        $region48: #{tpu_custom_call.1} parent=11 // pred_fallthru
          _
        // Predicated region
        $region49: #{tpu_custom_call.1} parent=11 // pred_check
          %p583 = pneg %p317
        $region50: #{tpu_custom_call.1} parent=11 // pred_check_branch
          %585 = sbr.rel (%p583) target = $region52
        $region51: #{tpu_custom_call.1} parent=11 // pred_region
          _
        $region52: #{tpu_custom_call.1} parent=11 // pred_fallthru
          _
        // Predicated region
        $region53: #{tpu_custom_call.1} parent=11 // pred_check
          %p586 = pneg %p338
        $region54: #{tpu_custom_call.1} parent=11 // pred_check_branch
          %588 = sbr.rel (%p586) target = $region56
        $region55: #{tpu_custom_call.1} parent=11 // pred_region
          _
        $region56: #{tpu_custom_call.1} parent=11 // pred_fallthru
          _
        // Predicated region
        $region57: #{tpu_custom_call.1} parent=11 // pred_check
          %p589 = pneg %p359
        $region58: #{tpu_custom_call.1} parent=11 // pred_check_branch
          %591 = sbr.rel (%p589) target = $region60
        $region59: #{tpu_custom_call.1} parent=11 // pred_region
          _
        $region60: #{tpu_custom_call.1} parent=11 // pred_fallthru
          _
        // Predicated region
        $region61: #{tpu_custom_call.1} parent=11 // pred_check
          %p592 = pneg %p380
        $region62: #{tpu_custom_call.1} parent=11 // pred_check_branch
          %594 = sbr.rel (%p592) target = $region64
        $region63: #{tpu_custom_call.1} parent=11 // pred_region
          _
        $region64: #{tpu_custom_call.1} parent=11 // pred_fallthru
          _
        // Predicated region
        $region65: #{tpu_custom_call.1} parent=11 // pred_check
          %p595 = pneg %p401
        $region66: #{tpu_custom_call.1} parent=11 // pred_check_branch
          %597 = sbr.rel (%p595) target = $region68
        $region67: #{tpu_custom_call.1} parent=11 // pred_region
          _
        $region68: #{tpu_custom_call.1} parent=11 // pred_fallthru
          _
        // Predicated region
        $region69: #{tpu_custom_call.1} parent=11 // pred_check
          %p598 = pneg %p422
        $region70: #{tpu_custom_call.1} parent=11 // pred_check_branch
          %600 = sbr.rel (%p598) target = $region72
        $region71: #{tpu_custom_call.1} parent=11 // pred_region
          _
        $region72: #{tpu_custom_call.1} parent=11 // pred_fallthru
          _
        // Predicated region
        $region73: #{tpu_custom_call.1} parent=11 // pred_check
          %p601 = pneg %p443
        $region74: #{tpu_custom_call.1} parent=11 // pred_check_branch
          %603 = sbr.rel (%p601) target = $region76
        $region75: #{tpu_custom_call.1} parent=11 // pred_region
          _
        $region76: #{tpu_custom_call.1} parent=11 // pred_fallthru
          _
      $region12: #{tpu_custom_call.1} parent=5 // pred_fallthru
        _
      %p604 = scmp.lt.s32.totalorder %s32, 8
      // Predicated region
      $region77: #{tpu_custom_call.1} parent=5 // pred_check
        %p605 = pneg %p604
      $region78: #{tpu_custom_call.1} parent=5 // pred_check_branch
        %607 = sbr.rel (%p605) target = $region80
      $region79: #{tpu_custom_call.1} parent=5 // pred_region
        // Predicated region
        $region81: #{tpu_custom_call.1} parent=79 // pred_check
          %p608 = pneg %p73
        $region82: #{tpu_custom_call.1} parent=79 // pred_check_branch
          %610 = sbr.rel (%p608) target = $region84
        $region83: #{tpu_custom_call.1} parent=79 // pred_region
          %s611 = smul.u32 2, %s40
          %p612 = scmp.lt.s32.totalorder %s39, 1
          %s613 = scalar_select %p612, %s39, 1
          %p614 = scmp.lt.s32.totalorder %s611, 3
          %s615 = scalar_select %p614, %s611, 3
          %s616 = smul.addr %s613, 4
          %s617 = sadd.s32 %s615, %s616
          %s618 = smul.addr %s617, 8
          %s619 = scalar_lea.vmem %s0, %s618
          %s620 = smul.u32 2, %s40
        $region84: #{tpu_custom_call.1} parent=79 // pred_fallthru
          _
        // Predicated region
        $region85: #{tpu_custom_call.1} parent=79 // pred_check
          %p621 = pneg %p101
        $region86: #{tpu_custom_call.1} parent=79 // pred_check_branch
          %623 = sbr.rel (%p621) target = $region88
        $region87: #{tpu_custom_call.1} parent=79 // pred_region
          %s624 = smul.u32 2, %s41
          %p625 = scmp.lt.s32.totalorder %s39, 1
          %s626 = scalar_select %p625, %s39, 1
          %p627 = scmp.lt.s32.totalorder %s624, 3
          %s628 = scalar_select %p627, %s624, 3
          %s629 = smul.addr %s626, 4
          %s630 = sadd.s32 %s628, %s629
          %s631 = smul.addr %s630, 8
          %s632 = scalar_lea.vmem %s1, %s631
          %s633 = smul.u32 2, %s41
        $region88: #{tpu_custom_call.1} parent=79 // pred_fallthru
          _
      $region80: #{tpu_custom_call.1} parent=5 // pred_fallthru
        _
      %p634 = scmp.le.s32.totalorder 1, %s32
      %p635 = scmp.lt.s32.totalorder %s32, 9
      %p636 = pnand %p634, %p635
      %p637 = pneg %p636
      // Predicated region
      $region89: #{tpu_custom_call.1} parent=5 // pred_check
        _
      $region90: #{tpu_custom_call.1} parent=5 // pred_check_branch
        %639 = sbr.rel (%p636) target = $region92
      $region91: #{tpu_custom_call.1} parent=5 // pred_region
        %s640 = ssub.s32 %s32, 1
        // Predicated region
        $region93: #{tpu_custom_call.1} parent=91 // pred_check
          %p641 = pneg %p128
        $region94: #{tpu_custom_call.1} parent=91 // pred_check_branch
          %643 = sbr.rel (%p641) target = $region96
        $region95: #{tpu_custom_call.1} parent=91 // pred_region
          %644 = dma.done [#allocation7], 16
        $region96: #{tpu_custom_call.1} parent=91 // pred_fallthru
          _
        // Predicated region
        $region97: #{tpu_custom_call.1} parent=91 // pred_check
          %p645 = pneg %p149
        $region98: #{tpu_custom_call.1} parent=91 // pred_check_branch
          %647 = sbr.rel (%p645) target = $region100
        $region99: #{tpu_custom_call.1} parent=91 // pred_region
          %648 = dma.done [#allocation10], 16
        $region100: #{tpu_custom_call.1} parent=91 // pred_fallthru
          _
        // Predicated region
        $region101: #{tpu_custom_call.1} parent=91 // pred_check
          %p649 = pneg %p170
        $region102: #{tpu_custom_call.1} parent=91 // pred_check_branch
          %651 = sbr.rel (%p649) target = $region104
        $region103: #{tpu_custom_call.1} parent=91 // pred_region
          %652 = dma.done [#allocation10], 512
        $region104: #{tpu_custom_call.1} parent=91 // pred_fallthru
          _
        // Predicated region
        $region105: #{tpu_custom_call.1} parent=91 // pred_check
          %p653 = pneg %p191
        $region106: #{tpu_custom_call.1} parent=91 // pred_check_branch
          %655 = sbr.rel (%p653) target = $region108
        $region107: #{tpu_custom_call.1} parent=91 // pred_region
          %656 = dma.done [#allocation13], 16
        $region108: #{tpu_custom_call.1} parent=91 // pred_fallthru
          _
        // Predicated region
        $region109: #{tpu_custom_call.1} parent=91 // pred_check
          %p657 = pneg %p212
        $region110: #{tpu_custom_call.1} parent=91 // pred_check_branch
          %659 = sbr.rel (%p657) target = $region112
        $region111: #{tpu_custom_call.1} parent=91 // pred_region
          %660 = dma.done [#allocation13], 512
        $region112: #{tpu_custom_call.1} parent=91 // pred_fallthru
          _
        // Predicated region
        $region113: #{tpu_custom_call.1} parent=91 // pred_check
          %p661 = pneg %p233
        $region114: #{tpu_custom_call.1} parent=91 // pred_check_branch
          %663 = sbr.rel (%p661) target = $region116
        $region115: #{tpu_custom_call.1} parent=91 // pred_region
          %664 = dma.done [#allocation16], 16
        $region116: #{tpu_custom_call.1} parent=91 // pred_fallthru
          _
        // Predicated region
        $region117: #{tpu_custom_call.1} parent=91 // pred_check
          %p665 = pneg %p254
        $region118: #{tpu_custom_call.1} parent=91 // pred_check_branch
          %667 = sbr.rel (%p665) target = $region120
        $region119: #{tpu_custom_call.1} parent=91 // pred_region
          %668 = dma.done [#allocation16], 512
        $region120: #{tpu_custom_call.1} parent=91 // pred_fallthru
          _
        // Predicated region
        $region121: #{tpu_custom_call.1} parent=91 // pred_check
          %p669 = pneg %p275
        $region122: #{tpu_custom_call.1} parent=91 // pred_check_branch
          %671 = sbr.rel (%p669) target = $region124
        $region123: #{tpu_custom_call.1} parent=91 // pred_region
          %672 = dma.done [#allocation19], 16
        $region124: #{tpu_custom_call.1} parent=91 // pred_fallthru
          _
        %s673 = smul.u32 2, %s43
        %p674 = scmp.lt.s32.totalorder %s42, 1
        %s675 = scalar_select %p674, %s42, 1
        %p676 = scmp.lt.s32.totalorder %s673, 3
        %s677 = scalar_select %p676, %s673, 3
        %s678 = smul.addr %s675, 4
        %s679 = sadd.s32 %s677, %s678
        %s680 = smul.addr %s679, 8
        %s681 = scalar_lea.vmem %s0, %s680
        %p682 = pneg %p79
        %p683 = pneg %p76
        %s684 = smul.u32 2, %s44
        %p685 = scmp.lt.s32.totalorder %s42, 1
        %s686 = scalar_select %p685, %s42, 1
        %p687 = scmp.lt.s32.totalorder %s684, 3
        %s688 = scalar_select %p687, %s684, 3
        %s689 = smul.addr %s686, 4
        %s690 = sadd.s32 %s688, %s689
        %s691 = smul.addr %s690, 8
        %s692 = scalar_lea.vmem %s1, %s691
        %p693 = pneg %p107
        %p694 = pneg %p104
        %p695 = pneg %p128
        %p696 = pneg %p125
        %p697 = pneg %p149
        %p698 = pneg %p146
        %p699 = pneg %p170
        %p700 = pneg %p167
        %p701 = pneg %p191
        %p702 = pneg %p188
        %p703 = pneg %p212
        %p704 = pneg %p209
        %p705 = pneg %p233
        %p706 = pneg %p230
        %p707 = pneg %p254
        %p708 = pneg %p251
        %p709 = pneg %p275
        %p710 = pneg %p272
        %p711 = pneg %p296
        %p712 = pneg %p293
        %p713 = pneg %p317
        %p714 = pneg %p314
        %p715 = pneg %p338
        %p716 = pneg %p335
        %p717 = pneg %p359
        %p718 = pneg %p356
        %p719 = pneg %p380
        %p720 = pneg %p377
        %p721 = pneg %p401
        %p722 = pneg %p398
        %p723 = pneg %p422
        %p724 = pneg %p419
        %p725 = pneg %p443
        %p726 = pneg %p440
        %p727 = pneg %p471
        %p728 = pneg %p468
        %s729 = sand.u32 %s458, 1
        %s730 = scalar_lea.sflag [#allocation8], %s729
        %s731 = sand.u32 %s458, 1
        %s732 = smul.addr %s731, 16
        %s733 = scalar_lea.vmem [#allocation20], %s732
        %s734 = smul.u32 2, %s43
        %p735 = scmp.lt.s32.totalorder %s42, 1
        %s736 = scalar_select %p735, %s42, 1
        %p737 = scmp.lt.s32.totalorder %s734, 3
        %s738 = scalar_select %p737, %s734, 3
        %s739 = smul.addr %s736, 4
        %s740 = sadd.s32 %s738, %s739
        %s741 = smul.addr %s740, 8
        %s742 = scalar_lea.vmem %s0, %s741
        %s743 = smul.u32 2, %s43
        %s744 = smul.u32 2, %s44
        %p745 = scmp.lt.s32.totalorder %s42, 1
        %s746 = scalar_select %p745, %s42, 1
        %p747 = scmp.lt.s32.totalorder %s744, 3
        %s748 = scalar_select %p747, %s744, 3
        %s749 = smul.addr %s746, 4
        %s750 = sadd.s32 %s748, %s749
        %s751 = smul.addr %s750, 8
        %s752 = scalar_lea.vmem %s1, %s751
        %s753 = smul.u32 2, %s44
        %s754 = smul.u32 2, %s43
        %p756 = scmp.eq.s32.totalorder %s44, 0
        // Predicated region
        $region125: #{tpu_custom_call.1} parent=91 // pred_check
          %p757 = pneg %p756
        $region126: #{tpu_custom_call.1} parent=91 // pred_check_branch
          %759 = sbr.rel (%p757) target = $region128
        $region127: #{tpu_custom_call.1} parent=91 // pred_region
          %v760 = vld [vmem:[%s742] sm:$0xff]
          %v761 = vld [vmem:[%s742 + $0x8] sm:$0xff]
          %v762 = vld [vmem:[#allocation6] sm:$0x1]
          %v763 = vld [vmem:[#allocation9] sm:$0x1]
          %vm764 = vcmask 523264
          %v765 = vsel %vm764, %v760, 0.0
          %766 = vadd.xlane.f32.xlu0 %v765
          %v767 = vpop.xlane.xlu0 %766
          %v768 = vsel %vm764, %v761, 0.0
          %769 = vadd.xlane.f32.xlu0 %v768
          %v770 = vpop.xlane.xlu0 %769
          %v771 = vrcp.pop 64.0
          %v772 = vmul.f32 %v767, %v771
          %v773 = vmul.f32 %v770, %v771
          %v774 = vsub.f32 %v760, %v772
          %v775 = vsub.f32 %v761, %v773
          %v776 = vmul.f32 %v774, %v774
          %v777 = vmul.f32 %v775, %v775
          %v778 = vsel %vm764, %v776, 0.0
          %779 = vadd.xlane.f32.xlu0 %v778
          %v780 = vpop.xlane.xlu0 %779
          %v781 = vsel %vm764, %v777, 0.0
          %782 = vadd.xlane.f32.xlu0 %v781
          %v783 = vpop.xlane.xlu0 %782
          %v784 = vmul.f32 %v780, %v771
          %v785 = vmul.f32 %v783, %v771
          %v786 = vadd.f32 %v784, 1e-05
          %v787 = vadd.f32 %v785, 1e-05
          %v788 = vrsqrt.pop %v786
          %v789 = vrsqrt.pop %v787
          %v790 = vmul.f32 %v774, %v788
          %v791 = vmul.f32 %v775, %v789
          %v793 = vlaneseq
          %v794 = vshrl.u32 %v793, 7
          %v795 = vsub.s32 0, %v794
          %v796 = vrot.slane %v762, %v795
          %v798 = vmul.f32 %v790, %v796
          %v799 = vmul.f32 %v791, %v796
          %v801 = vlaneseq
          %v802 = vshrl.u32 %v801, 7
          %v803 = vsub.s32 0, %v802
          %v804 = vrot.slane %v763, %v803
          %v806 = vadd.f32 %v798, %v804
          %v807 = vadd.f32 %v799, %v804
          %v808 = vpack.c.bf16 %v807, %v806
          %v809 = vld [vmem:[#allocation11] sm:$0xf]
          %v810 = vld [vmem:[#allocation11 + $0x4] sm:$0xf]
          %v811 = vld [vmem:[#allocation11 + $0x8] sm:$0xf]
          %v812 = vld [vmem:[#allocation11 + $0xc] sm:$0xf]
          %v813 = vld [vmem:[#allocation11 + $0x10] sm:$0xf]
          %v814 = vld [vmem:[#allocation11 + $0x14] sm:$0xf]
          %v815 = vld [vmem:[#allocation11 + $0x18] sm:$0xf]
          %v816 = vld [vmem:[#allocation11 + $0x1c] sm:$0xf]
          %v817 = vld [vmem:[#allocation12] sm:$0x1]
          %v819 = vlaneseq
          %v820 = vshrl.u32 %v819, 7
          %v821 = vsub.s32 0, %v820
          %v822 = vrot.slane %v817, %v821
          %v832 = vunpack.c.l.b16 %v809
          %v833 = vunpack.c.l.b16 %v810
          %v834 = vunpack.c.l.b16 %v811
          %v835 = vunpack.c.l.b16 %v812
          %v836 = vunpack.c.l.b16 %v813
          %v837 = vunpack.c.l.b16 %v814
          %v838 = vunpack.c.l.b16 %v815
          %v839 = vunpack.c.l.b16 %v816
          %v840 = vpack.c.b16 %v833, %v832
          %v841 = vpack.c.b16 %v835, %v834
          %v842 = vpack.c.b16 %v837, %v836
          %v843 = vpack.c.b16 %v839, %v838
          %v849 = vsel %vm764, %v808, 0
          %851 = vmatprep.subr.bf16.mxu0 0
          %852 = vmatpush1.bf16.msra.mxu0 %v840
          %853 = vmatprep.subr.bf16.mxu0 0
          %854 = vmatpush1.bf16.msra.mxu0 %v841
          %855 = vmatprep.subr.bf16.mxu0 0
          %856 = vmatpush1.bf16.msra.mxu0 %v842
          %857 = vmatprep.subr.bf16.mxu0 0
          %858 = vmatpush1.bf16.msra.mxu0 %v843
          %859 = vmatprep.subr.bf16.mxu0 0
          %860 = vmatpush1.bf16.msra.mxu0 0
          %861 = vmatprep.subr.bf16.mxu0 0
          %862 = vmatpush1.bf16.msra.mxu0 0
          %863 = vmatprep.subr.bf16.mxu0 0
          %864 = vmatpush1.bf16.msra.mxu0 0
          %865 = vmatprep.subr.bf16.mxu0 0
          %866 = vmatpush1.bf16.msra.mxu0 0
          %867 = vmatprep.subr.bf16.mxu0 0
          %868 = vmatpush1.bf16.msra.mxu0 0
          %869 = vmatprep.subr.bf16.mxu0 0
          %870 = vmatpush1.bf16.msra.mxu0 0
          %871 = vmatprep.subr.bf16.mxu0 0
          %872 = vmatpush1.bf16.msra.mxu0 0
          %873 = vmatprep.subr.bf16.mxu0 0
          %874 = vmatpush1.bf16.msra.mxu0 0
          %875 = vmatprep.subr.bf16.mxu0 0
          %876 = vmatpush1.bf16.msra.mxu0 0
          %877 = vmatprep.subr.bf16.mxu0 0
          %878 = vmatpush1.bf16.msra.mxu0 0
          %879 = vmatprep.subr.bf16.mxu0 0
          %880 = vmatpush1.bf16.msra.mxu0 0
          %881 = vmatprep.subr.bf16.mxu0 0
          %882 = vmatpush1.bf16.msra.mxu0 0
          %883 = vmatprep.mubr.bf16.mxu0 0
          %884 = vmatmul.mubr.bf16.gmra.mrb[0].mxu0 %v849
          %v885 = vpop.f32.mrb[0].mxu0
          %v886 = vadd.f32 %v822, %v885
          %v887 = vpop.f32.mrb[0].mxu0
          %v888 = vpop.f32.mrb[0].mxu0
          %v889 = vadd.f32 %v822, %v888
          %v890 = vpop.f32.mrb[0].mxu0
          %891 = vdwg.mxu0
          %v892 = vmul.f32 %v886, 0.25
          %v893 = vmul.f32 %v889, 0.25
          %v894 = vpack.c.bf16 %v893, %v892
          %895 = vst.msk [vmem:[#allocation2] sm:$0xff] %vm764, %v894
          %vm896 = vcmask 7168
          %897 = vst.msk [vmem:[#allocation3] sm:$0xff] %vm896, -1e+30
          %898 = vst.msk [vmem:[#allocation3 + $0x8] sm:$0xff] %vm896, -1e+30
          %899 = vst.msk [vmem:[#allocation3 + $0x10] sm:$0xff] %vm896, -1e+30
          %900 = vst.msk [vmem:[#allocation3 + $0x18] sm:$0xff] %vm896, -1e+30
          %901 = vst.msk [vmem:[#allocation3 + $0x20] sm:$0xff] %vm896, -1e+30
          %902 = vst.msk [vmem:[#allocation3 + $0x28] sm:$0xff] %vm896, -1e+30
          %903 = vst.msk [vmem:[#allocation3 + $0x30] sm:$0xff] %vm896, -1e+30
          %904 = vst.msk [vmem:[#allocation3 + $0x38] sm:$0xff] %vm896, -1e+30
          %905 = vst.msk [vmem:[#allocation4] sm:$0xff] %vm896, 0.0
          %906 = vst.msk [vmem:[#allocation4 + $0x8] sm:$0xff] %vm896, 0.0
          %907 = vst.msk [vmem:[#allocation4 + $0x10] sm:$0xff] %vm896, 0.0
          %908 = vst.msk [vmem:[#allocation4 + $0x18] sm:$0xff] %vm896, 0.0
          %909 = vst.msk [vmem:[#allocation4 + $0x20] sm:$0xff] %vm896, 0.0
          %910 = vst.msk [vmem:[#allocation4 + $0x28] sm:$0xff] %vm896, 0.0
          %911 = vst.msk [vmem:[#allocation4 + $0x30] sm:$0xff] %vm896, 0.0
          %912 = vst.msk [vmem:[#allocation4 + $0x38] sm:$0xff] %vm896, 0.0
          %vm913 = vcmask 130048
          %914 = vst.msk [vmem:[#allocation5] sm:$0xff] %vm913, 0.0
          %915 = vst.msk [vmem:[#allocation5 + $0x8] sm:$0xff] %vm913, 0.0
          %916 = vst.msk [vmem:[#allocation5 + $0x10] sm:$0xff] %vm913, 0.0
          %917 = vst.msk [vmem:[#allocation5 + $0x18] sm:$0xff] %vm913, 0.0
          %918 = vst.msk [vmem:[#allocation5 + $0x20] sm:$0xff] %vm913, 0.0
          %919 = vst.msk [vmem:[#allocation5 + $0x28] sm:$0xff] %vm913, 0.0
          %920 = vst.msk [vmem:[#allocation5 + $0x30] sm:$0xff] %vm913, 0.0
          %921 = vst.msk [vmem:[#allocation5 + $0x38] sm:$0xff] %vm913, 0.0
        $region128: #{tpu_custom_call.1} parent=91 // pred_fallthru
          _
        %s922 = smul.u32 %s44, 16
        %s923 = sadd.s32 %s43, 1
        %s924 = smul.u32 %s923, 16
        %p925 = scmp.lt.s32.totalorder %s922, %s924
        // Predicated region
        $region129: #{tpu_custom_call.1} parent=91 // pred_check
          %p926 = pneg %p925
        $region130: #{tpu_custom_call.1} parent=91 // pred_check_branch
          %928 = sbr.rel (%p926) target = $region132
        $region131: #{tpu_custom_call.1} parent=91 // pred_region
          %v929 = vld [vmem:[%s752] sm:$0xff]
          %v930 = vld [vmem:[%s752 + $0x8] sm:$0xff]
          %v931 = vld [vmem:[#allocation6] sm:$0x1]
          %v932 = vld [vmem:[#allocation9] sm:$0x1]
          %vm933 = vcmask 523264
          %v934 = vsel %vm933, %v929, 0.0
          %935 = vadd.xlane.f32.xlu0 %v934
          %v936 = vpop.xlane.xlu0 %935
          %v937 = vsel %vm933, %v930, 0.0
          %938 = vadd.xlane.f32.xlu0 %v937
          %v939 = vpop.xlane.xlu0 %938
          %v940 = vrcp.pop 64.0
          %v941 = vmul.f32 %v936, %v940
          %v942 = vmul.f32 %v939, %v940
          %v943 = vsub.f32 %v929, %v941
          %v944 = vsub.f32 %v930, %v942
          %v945 = vmul.f32 %v943, %v943
          %v946 = vmul.f32 %v944, %v944
          %v947 = vsel %vm933, %v945, 0.0
          %948 = vadd.xlane.f32.xlu0 %v947
          %v949 = vpop.xlane.xlu0 %948
          %v950 = vsel %vm933, %v946, 0.0
          %951 = vadd.xlane.f32.xlu0 %v950
          %v952 = vpop.xlane.xlu0 %951
          %v953 = vmul.f32 %v949, %v940
          %v954 = vmul.f32 %v952, %v940
          %v955 = vadd.f32 %v953, 1e-05
          %v956 = vadd.f32 %v954, 1e-05
          %v957 = vrsqrt.pop %v955
          %v958 = vrsqrt.pop %v956
          %v959 = vmul.f32 %v943, %v957
          %v960 = vmul.f32 %v944, %v958
          %v962 = vlaneseq
          %v963 = vshrl.u32 %v962, 7
          %v964 = vsub.s32 0, %v963
          %v965 = vrot.slane %v931, %v964
          %v967 = vmul.f32 %v959, %v965
          %v968 = vmul.f32 %v960, %v965
          %v970 = vlaneseq
          %v971 = vshrl.u32 %v970, 7
          %v972 = vsub.s32 0, %v971
          %v973 = vrot.slane %v932, %v972
          %v975 = vadd.f32 %v967, %v973
          %v976 = vadd.f32 %v968, %v973
          %v977 = vpack.c.bf16 %v976, %v975
          %v978 = vld [vmem:[#allocation14] sm:$0xf]
          %v979 = vld [vmem:[#allocation14 + $0x4] sm:$0xf]
          %v980 = vld [vmem:[#allocation14 + $0x8] sm:$0xf]
          %v981 = vld [vmem:[#allocation14 + $0xc] sm:$0xf]
          %v982 = vld [vmem:[#allocation14 + $0x10] sm:$0xf]
          %v983 = vld [vmem:[#allocation14 + $0x14] sm:$0xf]
          %v984 = vld [vmem:[#allocation14 + $0x18] sm:$0xf]
          %v985 = vld [vmem:[#allocation14 + $0x1c] sm:$0xf]
          %v986 = vld [vmem:[#allocation15] sm:$0x1]
          %v988 = vlaneseq
          %v989 = vshrl.u32 %v988, 7
          %v990 = vsub.s32 0, %v989
          %v991 = vrot.slane %v986, %v990
          %v1001 = vunpack.c.l.b16 %v978
          %v1002 = vunpack.c.l.b16 %v979
          %v1003 = vunpack.c.l.b16 %v980
          %v1004 = vunpack.c.l.b16 %v981
          %v1005 = vunpack.c.l.b16 %v982
          %v1006 = vunpack.c.l.b16 %v983
          %v1007 = vunpack.c.l.b16 %v984
          %v1008 = vunpack.c.l.b16 %v985
          %v1009 = vpack.c.b16 %v1002, %v1001
          %v1010 = vpack.c.b16 %v1004, %v1003
          %v1011 = vpack.c.b16 %v1006, %v1005
          %v1012 = vpack.c.b16 %v1008, %v1007
          %v1018 = vsel %vm933, %v977, 0
          %1020 = vmatprep.subr.bf16.mxu0 0
          %1021 = vmatpush1.bf16.msra.mxu0 %v1009
          %1022 = vmatprep.subr.bf16.mxu0 0
          %1023 = vmatpush1.bf16.msra.mxu0 %v1010
          %1024 = vmatprep.subr.bf16.mxu0 0
          %1025 = vmatpush1.bf16.msra.mxu0 %v1011
          %1026 = vmatprep.subr.bf16.mxu0 0
          %1027 = vmatpush1.bf16.msra.mxu0 %v1012
          %1028 = vmatprep.subr.bf16.mxu0 0
          %1029 = vmatpush1.bf16.msra.mxu0 0
          %1030 = vmatprep.subr.bf16.mxu0 0
          %1031 = vmatpush1.bf16.msra.mxu0 0
          %1032 = vmatprep.subr.bf16.mxu0 0
          %1033 = vmatpush1.bf16.msra.mxu0 0
          %1034 = vmatprep.subr.bf16.mxu0 0
          %1035 = vmatpush1.bf16.msra.mxu0 0
          %1036 = vmatprep.subr.bf16.mxu0 0
          %1037 = vmatpush1.bf16.msra.mxu0 0
          %1038 = vmatprep.subr.bf16.mxu0 0
          %1039 = vmatpush1.bf16.msra.mxu0 0
          %1040 = vmatprep.subr.bf16.mxu0 0
          %1041 = vmatpush1.bf16.msra.mxu0 0
          %1042 = vmatprep.subr.bf16.mxu0 0
          %1043 = vmatpush1.bf16.msra.mxu0 0
          %1044 = vmatprep.subr.bf16.mxu0 0
          %1045 = vmatpush1.bf16.msra.mxu0 0
          %1046 = vmatprep.subr.bf16.mxu0 0
          %1047 = vmatpush1.bf16.msra.mxu0 0
          %1048 = vmatprep.subr.bf16.mxu0 0
          %1049 = vmatpush1.bf16.msra.mxu0 0
          %1050 = vmatprep.subr.bf16.mxu0 0
          %1051 = vmatpush1.bf16.msra.mxu0 0
          %1052 = vmatprep.mubr.bf16.mxu0 0
          %1053 = vmatmul.mubr.bf16.gmra.mrb[0].mxu0 %v1018
          %v1054 = vpop.f32.mrb[0].mxu0
          %v1055 = vadd.f32 %v991, %v1054
          %v1056 = vpop.f32.mrb[0].mxu0
          %v1057 = vpop.f32.mrb[0].mxu0
          %v1058 = vadd.f32 %v991, %v1057
          %v1059 = vpop.f32.mrb[0].mxu0
          %1060 = vdwg.mxu0
          %v1061 = vld [vmem:[#allocation17] sm:$0xf]
          %v1062 = vld [vmem:[#allocation17 + $0x4] sm:$0xf]
          %v1063 = vld [vmem:[#allocation17 + $0x8] sm:$0xf]
          %v1064 = vld [vmem:[#allocation17 + $0xc] sm:$0xf]
          %v1065 = vld [vmem:[#allocation17 + $0x10] sm:$0xf]
          %v1066 = vld [vmem:[#allocation17 + $0x14] sm:$0xf]
          %v1067 = vld [vmem:[#allocation17 + $0x18] sm:$0xf]
          %v1068 = vld [vmem:[#allocation17 + $0x1c] sm:$0xf]
          %v1069 = vld [vmem:[#allocation18] sm:$0x1]
          %v1071 = vlaneseq
          %v1072 = vshrl.u32 %v1071, 7
          %v1073 = vsub.s32 0, %v1072
          %v1074 = vrot.slane %v1069, %v1073
          %v1084 = vunpack.c.l.b16 %v1061
          %v1085 = vunpack.c.l.b16 %v1062
          %v1086 = vunpack.c.l.b16 %v1063
          %v1087 = vunpack.c.l.b16 %v1064
          %v1088 = vunpack.c.l.b16 %v1065
          %v1089 = vunpack.c.l.b16 %v1066
          %v1090 = vunpack.c.l.b16 %v1067
          %v1091 = vunpack.c.l.b16 %v1068
          %v1092 = vpack.c.b16 %v1085, %v1084
          %v1093 = vpack.c.b16 %v1087, %v1086
          %v1094 = vpack.c.b16 %v1089, %v1088
          %v1095 = vpack.c.b16 %v1091, %v1090
          %1100 = vmatprep.subr.bf16.mxu0 0
          %1101 = vmatpush1.bf16.msra.mxu0 %v1092
          %1102 = vmatprep.subr.bf16.mxu0 0
          %1103 = vmatpush1.bf16.msra.mxu0 %v1093
          %1104 = vmatprep.subr.bf16.mxu0 0
          %1105 = vmatpush1.bf16.msra.mxu0 %v1094
          %1106 = vmatprep.subr.bf16.mxu0 0
          %1107 = vmatpush1.bf16.msra.mxu0 %v1095
          %1108 = vmatprep.subr.bf16.mxu0 0
          %1109 = vmatpush1.bf16.msra.mxu0 0
          %1110 = vmatprep.subr.bf16.mxu0 0
          %1111 = vmatpush1.bf16.msra.mxu0 0
          %1112 = vmatprep.subr.bf16.mxu0 0
          %1113 = vmatpush1.bf16.msra.mxu0 0
          %1114 = vmatprep.subr.bf16.mxu0 0
          %1115 = vmatpush1.bf16.msra.mxu0 0
          %1116 = vmatprep.subr.bf16.mxu0 0
          %1117 = vmatpush1.bf16.msra.mxu0 0
          %1118 = vmatprep.subr.bf16.mxu0 0
          %1119 = vmatpush1.bf16.msra.mxu0 0
          %1120 = vmatprep.subr.bf16.mxu0 0
          %1121 = vmatpush1.bf16.msra.mxu0 0
          %1122 = vmatprep.subr.bf16.mxu0 0
          %1123 = vmatpush1.bf16.msra.mxu0 0
          %1124 = vmatprep.subr.bf16.mxu0 0
          %1125 = vmatpush1.bf16.msra.mxu0 0
          %1126 = vmatprep.subr.bf16.mxu0 0
          %1127 = vmatpush1.bf16.msra.mxu0 0
          %1128 = vmatprep.subr.bf16.mxu0 0
          %1129 = vmatpush1.bf16.msra.mxu0 0
          %1130 = vmatprep.subr.bf16.mxu0 0
          %1131 = vmatpush1.bf16.msra.mxu0 0
          %1132 = vmatprep.mubr.bf16.mxu0 0
          %1133 = vmatmul.mubr.bf16.gmra.mrb[0].mxu0 %v1018
          %v1134 = vpop.f32.mrb[0].mxu0
          %v1135 = vadd.f32 %v1074, %v1134
          %v1136 = vpop.f32.mrb[0].mxu0
          %v1137 = vpop.f32.mrb[0].mxu0
          %v1138 = vadd.f32 %v1074, %v1137
          %v1139 = vpop.f32.mrb[0].mxu0
          %1140 = vdwg.mxu0
          %v1141 = vpack.c.bf16 %v1058, %v1055
          %1143 = vrot.lane.b32.xlu0 %v1141, 112
          %v1144 = vpop.permute.xlu0 %1143
          %1146 = vrot.lane.b32.xlu0 %v1141, 96
          %v1147 = vpop.permute.xlu0 %1146
          %1149 = vrot.lane.b32.xlu0 %v1141, 80
          %v1150 = vpop.permute.xlu0 %1149
          %v1152 = vpack.c.bf16 %v1138, %v1135
          %1154 = vrot.lane.b32.xlu0 %v1152, 112
          %v1155 = vpop.permute.xlu0 %1154
          %1157 = vrot.lane.b32.xlu0 %v1152, 96
          %v1158 = vpop.permute.xlu0 %1157
          %1160 = vrot.lane.b32.xlu0 %v1152, 80
          %v1161 = vpop.permute.xlu0 %1160
          %v1163 = vld [vmem:[#allocation2] sm:$0xff]
          %1165 = vrot.lane.b32.xlu0 %v1163, 112
          %v1166 = vpop.permute.xlu0 %1165
          %1167 = vrot.lane.b32.xlu0 %v1163, 96
          %v1168 = vpop.permute.xlu0 %1167
          %1169 = vrot.lane.b32.xlu0 %v1163, 80
          %v1170 = vpop.permute.xlu0 %1169
          %1171 = vxpose.xlu0.c.b16.start [1/8] %v1141, 128
          %1172 = vxpose.xlu0.c.b16.cont [2/8] 0, 128
          %1173 = vxpose.xlu0.c.b16.cont [3/8] 0, 128
          %1174 = vxpose.xlu0.c.b16.cont [4/8] 0, 128
          %1175 = vxpose.xlu0.c.b16.cont [5/8] 0, 128
          %1176 = vxpose.xlu0.c.b16.cont [6/8] 0, 128
          %1177 = vxpose.xlu0.c.b16.cont [7/8] 0, 128
          %1178 = vxpose.xlu0.c.b16.end [8/8] 0, 128
          %v1179 = vpop.trf.xlu0
          %v1180 = vpop.trf.xlu0
          %v1181 = vpop.trf.xlu0
          %v1182 = vpop.trf.xlu0
          %v1183 = vpop.trf.xlu0
          %v1184 = vpop.trf.xlu0
          %v1185 = vpop.trf.xlu0
          %v1186 = vpop.trf.xlu0
          %1187 = vxpose.xlu0.c.b16.start [1/8] %v1144, 128
          %1188 = vxpose.xlu0.c.b16.cont [2/8] 0, 128
          %1189 = vxpose.xlu0.c.b16.cont [3/8] 0, 128
          %1190 = vxpose.xlu0.c.b16.cont [4/8] 0, 128
          %1191 = vxpose.xlu0.c.b16.cont [5/8] 0, 128
          %1192 = vxpose.xlu0.c.b16.cont [6/8] 0, 128
          %1193 = vxpose.xlu0.c.b16.cont [7/8] 0, 128
          %1194 = vxpose.xlu0.c.b16.end [8/8] 0, 128
          %v1195 = vpop.trf.xlu0
          %v1196 = vpop.trf.xlu0
          %v1197 = vpop.trf.xlu0
          %v1198 = vpop.trf.xlu0
          %v1199 = vpop.trf.xlu0
          %v1200 = vpop.trf.xlu0
          %v1201 = vpop.trf.xlu0
          %v1202 = vpop.trf.xlu0
          %1203 = vxpose.xlu0.c.b16.start [1/8] %v1147, 128
          %1204 = vxpose.xlu0.c.b16.cont [2/8] 0, 128
          %1205 = vxpose.xlu0.c.b16.cont [3/8] 0, 128
          %1206 = vxpose.xlu0.c.b16.cont [4/8] 0, 128
          %1207 = vxpose.xlu0.c.b16.cont [5/8] 0, 128
          %1208 = vxpose.xlu0.c.b16.cont [6/8] 0, 128
          %1209 = vxpose.xlu0.c.b16.cont [7/8] 0, 128
          %1210 = vxpose.xlu0.c.b16.end [8/8] 0, 128
          %v1211 = vpop.trf.xlu0
          %v1212 = vpop.trf.xlu0
          %v1213 = vpop.trf.xlu0
          %v1214 = vpop.trf.xlu0
          %v1215 = vpop.trf.xlu0
          %v1216 = vpop.trf.xlu0
          %v1217 = vpop.trf.xlu0
          %v1218 = vpop.trf.xlu0
          %1219 = vxpose.xlu0.c.b16.start [1/8] %v1150, 128
          %1220 = vxpose.xlu0.c.b16.cont [2/8] 0, 128
          %1221 = vxpose.xlu0.c.b16.cont [3/8] 0, 128
          %1222 = vxpose.xlu0.c.b16.cont [4/8] 0, 128
          %1223 = vxpose.xlu0.c.b16.cont [5/8] 0, 128
          %1224 = vxpose.xlu0.c.b16.cont [6/8] 0, 128
          %1225 = vxpose.xlu0.c.b16.cont [7/8] 0, 128
          %1226 = vxpose.xlu0.c.b16.end [8/8] 0, 128
          %v1227 = vpop.trf.xlu0
          %v1228 = vpop.trf.xlu0
          %v1229 = vpop.trf.xlu0
          %v1230 = vpop.trf.xlu0
          %v1231 = vpop.trf.xlu0
          %v1232 = vpop.trf.xlu0
          %v1233 = vpop.trf.xlu0
          %v1234 = vpop.trf.xlu0
          %vm1235 = vcmask 130048
          %v1237 = vsel %vm1235, %v1163, 0
          %1239 = vmatprep.subr.bf16.mxu0 0
          %1240 = vmatpush1.bf16.msra.mxu0 %v1179
          %1241 = vmatprep.subr.bf16.mxu0 0
          %1242 = vmatpush1.bf16.msra.mxu0 0
          %1243 = vmatprep.subr.bf16.mxu0 0
          %1244 = vmatpush1.bf16.msra.mxu0 0
          %1245 = vmatprep.subr.bf16.mxu0 0
          %1246 = vmatpush1.bf16.msra.mxu0 0
          %1247 = vmatprep.subr.bf16.mxu0 0
          %1248 = vmatpush1.bf16.msra.mxu0 0
          %1249 = vmatprep.subr.bf16.mxu0 0
          %1250 = vmatpush1.bf16.msra.mxu0 0
          %1251 = vmatprep.subr.bf16.mxu0 0
          %1252 = vmatpush1.bf16.msra.mxu0 0
          %1253 = vmatprep.subr.bf16.mxu0 0
          %1254 = vmatpush1.bf16.msra.mxu0 0
          %1255 = vmatprep.subr.bf16.mxu0 0
          %1256 = vmatpush1.bf16.msra.mxu0 0
          %1257 = vmatprep.subr.bf16.mxu0 0
          %1258 = vmatpush1.bf16.msra.mxu0 0
          %1259 = vmatprep.subr.bf16.mxu0 0
          %1260 = vmatpush1.bf16.msra.mxu0 0
          %1261 = vmatprep.subr.bf16.mxu0 0
          %1262 = vmatpush1.bf16.msra.mxu0 0
          %1263 = vmatprep.subr.bf16.mxu0 0
          %1264 = vmatpush1.bf16.msra.mxu0 0
          %1265 = vmatprep.subr.bf16.mxu0 0
          %1266 = vmatpush1.bf16.msra.mxu0 0
          %1267 = vmatprep.subr.bf16.mxu0 0
          %1268 = vmatpush1.bf16.msra.mxu0 0
          %1269 = vmatprep.subr.bf16.mxu0 0
          %1270 = vmatpush1.bf16.msra.mxu0 0
          %1271 = vmatprep.mubr.bf16.mxu0 0
          %1272 = vmatmul.mubr.bf16.gmra.mrb[0].mxu0 %v1237
          %v1273 = vpop.f32.mrb[0].mxu0
          %v1274 = vadd.f32 0.0, %v1273
          %v1275 = vpop.f32.mrb[0].mxu0
          %v1276 = vpop.f32.mrb[0].mxu0
          %v1277 = vadd.f32 0.0, %v1276
          %v1278 = vpop.f32.mrb[0].mxu0
          %1279 = vdwg.mxu0
          %v1281 = vsel %vm1235, %v1166, 0
          %1283 = vmatprep.subr.bf16.mxu0 0
          %1284 = vmatpush1.bf16.msra.mxu0 %v1195
          %1285 = vmatprep.subr.bf16.mxu0 0
          %1286 = vmatpush1.bf16.msra.mxu0 0
          %1287 = vmatprep.subr.bf16.mxu0 0
          %1288 = vmatpush1.bf16.msra.mxu0 0
          %1289 = vmatprep.subr.bf16.mxu0 0
          %1290 = vmatpush1.bf16.msra.mxu0 0
          %1291 = vmatprep.subr.bf16.mxu0 0
          %1292 = vmatpush1.bf16.msra.mxu0 0
          %1293 = vmatprep.subr.bf16.mxu0 0
          %1294 = vmatpush1.bf16.msra.mxu0 0
          %1295 = vmatprep.subr.bf16.mxu0 0
          %1296 = vmatpush1.bf16.msra.mxu0 0
          %1297 = vmatprep.subr.bf16.mxu0 0
          %1298 = vmatpush1.bf16.msra.mxu0 0
          %1299 = vmatprep.subr.bf16.mxu0 0
          %1300 = vmatpush1.bf16.msra.mxu0 0
          %1301 = vmatprep.subr.bf16.mxu0 0
          %1302 = vmatpush1.bf16.msra.mxu0 0
          %1303 = vmatprep.subr.bf16.mxu0 0
          %1304 = vmatpush1.bf16.msra.mxu0 0
          %1305 = vmatprep.subr.bf16.mxu0 0
          %1306 = vmatpush1.bf16.msra.mxu0 0
          %1307 = vmatprep.subr.bf16.mxu0 0
          %1308 = vmatpush1.bf16.msra.mxu0 0
          %1309 = vmatprep.subr.bf16.mxu0 0
          %1310 = vmatpush1.bf16.msra.mxu0 0
          %1311 = vmatprep.subr.bf16.mxu0 0
          %1312 = vmatpush1.bf16.msra.mxu0 0
          %1313 = vmatprep.subr.bf16.mxu0 0
          %1314 = vmatpush1.bf16.msra.mxu0 0
          %1315 = vmatprep.mubr.bf16.mxu0 0
          %1316 = vmatmul.mubr.bf16.gmra.mrb[0].mxu0 %v1281
          %v1317 = vpop.f32.mrb[0].mxu0
          %v1318 = vadd.f32 0.0, %v1317
          %v1319 = vpop.f32.mrb[0].mxu0
          %v1320 = vpop.f32.mrb[0].mxu0
          %v1321 = vadd.f32 0.0, %v1320
          %v1322 = vpop.f32.mrb[0].mxu0
          %1323 = vdwg.mxu0
          %v1325 = vsel %vm1235, %v1168, 0
          %1327 = vmatprep.subr.bf16.mxu0 0
          %1328 = vmatpush1.bf16.msra.mxu0 %v1211
          %1329 = vmatprep.subr.bf16.mxu0 0
          %1330 = vmatpush1.bf16.msra.mxu0 0
          %1331 = vmatprep.subr.bf16.mxu0 0
          %1332 = vmatpush1.bf16.msra.mxu0 0
          %1333 = vmatprep.subr.bf16.mxu0 0
          %1334 = vmatpush1.bf16.msra.mxu0 0
          %1335 = vmatprep.subr.bf16.mxu0 0
          %1336 = vmatpush1.bf16.msra.mxu0 0
          %1337 = vmatprep.subr.bf16.mxu0 0
          %1338 = vmatpush1.bf16.msra.mxu0 0
          %1339 = vmatprep.subr.bf16.mxu0 0
          %1340 = vmatpush1.bf16.msra.mxu0 0
          %1341 = vmatprep.subr.bf16.mxu0 0
          %1342 = vmatpush1.bf16.msra.mxu0 0
          %1343 = vmatprep.subr.bf16.mxu0 0
          %1344 = vmatpush1.bf16.msra.mxu0 0
          %1345 = vmatprep.subr.bf16.mxu0 0
          %1346 = vmatpush1.bf16.msra.mxu0 0
          %1347 = vmatprep.subr.bf16.mxu0 0
          %1348 = vmatpush1.bf16.msra.mxu0 0
          %1349 = vmatprep.subr.bf16.mxu0 0
          %1350 = vmatpush1.bf16.msra.mxu0 0
          %1351 = vmatprep.subr.bf16.mxu0 0
          %1352 = vmatpush1.bf16.msra.mxu0 0
          %1353 = vmatprep.subr.bf16.mxu0 0
          %1354 = vmatpush1.bf16.msra.mxu0 0
          %1355 = vmatprep.subr.bf16.mxu0 0
          %1356 = vmatpush1.bf16.msra.mxu0 0
          %1357 = vmatprep.subr.bf16.mxu0 0
          %1358 = vmatpush1.bf16.msra.mxu0 0
          %1359 = vmatprep.mubr.bf16.mxu0 0
          %1360 = vmatmul.mubr.bf16.gmra.mrb[0].mxu0 %v1325
          %v1361 = vpop.f32.mrb[0].mxu0
          %v1362 = vadd.f32 0.0, %v1361
          %v1363 = vpop.f32.mrb[0].mxu0
          %v1364 = vpop.f32.mrb[0].mxu0
          %v1365 = vadd.f32 0.0, %v1364
          %v1366 = vpop.f32.mrb[0].mxu0
          %1367 = vdwg.mxu0
          %v1369 = vsel %vm1235, %v1170, 0
          %1371 = vmatprep.subr.bf16.mxu0 0
          %1372 = vmatpush1.bf16.msra.mxu0 %v1227
          %1373 = vmatprep.subr.bf16.mxu0 0
          %1374 = vmatpush1.bf16.msra.mxu0 0
          %1375 = vmatprep.subr.bf16.mxu0 0
          %1376 = vmatpush1.bf16.msra.mxu0 0
          %1377 = vmatprep.subr.bf16.mxu0 0
          %1378 = vmatpush1.bf16.msra.mxu0 0
          %1379 = vmatprep.subr.bf16.mxu0 0
          %1380 = vmatpush1.bf16.msra.mxu0 0
          %1381 = vmatprep.subr.bf16.mxu0 0
          %1382 = vmatpush1.bf16.msra.mxu0 0
          %1383 = vmatprep.subr.bf16.mxu0 0
          %1384 = vmatpush1.bf16.msra.mxu0 0
          %1385 = vmatprep.subr.bf16.mxu0 0
          %1386 = vmatpush1.bf16.msra.mxu0 0
          %1387 = vmatprep.subr.bf16.mxu0 0
          %1388 = vmatpush1.bf16.msra.mxu0 0
          %1389 = vmatprep.subr.bf16.mxu0 0
          %1390 = vmatpush1.bf16.msra.mxu0 0
          %1391 = vmatprep.subr.bf16.mxu0 0
          %1392 = vmatpush1.bf16.msra.mxu0 0
          %1393 = vmatprep.subr.bf16.mxu0 0
          %1394 = vmatpush1.bf16.msra.mxu0 0
          %1395 = vmatprep.subr.bf16.mxu0 0
          %1396 = vmatpush1.bf16.msra.mxu0 0
          %1397 = vmatprep.subr.bf16.mxu0 0
          %1398 = vmatpush1.bf16.msra.mxu0 0
          %1399 = vmatprep.subr.bf16.mxu0 0
          %1400 = vmatpush1.bf16.msra.mxu0 0
          %1401 = vmatprep.subr.bf16.mxu0 0
          %1402 = vmatpush1.bf16.msra.mxu0 0
          %1403 = vmatprep.mubr.bf16.mxu0 0
          %1404 = vmatmul.mubr.bf16.gmra.mrb[0].mxu0 %v1369
          %v1405 = vpop.f32.mrb[0].mxu0
          %v1406 = vadd.f32 0.0, %v1405
          %v1407 = vpop.f32.mrb[0].mxu0
          %v1408 = vpop.f32.mrb[0].mxu0
          %v1409 = vadd.f32 0.0, %v1408
          %v1410 = vpop.f32.mrb[0].mxu0
          %1411 = vdwg.mxu0
          %s1412 = smul.u32 %s43, 16
          %v1413 = vlaneseq
          %v1414 = vshrl.u32 %v1413, 7
          %v1415 = vadd.s32 %v1414, 8
          %v1416 = vstv %s1412
          %v1417 = vadd.s32 %v1416, %v1414
          %v1418 = vadd.s32 %v1416, %v1415
          %v1419 = vlaneseq
          %v1420 = vand.u32 %v1419, 127
          %v1421 = vstv %s922
          %v1422 = vadd.s32 %v1421, %v1420
          %vm1423 = vcmp.gt.s32.totalorder %v1422, %v1417
          %vm1424 = vcmp.gt.s32.totalorder %v1422, %v1418
          %v1425 = vsel %vm1423, 1, 0
          %v1426 = vsel %vm1424, 1, 0
          %vm1427 = vcmp.eq.s32.totalorder %v1425, 1
          %vm1428 = vcmp.eq.s32.totalorder %v1426, 1
          %v1429 = vsel %vm1427, -1e+30, %v1274
          %v1430 = vsel %vm1428, -1e+30, %v1277
          %v1431 = vsel %vm1427, -1e+30, %v1318
          %v1432 = vsel %vm1428, -1e+30, %v1321
          %v1433 = vsel %vm1427, -1e+30, %v1362
          %v1434 = vsel %vm1428, -1e+30, %v1365
          %v1435 = vsel %vm1427, -1e+30, %v1406
          %v1436 = vsel %vm1428, -1e+30, %v1409
          %v1437 = vld [vmem:[#allocation3] sm:$0xff]
          %v1438 = vld [vmem:[#allocation3 + $0x8] sm:$0xff]
          %v1439 = vld [vmem:[#allocation3 + $0x10] sm:$0xff]
          %v1440 = vld [vmem:[#allocation3 + $0x18] sm:$0xff]
          %v1441 = vld [vmem:[#allocation3 + $0x20] sm:$0xff]
          %v1442 = vld [vmem:[#allocation3 + $0x28] sm:$0xff]
          %v1443 = vld [vmem:[#allocation3 + $0x30] sm:$0xff]
          %v1444 = vld [vmem:[#allocation3 + $0x38] sm:$0xff]
          %v1445 = vsel %vm1235, %v1429, -inf
          %1446 = vmax.xlane.f32.xlu0 %v1445
          %v1447 = vpop.xlane.xlu0 %1446
          %v1448 = vsel %vm1235, %v1430, -inf
          %1449 = vmax.xlane.f32.xlu0 %v1448
          %v1450 = vpop.xlane.xlu0 %1449
          %v1451 = vsel %vm1235, %v1431, -inf
          %1452 = vmax.xlane.f32.xlu0 %v1451
          %v1453 = vpop.xlane.xlu0 %1452
          %v1454 = vsel %vm1235, %v1432, -inf
          %1455 = vmax.xlane.f32.xlu0 %v1454
          %v1456 = vpop.xlane.xlu0 %1455
          %v1457 = vsel %vm1235, %v1433, -inf
          %1458 = vmax.xlane.f32.xlu0 %v1457
          %v1459 = vpop.xlane.xlu0 %1458
          %v1460 = vsel %vm1235, %v1434, -inf
          %1461 = vmax.xlane.f32.xlu0 %v1460
          %v1462 = vpop.xlane.xlu0 %1461
          %v1463 = vsel %vm1235, %v1435, -inf
          %1464 = vmax.xlane.f32.xlu0 %v1463
          %v1465 = vpop.xlane.xlu0 %1464
          %v1466 = vsel %vm1235, %v1436, -inf
          %1467 = vmax.xlane.f32.xlu0 %v1466
          %v1468 = vpop.xlane.xlu0 %1467
          %v1469 = vmax.f32 %v1437, %v1447
          %v1470 = vmax.f32 %v1438, %v1450
          %v1471 = vmax.f32 %v1439, %v1453
          %v1472 = vmax.f32 %v1440, %v1456
          %v1473 = vmax.f32 %v1441, %v1459
          %v1474 = vmax.f32 %v1442, %v1462
          %v1475 = vmax.f32 %v1443, %v1465
          %v1476 = vmax.f32 %v1444, %v1468
          %v1477 = vsub.f32 %v1437, %v1469
          %v1478 = vsub.f32 %v1438, %v1470
          %v1479 = vsub.f32 %v1439, %v1471
          %v1480 = vsub.f32 %v1440, %v1472
          %v1481 = vsub.f32 %v1441, %v1473
          %v1482 = vsub.f32 %v1442, %v1474
          %v1483 = vsub.f32 %v1443, %v1475
          %v1484 = vsub.f32 %v1444, %v1476
          %v1485 = vmul.f32 %v1477, 1.442695
          %v1486 = vpow.pop %v1485
          %v1487 = vmul.f32 %v1478, 1.442695
          %v1488 = vpow.pop %v1487
          %v1489 = vmul.f32 %v1479, 1.442695
          %v1490 = vpow.pop %v1489
          %v1491 = vmul.f32 %v1480, 1.442695
          %v1492 = vpow.pop %v1491
          %v1493 = vmul.f32 %v1481, 1.442695
          %v1494 = vpow.pop %v1493
          %v1495 = vmul.f32 %v1482, 1.442695
          %v1496 = vpow.pop %v1495
          %v1497 = vmul.f32 %v1483, 1.442695
          %v1498 = vpow.pop %v1497
          %v1499 = vmul.f32 %v1484, 1.442695
          %v1500 = vpow.pop %v1499
          %1502 = vset.pattern.permute.xlu0 0
          %1503 = vperm.xlu0 %1502, %v1469
          %v1504 = vpop.permute.xlu0 %1503
          %1507 = vset.pattern.permute.xlu0 0
          %1508 = vperm.xlu0 %1507, %v1470
          %v1509 = vpop.permute.xlu0 %1508
          %1512 = vset.pattern.permute.xlu0 0
          %1513 = vperm.xlu0 %1512, %v1471
          %v1514 = vpop.permute.xlu0 %1513
          %1517 = vset.pattern.permute.xlu0 0
          %1518 = vperm.xlu0 %1517, %v1472
          %v1519 = vpop.permute.xlu0 %1518
          %1522 = vset.pattern.permute.xlu0 0
          %1523 = vperm.xlu0 %1522, %v1473
          %v1524 = vpop.permute.xlu0 %1523
          %1527 = vset.pattern.permute.xlu0 0
          %1528 = vperm.xlu0 %1527, %v1474
          %v1529 = vpop.permute.xlu0 %1528
          %1532 = vset.pattern.permute.xlu0 0
          %1533 = vperm.xlu0 %1532, %v1475
          %v1534 = vpop.permute.xlu0 %1533
          %1537 = vset.pattern.permute.xlu0 0
          %1538 = vperm.xlu0 %1537, %v1476
          %v1539 = vpop.permute.xlu0 %1538
          %v1541 = vsub.f32 %v1429, %v1504
          %v1542 = vsub.f32 %v1430, %v1509
          %v1543 = vsub.f32 %v1431, %v1514
          %v1544 = vsub.f32 %v1432, %v1519
          %v1545 = vsub.f32 %v1433, %v1524
          %v1546 = vsub.f32 %v1434, %v1529
          %v1547 = vsub.f32 %v1435, %v1534
          %v1548 = vsub.f32 %v1436, %v1539
          %v1549 = vmul.f32 %v1541, 1.442695
          %v1550 = vpow.pop %v1549
          %v1551 = vmul.f32 %v1542, 1.442695
          %v1552 = vpow.pop %v1551
          %v1553 = vmul.f32 %v1543, 1.442695
          %v1554 = vpow.pop %v1553
          %v1555 = vmul.f32 %v1544, 1.442695
          %v1556 = vpow.pop %v1555
          %v1557 = vmul.f32 %v1545, 1.442695
          %v1558 = vpow.pop %v1557
          %v1559 = vmul.f32 %v1546, 1.442695
          %v1560 = vpow.pop %v1559
          %v1561 = vmul.f32 %v1547, 1.442695
          %v1562 = vpow.pop %v1561
          %v1563 = vmul.f32 %v1548, 1.442695
          %v1564 = vpow.pop %v1563
          %v1565 = vld [vmem:[#allocation4] sm:$0xff]
          %v1566 = vld [vmem:[#allocation4 + $0x8] sm:$0xff]
          %v1567 = vld [vmem:[#allocation4 + $0x10] sm:$0xff]
          %v1568 = vld [vmem:[#allocation4 + $0x18] sm:$0xff]
          %v1569 = vld [vmem:[#allocation4 + $0x20] sm:$0xff]
          %v1570 = vld [vmem:[#allocation4 + $0x28] sm:$0xff]
          %v1571 = vld [vmem:[#allocation4 + $0x30] sm:$0xff]
          %v1572 = vld [vmem:[#allocation4 + $0x38] sm:$0xff]
          %v1573 = vmul.f32 %v1486, %v1565
          %v1574 = vmul.f32 %v1488, %v1566
          %v1575 = vmul.f32 %v1490, %v1567
          %v1576 = vmul.f32 %v1492, %v1568
          %v1577 = vmul.f32 %v1494, %v1569
          %v1578 = vmul.f32 %v1496, %v1570
          %v1579 = vmul.f32 %v1498, %v1571
          %v1580 = vmul.f32 %v1500, %v1572
          %v1581 = vsel %vm1235, %v1550, 0.0
          %1582 = vadd.xlane.f32.xlu0 %v1581
          %v1583 = vpop.xlane.xlu0 %1582
          %v1584 = vsel %vm1235, %v1552, 0.0
          %1585 = vadd.xlane.f32.xlu0 %v1584
          %v1586 = vpop.xlane.xlu0 %1585
          %v1587 = vsel %vm1235, %v1554, 0.0
          %1588 = vadd.xlane.f32.xlu0 %v1587
          %v1589 = vpop.xlane.xlu0 %1588
          %v1590 = vsel %vm1235, %v1556, 0.0
          %1591 = vadd.xlane.f32.xlu0 %v1590
          %v1592 = vpop.xlane.xlu0 %1591
          %v1593 = vsel %vm1235, %v1558, 0.0
          %1594 = vadd.xlane.f32.xlu0 %v1593
          %v1595 = vpop.xlane.xlu0 %1594
          %v1596 = vsel %vm1235, %v1560, 0.0
          %1597 = vadd.xlane.f32.xlu0 %v1596
          %v1598 = vpop.xlane.xlu0 %1597
          %v1599 = vsel %vm1235, %v1562, 0.0
          %1600 = vadd.xlane.f32.xlu0 %v1599
          %v1601 = vpop.xlane.xlu0 %1600
          %v1602 = vsel %vm1235, %v1564, 0.0
          %1603 = vadd.xlane.f32.xlu0 %v1602
          %v1604 = vpop.xlane.xlu0 %1603
          %v1605 = vadd.f32 %v1573, %v1583
          %v1606 = vadd.f32 %v1574, %v1586
          %v1607 = vadd.f32 %v1575, %v1589
          %v1608 = vadd.f32 %v1576, %v1592
          %v1609 = vadd.f32 %v1577, %v1595
          %v1610 = vadd.f32 %v1578, %v1598
          %v1611 = vadd.f32 %v1579, %v1601
          %v1612 = vadd.f32 %v1580, %v1604
          %vm1613 = vcmask 7168
          %1614 = vst.msk [vmem:[#allocation4] sm:$0xff] %vm1613, %v1605
          %1615 = vst.msk [vmem:[#allocation4 + $0x8] sm:$0xff] %vm1613, %v1606
          %1616 = vst.msk [vmem:[#allocation4 + $0x10] sm:$0xff] %vm1613, %v1607
          %1617 = vst.msk [vmem:[#allocation4 + $0x18] sm:$0xff] %vm1613, %v1608
          %1618 = vst.msk [vmem:[#allocation4 + $0x20] sm:$0xff] %vm1613, %v1609
          %1619 = vst.msk [vmem:[#allocation4 + $0x28] sm:$0xff] %vm1613, %v1610
          %1620 = vst.msk [vmem:[#allocation4 + $0x30] sm:$0xff] %vm1613, %v1611
          %1621 = vst.msk [vmem:[#allocation4 + $0x38] sm:$0xff] %vm1613, %v1612
          %v1622 = vpack.c.bf16 %v1552, %v1550
          %v1623 = vpack.c.bf16 %v1556, %v1554
          %v1624 = vpack.c.bf16 %v1560, %v1558
          %v1625 = vpack.c.bf16 %v1564, %v1562
          %v1627 = vsel %vm1235, %v1622, 0
          %1629 = vmatprep.subr.bf16.mxu0 0
          %1630 = vmatpush1.bf16.msra.mxu0 %v1152
          %1631 = vmatprep.subr.bf16.mxu0 0
          %1632 = vmatpush1.bf16.msra.mxu0 0
          %1633 = vmatprep.subr.bf16.mxu0 0
          %1634 = vmatpush1.bf16.msra.mxu0 0
          %1635 = vmatprep.subr.bf16.mxu0 0
          %1636 = vmatpush1.bf16.msra.mxu0 0
          %1637 = vmatprep.subr.bf16.mxu0 0
          %1638 = vmatpush1.bf16.msra.mxu0 0
          %1639 = vmatprep.subr.bf16.mxu0 0
          %1640 = vmatpush1.bf16.msra.mxu0 0
          %1641 = vmatprep.subr.bf16.mxu0 0
          %1642 = vmatpush1.bf16.msra.mxu0 0
          %1643 = vmatprep.subr.bf16.mxu0 0
          %1644 = vmatpush1.bf16.msra.mxu0 0
          %1645 = vmatprep.subr.bf16.mxu0 0
          %1646 = vmatpush1.bf16.msra.mxu0 0
          %1647 = vmatprep.subr.bf16.mxu0 0
          %1648 = vmatpush1.bf16.msra.mxu0 0
          %1649 = vmatprep.subr.bf16.mxu0 0
          %1650 = vmatpush1.bf16.msra.mxu0 0
          %1651 = vmatprep.subr.bf16.mxu0 0
          %1652 = vmatpush1.bf16.msra.mxu0 0
          %1653 = vmatprep.subr.bf16.mxu0 0
          %1654 = vmatpush1.bf16.msra.mxu0 0
          %1655 = vmatprep.subr.bf16.mxu0 0
          %1656 = vmatpush1.bf16.msra.mxu0 0
          %1657 = vmatprep.subr.bf16.mxu0 0
          %1658 = vmatpush1.bf16.msra.mxu0 0
          %1659 = vmatprep.subr.bf16.mxu0 0
          %1660 = vmatpush1.bf16.msra.mxu0 0
          %1661 = vmatprep.mubr.bf16.mxu0 0
          %1662 = vmatmul.mubr.bf16.gmra.mrb[0].mxu0 %v1627
          %v1663 = vpop.f32.mrb[0].mxu0
          %v1664 = vadd.f32 0.0, %v1663
          %v1665 = vpop.f32.mrb[0].mxu0
          %v1666 = vpop.f32.mrb[0].mxu0
          %v1667 = vadd.f32 0.0, %v1666
          %v1668 = vpop.f32.mrb[0].mxu0
          %1669 = vdwg.mxu0
          %v1671 = vsel %vm1235, %v1623, 0
          %1673 = vmatprep.subr.bf16.mxu0 0
          %1674 = vmatpush1.bf16.msra.mxu0 %v1155
          %1675 = vmatprep.subr.bf16.mxu0 0
          %1676 = vmatpush1.bf16.msra.mxu0 0
          %1677 = vmatprep.subr.bf16.mxu0 0
          %1678 = vmatpush1.bf16.msra.mxu0 0
          %1679 = vmatprep.subr.bf16.mxu0 0
          %1680 = vmatpush1.bf16.msra.mxu0 0
          %1681 = vmatprep.subr.bf16.mxu0 0
          %1682 = vmatpush1.bf16.msra.mxu0 0
          %1683 = vmatprep.subr.bf16.mxu0 0
          %1684 = vmatpush1.bf16.msra.mxu0 0
          %1685 = vmatprep.subr.bf16.mxu0 0
          %1686 = vmatpush1.bf16.msra.mxu0 0
          %1687 = vmatprep.subr.bf16.mxu0 0
          %1688 = vmatpush1.bf16.msra.mxu0 0
          %1689 = vmatprep.subr.bf16.mxu0 0
          %1690 = vmatpush1.bf16.msra.mxu0 0
          %1691 = vmatprep.subr.bf16.mxu0 0
          %1692 = vmatpush1.bf16.msra.mxu0 0
          %1693 = vmatprep.subr.bf16.mxu0 0
          %1694 = vmatpush1.bf16.msra.mxu0 0
          %1695 = vmatprep.subr.bf16.mxu0 0
          %1696 = vmatpush1.bf16.msra.mxu0 0
          %1697 = vmatprep.subr.bf16.mxu0 0
          %1698 = vmatpush1.bf16.msra.mxu0 0
          %1699 = vmatprep.subr.bf16.mxu0 0
          %1700 = vmatpush1.bf16.msra.mxu0 0
          %1701 = vmatprep.subr.bf16.mxu0 0
          %1702 = vmatpush1.bf16.msra.mxu0 0
          %1703 = vmatprep.subr.bf16.mxu0 0
          %1704 = vmatpush1.bf16.msra.mxu0 0
          %1705 = vmatprep.mubr.bf16.mxu0 0
          %1706 = vmatmul.mubr.bf16.gmra.mrb[0].mxu0 %v1671
          %v1707 = vpop.f32.mrb[0].mxu0
          %v1708 = vadd.f32 0.0, %v1707
          %v1709 = vpop.f32.mrb[0].mxu0
          %v1710 = vpop.f32.mrb[0].mxu0
          %v1711 = vadd.f32 0.0, %v1710
          %v1712 = vpop.f32.mrb[0].mxu0
          %1713 = vdwg.mxu0
          %v1715 = vsel %vm1235, %v1624, 0
          %1717 = vmatprep.subr.bf16.mxu0 0
          %1718 = vmatpush1.bf16.msra.mxu0 %v1158
          %1719 = vmatprep.subr.bf16.mxu0 0
          %1720 = vmatpush1.bf16.msra.mxu0 0
          %1721 = vmatprep.subr.bf16.mxu0 0
          %1722 = vmatpush1.bf16.msra.mxu0 0
          %1723 = vmatprep.subr.bf16.mxu0 0
          %1724 = vmatpush1.bf16.msra.mxu0 0
          %1725 = vmatprep.subr.bf16.mxu0 0
          %1726 = vmatpush1.bf16.msra.mxu0 0
          %1727 = vmatprep.subr.bf16.mxu0 0
          %1728 = vmatpush1.bf16.msra.mxu0 0
          %1729 = vmatprep.subr.bf16.mxu0 0
          %1730 = vmatpush1.bf16.msra.mxu0 0
          %1731 = vmatprep.subr.bf16.mxu0 0
          %1732 = vmatpush1.bf16.msra.mxu0 0
          %1733 = vmatprep.subr.bf16.mxu0 0
          %1734 = vmatpush1.bf16.msra.mxu0 0
          %1735 = vmatprep.subr.bf16.mxu0 0
          %1736 = vmatpush1.bf16.msra.mxu0 0
          %1737 = vmatprep.subr.bf16.mxu0 0
          %1738 = vmatpush1.bf16.msra.mxu0 0
          %1739 = vmatprep.subr.bf16.mxu0 0
          %1740 = vmatpush1.bf16.msra.mxu0 0
          %1741 = vmatprep.subr.bf16.mxu0 0
          %1742 = vmatpush1.bf16.msra.mxu0 0
          %1743 = vmatprep.subr.bf16.mxu0 0
          %1744 = vmatpush1.bf16.msra.mxu0 0
          %1745 = vmatprep.subr.bf16.mxu0 0
          %1746 = vmatpush1.bf16.msra.mxu0 0
          %1747 = vmatprep.subr.bf16.mxu0 0
          %1748 = vmatpush1.bf16.msra.mxu0 0
          %1749 = vmatprep.mubr.bf16.mxu0 0
          %1750 = vmatmul.mubr.bf16.gmra.mrb[0].mxu0 %v1715
          %v1751 = vpop.f32.mrb[0].mxu0
          %v1752 = vadd.f32 0.0, %v1751
          %v1753 = vpop.f32.mrb[0].mxu0
          %v1754 = vpop.f32.mrb[0].mxu0
          %v1755 = vadd.f32 0.0, %v1754
          %v1756 = vpop.f32.mrb[0].mxu0
          %1757 = vdwg.mxu0
          %v1759 = vsel %vm1235, %v1625, 0
          %1761 = vmatprep.subr.bf16.mxu0 0
          %1762 = vmatpush1.bf16.msra.mxu0 %v1161
          %1763 = vmatprep.subr.bf16.mxu0 0
          %1764 = vmatpush1.bf16.msra.mxu0 0
          %1765 = vmatprep.subr.bf16.mxu0 0
          %1766 = vmatpush1.bf16.msra.mxu0 0
          %1767 = vmatprep.subr.bf16.mxu0 0
          %1768 = vmatpush1.bf16.msra.mxu0 0
          %1769 = vmatprep.subr.bf16.mxu0 0
          %1770 = vmatpush1.bf16.msra.mxu0 0
          %1771 = vmatprep.subr.bf16.mxu0 0
          %1772 = vmatpush1.bf16.msra.mxu0 0
          %1773 = vmatprep.subr.bf16.mxu0 0
          %1774 = vmatpush1.bf16.msra.mxu0 0
          %1775 = vmatprep.subr.bf16.mxu0 0
          %1776 = vmatpush1.bf16.msra.mxu0 0
          %1777 = vmatprep.subr.bf16.mxu0 0
          %1778 = vmatpush1.bf16.msra.mxu0 0
          %1779 = vmatprep.subr.bf16.mxu0 0
          %1780 = vmatpush1.bf16.msra.mxu0 0
          %1781 = vmatprep.subr.bf16.mxu0 0
          %1782 = vmatpush1.bf16.msra.mxu0 0
          %1783 = vmatprep.subr.bf16.mxu0 0
          %1784 = vmatpush1.bf16.msra.mxu0 0
          %1785 = vmatprep.subr.bf16.mxu0 0
          %1786 = vmatpush1.bf16.msra.mxu0 0
          %1787 = vmatprep.subr.bf16.mxu0 0
          %1788 = vmatpush1.bf16.msra.mxu0 0
          %1789 = vmatprep.subr.bf16.mxu0 0
          %1790 = vmatpush1.bf16.msra.mxu0 0
          %1791 = vmatprep.subr.bf16.mxu0 0
          %1792 = vmatpush1.bf16.msra.mxu0 0
          %1793 = vmatprep.mubr.bf16.mxu0 0
          %1794 = vmatmul.mubr.bf16.gmra.mrb[0].mxu0 %v1759
          %v1795 = vpop.f32.mrb[0].mxu0
          %v1796 = vadd.f32 0.0, %v1795
          %v1797 = vpop.f32.mrb[0].mxu0
          %v1798 = vpop.f32.mrb[0].mxu0
          %v1799 = vadd.f32 0.0, %v1798
          %v1800 = vpop.f32.mrb[0].mxu0
          %1801 = vdwg.mxu0
          %v1802 = vld [vmem:[#allocation5] sm:$0xff]
          %v1803 = vld [vmem:[#allocation5 + $0x8] sm:$0xff]
          %v1804 = vld [vmem:[#allocation5 + $0x10] sm:$0xff]
          %v1805 = vld [vmem:[#allocation5 + $0x18] sm:$0xff]
          %v1806 = vld [vmem:[#allocation5 + $0x20] sm:$0xff]
          %v1807 = vld [vmem:[#allocation5 + $0x28] sm:$0xff]
          %v1808 = vld [vmem:[#allocation5 + $0x30] sm:$0xff]
          %v1809 = vld [vmem:[#allocation5 + $0x38] sm:$0xff]
          %1811 = vset.pattern.permute.xlu0 0
          %1812 = vperm.xlu0 %1811, %v1486
          %v1813 = vpop.permute.xlu0 %1812
          %1816 = vset.pattern.permute.xlu0 0
          %1817 = vperm.xlu0 %1816, %v1488
          %v1818 = vpop.permute.xlu0 %1817
          %1821 = vset.pattern.permute.xlu0 0
          %1822 = vperm.xlu0 %1821, %v1490
          %v1823 = vpop.permute.xlu0 %1822
          %1826 = vset.pattern.permute.xlu0 0
          %1827 = vperm.xlu0 %1826, %v1492
          %v1828 = vpop.permute.xlu0 %1827
          %1831 = vset.pattern.permute.xlu0 0
          %1832 = vperm.xlu0 %1831, %v1494
          %v1833 = vpop.permute.xlu0 %1832
          %1836 = vset.pattern.permute.xlu0 0
          %1837 = vperm.xlu0 %1836, %v1496
          %v1838 = vpop.permute.xlu0 %1837
          %1841 = vset.pattern.permute.xlu0 0
          %1842 = vperm.xlu0 %1841, %v1498
          %v1843 = vpop.permute.xlu0 %1842
          %1846 = vset.pattern.permute.xlu0 0
          %1847 = vperm.xlu0 %1846, %v1500
          %v1848 = vpop.permute.xlu0 %1847
          %v1850 = vmul.f32 %v1813, %v1802
          %v1851 = vmul.f32 %v1818, %v1803
          %v1852 = vmul.f32 %v1823, %v1804
          %v1853 = vmul.f32 %v1828, %v1805
          %v1854 = vmul.f32 %v1833, %v1806
          %v1855 = vmul.f32 %v1838, %v1807
          %v1856 = vmul.f32 %v1843, %v1808
          %v1857 = vmul.f32 %v1848, %v1809
          %v1858 = vadd.f32 %v1850, %v1664
          %v1859 = vadd.f32 %v1851, %v1667
          %v1860 = vadd.f32 %v1852, %v1708
          %v1861 = vadd.f32 %v1853, %v1711
          %v1862 = vadd.f32 %v1854, %v1752
          %v1863 = vadd.f32 %v1855, %v1755
          %v1864 = vadd.f32 %v1856, %v1796
          %v1865 = vadd.f32 %v1857, %v1799
          %1866 = vst.msk [vmem:[#allocation5] sm:$0xff] %vm1235, %v1858
          %1867 = vst.msk [vmem:[#allocation5 + $0x8] sm:$0xff] %vm1235, %v1859
          %1868 = vst.msk [vmem:[#allocation5 + $0x10] sm:$0xff] %vm1235, %v1860
          %1869 = vst.msk [vmem:[#allocation5 + $0x18] sm:$0xff] %vm1235, %v1861
          %1870 = vst.msk [vmem:[#allocation5 + $0x20] sm:$0xff] %vm1235, %v1862
          %1871 = vst.msk [vmem:[#allocation5 + $0x28] sm:$0xff] %vm1235, %v1863
          %1872 = vst.msk [vmem:[#allocation5 + $0x30] sm:$0xff] %vm1235, %v1864
          %1873 = vst.msk [vmem:[#allocation5 + $0x38] sm:$0xff] %vm1235, %v1865
          %1874 = vst.msk [vmem:[#allocation3] sm:$0xff] %vm1613, %v1469
          %1875 = vst.msk [vmem:[#allocation3 + $0x8] sm:$0xff] %vm1613, %v1470
          %1876 = vst.msk [vmem:[#allocation3 + $0x10] sm:$0xff] %vm1613, %v1471
          %1877 = vst.msk [vmem:[#allocation3 + $0x18] sm:$0xff] %vm1613, %v1472
          %1878 = vst.msk [vmem:[#allocation3 + $0x20] sm:$0xff] %vm1613, %v1473
          %1879 = vst.msk [vmem:[#allocation3 + $0x28] sm:$0xff] %vm1613, %v1474
          %1880 = vst.msk [vmem:[#allocation3 + $0x30] sm:$0xff] %vm1613, %v1475
          %1881 = vst.msk [vmem:[#allocation3 + $0x38] sm:$0xff] %vm1613, %v1476
        $region132: #{tpu_custom_call.1} parent=91 // pred_fallthru
          _
        %p1882 = scmp.eq.s32.totalorder %s44, 1
        // Predicated region
        $region133: #{tpu_custom_call.1} parent=91 // pred_check
          %p1883 = pneg %p1882
        $region134: #{tpu_custom_call.1} parent=91 // pred_check_branch
          %1885 = sbr.rel (%p1883) target = $region136
        $region135: #{tpu_custom_call.1} parent=91 // pred_region
          %v1886 = vld [vmem:[#allocation5] sm:$0xff]
          %v1887 = vld [vmem:[#allocation5 + $0x8] sm:$0xff]
          %v1888 = vld [vmem:[#allocation5 + $0x10] sm:$0xff]
          %v1889 = vld [vmem:[#allocation5 + $0x18] sm:$0xff]
          %v1890 = vld [vmem:[#allocation5 + $0x20] sm:$0xff]
          %v1891 = vld [vmem:[#allocation5 + $0x28] sm:$0xff]
          %v1892 = vld [vmem:[#allocation5 + $0x30] sm:$0xff]
          %v1893 = vld [vmem:[#allocation5 + $0x38] sm:$0xff]
          %v1894 = vld [vmem:[#allocation4] sm:$0xff]
          %v1895 = vld [vmem:[#allocation4 + $0x8] sm:$0xff]
          %v1896 = vld [vmem:[#allocation4 + $0x10] sm:$0xff]
          %v1897 = vld [vmem:[#allocation4 + $0x18] sm:$0xff]
          %v1898 = vld [vmem:[#allocation4 + $0x20] sm:$0xff]
          %v1899 = vld [vmem:[#allocation4 + $0x28] sm:$0xff]
          %v1900 = vld [vmem:[#allocation4 + $0x30] sm:$0xff]
          %v1901 = vld [vmem:[#allocation4 + $0x38] sm:$0xff]
          %v1902 = vrcp.pop %v1894
          %v1903 = vrcp.pop %v1895
          %v1904 = vrcp.pop %v1896
          %v1905 = vrcp.pop %v1897
          %v1906 = vrcp.pop %v1898
          %v1907 = vrcp.pop %v1899
          %v1908 = vrcp.pop %v1900
          %v1909 = vrcp.pop %v1901
          %1911 = vset.pattern.permute.xlu0 0
          %1912 = vperm.xlu0 %1911, %v1902
          %v1913 = vpop.permute.xlu0 %1912
          %1916 = vset.pattern.permute.xlu0 0
          %1917 = vperm.xlu0 %1916, %v1903
          %v1918 = vpop.permute.xlu0 %1917
          %1921 = vset.pattern.permute.xlu0 0
          %1922 = vperm.xlu0 %1921, %v1904
          %v1923 = vpop.permute.xlu0 %1922
          %1926 = vset.pattern.permute.xlu0 0
          %1927 = vperm.xlu0 %1926, %v1905
          %v1928 = vpop.permute.xlu0 %1927
          %1931 = vset.pattern.permute.xlu0 0
          %1932 = vperm.xlu0 %1931, %v1906
          %v1933 = vpop.permute.xlu0 %1932
          %1936 = vset.pattern.permute.xlu0 0
          %1937 = vperm.xlu0 %1936, %v1907
          %v1938 = vpop.permute.xlu0 %1937
          %1941 = vset.pattern.permute.xlu0 0
          %1942 = vperm.xlu0 %1941, %v1908
          %v1943 = vpop.permute.xlu0 %1942
          %1946 = vset.pattern.permute.xlu0 0
          %1947 = vperm.xlu0 %1946, %v1909
          %v1948 = vpop.permute.xlu0 %1947
          %v1950 = vmul.f32 %v1886, %v1913
          %v1951 = vmul.f32 %v1887, %v1918
          %v1952 = vmul.f32 %v1888, %v1923
          %v1953 = vmul.f32 %v1889, %v1928
          %v1954 = vmul.f32 %v1890, %v1933
          %v1955 = vmul.f32 %v1891, %v1938
          %v1956 = vmul.f32 %v1892, %v1943
          %v1957 = vmul.f32 %v1893, %v1948
          %1960 = vrot.lane.b32.xlu0 %v1952, 16
          %v1961 = vpop.permute.xlu0 %1960
          %1962 = vrot.lane.b32.xlu0 %v1953, 16
          %v1963 = vpop.permute.xlu0 %1962
          %1968 = vrot.lane.b32.xlu0 %v1954, 32
          %v1969 = vpop.permute.xlu0 %1968
          %1970 = vrot.lane.b32.xlu0 %v1955, 32
          %v1971 = vpop.permute.xlu0 %1970
          %1976 = vrot.lane.b32.xlu0 %v1956, 48
          %v1977 = vpop.permute.xlu0 %1976
          %1978 = vrot.lane.b32.xlu0 %v1957, 48
          %v1979 = vpop.permute.xlu0 %1978
          %vm1982 = vcmask 130048
          %v1983 = vsel %vm1982, %v1950, %v1961
          %v1984 = vsel %vm1982, %v1951, %v1963
          %vm1985 = vcmask 261120
          %v1986 = vsel %vm1985, %v1983, %v1969
          %v1987 = vsel %vm1985, %v1984, %v1971
          %vm1988 = vcmask 392192
          %v1989 = vsel %vm1988, %v1986, %v1977
          %v1990 = vsel %vm1988, %v1987, %v1979
          %v1991 = vpack.c.bf16 %v1990, %v1989
          %v1992 = vld [vmem:[%s10] sm:$0xf]
          %v1993 = vld [vmem:[%s10 + $0x4] sm:$0xf]
          %v1994 = vld [vmem:[%s10 + $0x8] sm:$0xf]
          %v1995 = vld [vmem:[%s10 + $0xc] sm:$0xf]
          %v1996 = vld [vmem:[%s10 + $0x10] sm:$0xf]
          %v1997 = vld [vmem:[%s10 + $0x14] sm:$0xf]
          %v1998 = vld [vmem:[%s10 + $0x18] sm:$0xf]
          %v1999 = vld [vmem:[%s10 + $0x1c] sm:$0xf]
          %v2000 = vld [vmem:[%s11] sm:$0x1]
          %v2002 = vlaneseq
          %v2003 = vshrl.u32 %v2002, 7
          %v2004 = vsub.s32 0, %v2003
          %v2005 = vrot.slane %v2000, %v2004
          %v2015 = vunpack.c.l.b16 %v1992
          %v2016 = vunpack.c.l.b16 %v1993
          %v2017 = vunpack.c.l.b16 %v1994
          %v2018 = vunpack.c.l.b16 %v1995
          %v2019 = vunpack.c.l.b16 %v1996
          %v2020 = vunpack.c.l.b16 %v1997
          %v2021 = vunpack.c.l.b16 %v1998
          %v2022 = vunpack.c.l.b16 %v1999
          %v2023 = vpack.c.b16 %v2016, %v2015
          %v2024 = vpack.c.b16 %v2018, %v2017
          %v2025 = vpack.c.b16 %v2020, %v2019
          %v2026 = vpack.c.b16 %v2022, %v2021
          %vm2031 = vcmask 523264
          %v2033 = vsel %vm2031, %v1991, 0
          %2035 = vmatprep.subr.bf16.mxu0 0
          %2036 = vmatpush1.bf16.msra.mxu0 %v2023
          %2037 = vmatprep.subr.bf16.mxu0 0
          %2038 = vmatpush1.bf16.msra.mxu0 %v2024
          %2039 = vmatprep.subr.bf16.mxu0 0
          %2040 = vmatpush1.bf16.msra.mxu0 %v2025
          %2041 = vmatprep.subr.bf16.mxu0 0
          %2042 = vmatpush1.bf16.msra.mxu0 %v2026
          %2043 = vmatprep.subr.bf16.mxu0 0
          %2044 = vmatpush1.bf16.msra.mxu0 0
          %2045 = vmatprep.subr.bf16.mxu0 0
          %2046 = vmatpush1.bf16.msra.mxu0 0
          %2047 = vmatprep.subr.bf16.mxu0 0
          %2048 = vmatpush1.bf16.msra.mxu0 0
          %2049 = vmatprep.subr.bf16.mxu0 0
          %2050 = vmatpush1.bf16.msra.mxu0 0
          %2051 = vmatprep.subr.bf16.mxu0 0
          %2052 = vmatpush1.bf16.msra.mxu0 0
          %2053 = vmatprep.subr.bf16.mxu0 0
          %2054 = vmatpush1.bf16.msra.mxu0 0
          %2055 = vmatprep.subr.bf16.mxu0 0
          %2056 = vmatpush1.bf16.msra.mxu0 0
          %2057 = vmatprep.subr.bf16.mxu0 0
          %2058 = vmatpush1.bf16.msra.mxu0 0
          %2059 = vmatprep.subr.bf16.mxu0 0
          %2060 = vmatpush1.bf16.msra.mxu0 0
          %2061 = vmatprep.subr.bf16.mxu0 0
          %2062 = vmatpush1.bf16.msra.mxu0 0
          %2063 = vmatprep.subr.bf16.mxu0 0
          %2064 = vmatpush1.bf16.msra.mxu0 0
          %2065 = vmatprep.subr.bf16.mxu0 0
          %2066 = vmatpush1.bf16.msra.mxu0 0
          %2067 = vmatprep.mubr.bf16.mxu0 0
          %2068 = vmatmul.mubr.bf16.gmra.mrb[0].mxu0 %v2033
          %v2069 = vpop.f32.mrb[0].mxu0
          %v2070 = vadd.f32 %v2005, %v2069
          %v2071 = vpop.f32.mrb[0].mxu0
          %v2072 = vpop.f32.mrb[0].mxu0
          %v2073 = vadd.f32 %v2005, %v2072
          %v2074 = vpop.f32.mrb[0].mxu0
          %2075 = vdwg.mxu0
          %v2076 = vld [vmem:[%s742] sm:$0xff]
          %v2077 = vld [vmem:[%s742 + $0x8] sm:$0xff]
          %v2078 = vadd.f32 %v2076, %v2070
          %v2079 = vadd.f32 %v2077, %v2073
          %v2080 = vld [vmem:[%s12] sm:$0x1]
          %v2081 = vld [vmem:[%s13] sm:$0x1]
          %v2082 = vsel %vm2031, %v2078, 0.0
          %2083 = vadd.xlane.f32.xlu0 %v2082
          %v2084 = vpop.xlane.xlu0 %2083
          %v2085 = vsel %vm2031, %v2079, 0.0
          %2086 = vadd.xlane.f32.xlu0 %v2085
          %v2087 = vpop.xlane.xlu0 %2086
          %v2088 = vrcp.pop 64.0
          %v2089 = vmul.f32 %v2084, %v2088
          %v2090 = vmul.f32 %v2087, %v2088
          %v2091 = vsub.f32 %v2078, %v2089
          %v2092 = vsub.f32 %v2079, %v2090
          %v2093 = vmul.f32 %v2091, %v2091
          %v2094 = vmul.f32 %v2092, %v2092
          %v2095 = vsel %vm2031, %v2093, 0.0
          %2096 = vadd.xlane.f32.xlu0 %v2095
          %v2097 = vpop.xlane.xlu0 %2096
          %v2098 = vsel %vm2031, %v2094, 0.0
          %2099 = vadd.xlane.f32.xlu0 %v2098
          %v2100 = vpop.xlane.xlu0 %2099
          %v2101 = vmul.f32 %v2097, %v2088
          %v2102 = vmul.f32 %v2100, %v2088
          %v2103 = vadd.f32 %v2101, 1e-05
          %v2104 = vadd.f32 %v2102, 1e-05
          %v2105 = vrsqrt.pop %v2103
          %v2106 = vrsqrt.pop %v2104
          %v2107 = vmul.f32 %v2091, %v2105
          %v2108 = vmul.f32 %v2092, %v2106
          %v2110 = vlaneseq
          %v2111 = vshrl.u32 %v2110, 7
          %v2112 = vsub.s32 0, %v2111
          %v2113 = vrot.slane %v2080, %v2112
          %v2115 = vmul.f32 %v2107, %v2113
          %v2116 = vmul.f32 %v2108, %v2113
          %v2118 = vlaneseq
          %v2119 = vshrl.u32 %v2118, 7
          %v2120 = vsub.s32 0, %v2119
          %v2121 = vrot.slane %v2081, %v2120
          %v2123 = vadd.f32 %v2115, %v2121
          %v2124 = vadd.f32 %v2116, %v2121
          %v2125 = vpack.c.bf16 %v2124, %v2123
          %v2126 = vld [vmem:[%s14] sm:$0xff]
          %v2127 = vld [vmem:[%s14 + $0x8] sm:$0xff]
          %v2128 = vld [vmem:[%s14 + $0x10] sm:$0xff]
          %v2129 = vld [vmem:[%s14 + $0x18] sm:$0xff]
          %v2130 = vld [vmem:[%s14 + $0x20] sm:$0xff]
          %v2131 = vld [vmem:[%s14 + $0x28] sm:$0xff]
          %v2132 = vld [vmem:[%s14 + $0x30] sm:$0xff]
          %v2133 = vld [vmem:[%s14 + $0x38] sm:$0xff]
          %v2134 = vld [vmem:[%s15] sm:$0x3]
          %v2136 = vlaneseq
          %v2137 = vshrl.u32 %v2136, 7
          %v2138 = vsub.s32 0, %v2137
          %v2139 = vrot.slane %v2134, %v2138
          %v2140 = vlaneseq
          %v2141 = vshrl.u32 %v2140, 7
          %v2142 = vsub.s32 1, %v2141
          %v2143 = vrot.slane %v2134, %v2142
          %v2154 = vunpack.c.l.b16 %v2126
          %v2155 = vunpack.c.h.b16 %v2126
          %v2156 = vunpack.c.l.b16 %v2127
          %v2157 = vunpack.c.h.b16 %v2127
          %v2158 = vunpack.c.l.b16 %v2128
          %v2159 = vunpack.c.h.b16 %v2128
          %v2160 = vunpack.c.l.b16 %v2129
          %v2161 = vunpack.c.h.b16 %v2129
          %v2162 = vunpack.c.l.b16 %v2130
          %v2163 = vunpack.c.h.b16 %v2130
          %v2164 = vunpack.c.l.b16 %v2131
          %v2165 = vunpack.c.h.b16 %v2131
          %v2166 = vunpack.c.l.b16 %v2132
          %v2167 = vunpack.c.h.b16 %v2132
          %v2168 = vunpack.c.l.b16 %v2133
          %v2169 = vunpack.c.h.b16 %v2133
          %v2170 = vpack.c.b16 %v2156, %v2154
          %v2171 = vpack.c.b16 %v2157, %v2155
          %v2172 = vpack.c.b16 %v2160, %v2158
          %v2173 = vpack.c.b16 %v2161, %v2159
          %v2174 = vpack.c.b16 %v2164, %v2162
          %v2175 = vpack.c.b16 %v2165, %v2163
          %v2176 = vpack.c.b16 %v2168, %v2166
          %v2177 = vpack.c.b16 %v2169, %v2167
          %v2187 = vsel %vm2031, %v2125, 0
          %2189 = vmatprep.subr.bf16.mxu0 %v2171
          %2190 = vmatpush1.bf16.msra.mxu0 %v2170
          %2191 = vmatprep.subr.bf16.mxu0 %v2173
          %2192 = vmatpush1.bf16.msra.mxu0 %v2172
          %2193 = vmatprep.subr.bf16.mxu0 %v2175
          %2194 = vmatpush1.bf16.msra.mxu0 %v2174
          %2195 = vmatprep.subr.bf16.mxu0 %v2177
          %2196 = vmatpush1.bf16.msra.mxu0 %v2176
          %2197 = vmatprep.subr.bf16.mxu0 0
          %2198 = vmatpush1.bf16.msra.mxu0 0
          %2199 = vmatprep.subr.bf16.mxu0 0
          %2200 = vmatpush1.bf16.msra.mxu0 0
          %2201 = vmatprep.subr.bf16.mxu0 0
          %2202 = vmatpush1.bf16.msra.mxu0 0
          %2203 = vmatprep.subr.bf16.mxu0 0
          %2204 = vmatpush1.bf16.msra.mxu0 0
          %2205 = vmatprep.subr.bf16.mxu0 0
          %2206 = vmatpush1.bf16.msra.mxu0 0
          %2207 = vmatprep.subr.bf16.mxu0 0
          %2208 = vmatpush1.bf16.msra.mxu0 0
          %2209 = vmatprep.subr.bf16.mxu0 0
          %2210 = vmatpush1.bf16.msra.mxu0 0
          %2211 = vmatprep.subr.bf16.mxu0 0
          %2212 = vmatpush1.bf16.msra.mxu0 0
          %2213 = vmatprep.subr.bf16.mxu0 0
          %2214 = vmatpush1.bf16.msra.mxu0 0
          %2215 = vmatprep.subr.bf16.mxu0 0
          %2216 = vmatpush1.bf16.msra.mxu0 0
          %2217 = vmatprep.subr.bf16.mxu0 0
          %2218 = vmatpush1.bf16.msra.mxu0 0
          %2219 = vmatprep.subr.bf16.mxu0 0
          %2220 = vmatpush1.bf16.msra.mxu0 0
          %2221 = vmatprep.mubr.bf16.mxu0 0
          %2222 = vmatmul.mubr.bf16.gmra.mrb[0].mxu0 %v2187
          %v2223 = vpop.f32.mrb[0].mxu0
          %v2224 = vadd.f32 %v2139, %v2223
          %v2225 = vpop.f32.mrb[0].mxu0
          %v2226 = vadd.f32 %v2143, %v2225
          %v2227 = vpop.f32.mrb[0].mxu0
          %v2228 = vadd.f32 %v2139, %v2227
          %v2229 = vpop.f32.mrb[0].mxu0
          %v2230 = vadd.f32 %v2143, %v2229
          %2231 = vdwg.mxu0
          %v2232 = vmul.f32 %v2224, 0.5
          %v2233 = vmul.f32 %v2226, 0.5
          %v2234 = vmul.f32 %v2228, 0.5
          %v2235 = vmul.f32 %v2230, 0.5
          %v2236 = vmul.f32 %v2224, 0.70710677
          %v2237 = vmul.f32 %v2226, 0.70710677
          %v2238 = vmul.f32 %v2228, 0.70710677
          %v2239 = vmul.f32 %v2230, 0.70710677
          %v2240 = verf.f32.pop %v2236
          %v2241 = verf.f32.pop %v2237
          %v2242 = verf.f32.pop %v2238
          %v2243 = verf.f32.pop %v2239
          %v2244 = vadd.f32 %v2240, 1.0
          %v2245 = vadd.f32 %v2241, 1.0
          %v2246 = vadd.f32 %v2242, 1.0
          %v2247 = vadd.f32 %v2243, 1.0
          %v2248 = vmul.f32 %v2232, %v2244
          %v2249 = vmul.f32 %v2233, %v2245
          %v2250 = vmul.f32 %v2234, %v2246
          %v2251 = vmul.f32 %v2235, %v2247
          %v2252 = vpack.c.bf16 %v2250, %v2248
          %v2253 = vpack.c.bf16 %v2251, %v2249
          %v2254 = vld [vmem:[%s16] sm:$0xf]
          %v2255 = vld [vmem:[%s16 + $0x4] sm:$0xf]
          %v2256 = vld [vmem:[%s16 + $0x8] sm:$0xf]
          %v2257 = vld [vmem:[%s16 + $0xc] sm:$0xf]
          %v2258 = vld [vmem:[%s16 + $0x10] sm:$0xf]
          %v2259 = vld [vmem:[%s16 + $0x14] sm:$0xf]
          %v2260 = vld [vmem:[%s16 + $0x18] sm:$0xf]
          %v2261 = vld [vmem:[%s16 + $0x1c] sm:$0xf]
          %v2262 = vld [vmem:[%s16 + $0x20] sm:$0xf]
          %v2263 = vld [vmem:[%s16 + $0x24] sm:$0xf]
          %v2264 = vld [vmem:[%s16 + $0x28] sm:$0xf]
          %v2265 = vld [vmem:[%s16 + $0x2c] sm:$0xf]
          %v2266 = vld [vmem:[%s16 + $0x30] sm:$0xf]
          %v2267 = vld [vmem:[%s16 + $0x34] sm:$0xf]
          %v2268 = vld [vmem:[%s16 + $0x38] sm:$0xf]
          %v2269 = vld [vmem:[%s16 + $0x3c] sm:$0xf]
          %v2270 = vld [vmem:[%s16 + $0x40] sm:$0xf]
          %v2271 = vld [vmem:[%s16 + $0x44] sm:$0xf]
          %v2272 = vld [vmem:[%s16 + $0x48] sm:$0xf]
          %v2273 = vld [vmem:[%s16 + $0x4c] sm:$0xf]
          %v2274 = vld [vmem:[%s16 + $0x50] sm:$0xf]
          %v2275 = vld [vmem:[%s16 + $0x54] sm:$0xf]
          %v2276 = vld [vmem:[%s16 + $0x58] sm:$0xf]
          %v2277 = vld [vmem:[%s16 + $0x5c] sm:$0xf]
          %v2278 = vld [vmem:[%s16 + $0x60] sm:$0xf]
          %v2279 = vld [vmem:[%s16 + $0x64] sm:$0xf]
          %v2280 = vld [vmem:[%s16 + $0x68] sm:$0xf]
          %v2281 = vld [vmem:[%s16 + $0x6c] sm:$0xf]
          %v2282 = vld [vmem:[%s16 + $0x70] sm:$0xf]
          %v2283 = vld [vmem:[%s16 + $0x74] sm:$0xf]
          %v2284 = vld [vmem:[%s16 + $0x78] sm:$0xf]
          %v2285 = vld [vmem:[%s16 + $0x7c] sm:$0xf]
          %v2286 = vld [vmem:[%s17] sm:$0x1]
          %v2288 = vlaneseq
          %v2289 = vshrl.u32 %v2288, 7
          %v2290 = vsub.s32 0, %v2289
          %v2291 = vrot.slane %v2286, %v2290
          %v2325 = vunpack.c.l.b16 %v2254
          %v2326 = vunpack.c.l.b16 %v2255
          %v2327 = vunpack.c.l.b16 %v2256
          %v2328 = vunpack.c.l.b16 %v2257
          %v2329 = vunpack.c.l.b16 %v2258
          %v2330 = vunpack.c.l.b16 %v2259
          %v2331 = vunpack.c.l.b16 %v2260
          %v2332 = vunpack.c.l.b16 %v2261
          %v2333 = vunpack.c.l.b16 %v2262
          %v2334 = vunpack.c.l.b16 %v2263
          %v2335 = vunpack.c.l.b16 %v2264
          %v2336 = vunpack.c.l.b16 %v2265
          %v2337 = vunpack.c.l.b16 %v2266
          %v2338 = vunpack.c.l.b16 %v2267
          %v2339 = vunpack.c.l.b16 %v2268
          %v2340 = vunpack.c.l.b16 %v2269
          %v2341 = vunpack.c.l.b16 %v2270
          %v2342 = vunpack.c.l.b16 %v2271
          %v2343 = vunpack.c.l.b16 %v2272
          %v2344 = vunpack.c.l.b16 %v2273
          %v2345 = vunpack.c.l.b16 %v2274
          %v2346 = vunpack.c.l.b16 %v2275
          %v2347 = vunpack.c.l.b16 %v2276
          %v2348 = vunpack.c.l.b16 %v2277
          %v2349 = vunpack.c.l.b16 %v2278
          %v2350 = vunpack.c.l.b16 %v2279
          %v2351 = vunpack.c.l.b16 %v2280
          %v2352 = vunpack.c.l.b16 %v2281
          %v2353 = vunpack.c.l.b16 %v2282
          %v2354 = vunpack.c.l.b16 %v2283
          %v2355 = vunpack.c.l.b16 %v2284
          %v2356 = vunpack.c.l.b16 %v2285
          %v2357 = vpack.c.b16 %v2326, %v2325
          %v2358 = vpack.c.b16 %v2328, %v2327
          %v2359 = vpack.c.b16 %v2330, %v2329
          %v2360 = vpack.c.b16 %v2332, %v2331
          %v2361 = vpack.c.b16 %v2334, %v2333
          %v2362 = vpack.c.b16 %v2336, %v2335
          %v2363 = vpack.c.b16 %v2338, %v2337
          %v2364 = vpack.c.b16 %v2340, %v2339
          %v2365 = vpack.c.b16 %v2342, %v2341
          %v2366 = vpack.c.b16 %v2344, %v2343
          %v2367 = vpack.c.b16 %v2346, %v2345
          %v2368 = vpack.c.b16 %v2348, %v2347
          %v2369 = vpack.c.b16 %v2350, %v2349
          %v2370 = vpack.c.b16 %v2352, %v2351
          %v2371 = vpack.c.b16 %v2354, %v2353
          %v2372 = vpack.c.b16 %v2356, %v2355
          %2389 = vmatprep.subr.bf16.mxu0 0
          %2390 = vmatpush1.bf16.msra.mxu0 %v2357
          %2391 = vmatprep.subr.bf16.mxu0 0
          %2392 = vmatpush1.bf16.msra.mxu0 %v2358
          %2393 = vmatprep.subr.bf16.mxu0 0
          %2394 = vmatpush1.bf16.msra.mxu0 %v2359
          %2395 = vmatprep.subr.bf16.mxu0 0
          %2396 = vmatpush1.bf16.msra.mxu0 %v2360
          %2397 = vmatprep.subr.bf16.mxu0 0
          %2398 = vmatpush1.bf16.msra.mxu0 %v2361
          %2399 = vmatprep.subr.bf16.mxu0 0
          %2400 = vmatpush1.bf16.msra.mxu0 %v2362
          %2401 = vmatprep.subr.bf16.mxu0 0
          %2402 = vmatpush1.bf16.msra.mxu0 %v2363
          %2403 = vmatprep.subr.bf16.mxu0 0
          %2404 = vmatpush1.bf16.msra.mxu0 %v2364
          %2405 = vmatprep.subr.bf16.mxu0 0
          %2406 = vmatpush1.bf16.msra.mxu0 %v2365
          %2407 = vmatprep.subr.bf16.mxu0 0
          %2408 = vmatpush1.bf16.msra.mxu0 %v2366
          %2409 = vmatprep.subr.bf16.mxu0 0
          %2410 = vmatpush1.bf16.msra.mxu0 %v2367
          %2411 = vmatprep.subr.bf16.mxu0 0
          %2412 = vmatpush1.bf16.msra.mxu0 %v2368
          %2413 = vmatprep.subr.bf16.mxu0 0
          %2414 = vmatpush1.bf16.msra.mxu0 %v2369
          %2415 = vmatprep.subr.bf16.mxu0 0
          %2416 = vmatpush1.bf16.msra.mxu0 %v2370
          %2417 = vmatprep.subr.bf16.mxu0 0
          %2418 = vmatpush1.bf16.msra.mxu0 %v2371
          %2419 = vmatprep.subr.bf16.mxu0 0
          %2420 = vmatpush1.bf16.msra.mxu0 %v2372
          %2421 = vmatprep.mubr.bf16.mxu0 %v2253
          %2422 = vmatmul.mubr.bf16.gmra.mrb[0].mxu0 %v2252
          %v2423 = vpop.f32.mrb[0].mxu0
          %v2424 = vadd.f32 %v2291, %v2423
          %v2425 = vpop.f32.mrb[0].mxu0
          %v2426 = vpop.f32.mrb[0].mxu0
          %v2427 = vadd.f32 %v2291, %v2426
          %v2428 = vpop.f32.mrb[0].mxu0
          %2429 = vdwg.mxu0
          %v2430 = vadd.f32 %v2078, %v2424
          %v2431 = vadd.f32 %v2079, %v2427
          %2432 = vst.msk [vmem:[%s733] sm:$0xff] %vm2031, %v2430
          %2433 = vst.msk [vmem:[%s733 + $0x8] sm:$0xff] %vm2031, %v2431
        $region136: #{tpu_custom_call.1} parent=91 // pred_fallthru
          _
        %s2434 = sand.u32 %s458, 1
        %s2435 = scalar_lea.sflag [#allocation8], %s2434
        %s2436 = sand.u32 %s458, 1
        %s2437 = smul.addr %s2436, 16
        %s2438 = scalar_lea.vmem [#allocation20], %s2437
        // Predicated region
        $region137: #{tpu_custom_call.1} parent=91 // pred_check
          %p2439 = pneg %p468
        $region138: #{tpu_custom_call.1} parent=91 // pred_check_branch
          %2441 = sbr.rel (%p2439) target = $region140
        $region139: #{tpu_custom_call.1} parent=91 // pred_region
          %s2442 = smul.u32 2, %s43
          %s2444 = ssub.s32 256, 256
          %2445 = vsyncadd %s2435, %s2444
          %s2446 = smul.addr %s42, 4
          %s2447 = sadd.s32 %s2442, %s2446
          %s2448 = smul.addr %s2447, 128
          %s2449 = scalar_lea.hbm %s18, %s2448
          %s2450 = sshll.u32 %s2438, 4
          %s2451 = int_to_ptr.vmem [resolvable:$true] %s2450
          %2456 = dma.vmem_to_hbm [thread:$0]  %s2451, 256, %s2449, %s2435, 128, 128, 8
        $region140: #{tpu_custom_call.1} parent=91 // pred_fallthru
          _
      $region92: #{tpu_custom_call.1} parent=5 // pred_fallthru
        _
      %p2457 = scmp.le.s32.totalorder 2, %s32
      // Predicated region
      $region141: #{tpu_custom_call.1} parent=5 // pred_check
        %p2458 = pneg %p2457
      $region142: #{tpu_custom_call.1} parent=5 // pred_check_branch
        %2460 = sbr.rel (%p2458) target = $region144
      $region143: #{tpu_custom_call.1} parent=5 // pred_region
        %s2461 = ssub.s32 %s32, 2
        // Predicated region
        $region145: #{tpu_custom_call.1} parent=143 // pred_check
          %p2462 = pneg %p474
        $region146: #{tpu_custom_call.1} parent=143 // pred_check_branch
          %2464 = sbr.rel (%p2462) target = $region148
        $region147: #{tpu_custom_call.1} parent=143 // pred_region
          %s2465 = sand.u32 %s459, 1
          %s2466 = scalar_lea.sflag [#allocation8], %s2465
          %s2467 = sand.u32 %s459, 1
          %s2468 = smul.addr %s2467, 16
          %s2469 = scalar_lea.vmem [#allocation20], %s2468
          %2470 = dma.done %s2466, 256
        $region148: #{tpu_custom_call.1} parent=143 // pred_fallthru
          _
      $region144: #{tpu_custom_call.1} parent=5 // pred_fallthru
        _
    $region6: #{tpu_custom_call.1} parent=1 // loop_footer
      %s36 = sadd.s32 1, %s32
    $region7: #{tpu_custom_call.1} parent=1 // loop_footer_branch
      %31 = sbr.rel target = $region3
    $region8: #{tpu_custom_call.1} parent=1 // loop_exit
      _
    %2471 = vsyncpa [#allocation7], 1
    %s2472 = scalar_lea.sflag [#allocation7], 1
    %2473 = vsyncpa %s2472, 1
    %2474 = vsyncpa [#allocation10], 1
    %2475 = vsyncpa [#allocation13], 1
    %2476 = vsyncpa [#allocation16], 1
    %2477 = vsyncpa [#allocation19], 1
    %2478 = vsyncpa [#allocation8], 1
    %s2479 = scalar_lea.sflag [#allocation8], 1
    %2480 = vsyncpa %s2479, 1

</llo_original>
